<compile_context>
chip_gen: v5e
topology: v5e:2x2
jax: 0.10.0
libtpu: 0.0.40
codegen_flags: <defaults>
</compile_context>

<pallas_src>
import functools

import jax
import jax.numpy as jnp
from jax.experimental import pallas as pl
from jax.experimental.pallas import tpu as pltpu

N_HIDDEN = 128      # module: self.n_hidden
N_LATENT = 16       # module: self.n_latent
N_WINDOW = 3        # module: self.n_window (timesteps iterated in forward)
G = 4 * N_HIDDEN    # 512 = packed LSTM gate width == lane width of the slabs

# Row offsets of each 128-row block inside the packed bf16 weight slab.
_ENC_WIH = 0 * N_HIDDEN     # encoder LSTM input weights (feats rows real)
_ENC_WHH = 1 * N_HIDDEN     # encoder LSTM recurrent weights
_DEC_WIH = 2 * N_HIDDEN     # decoder LSTM input weights (n_latent rows real)
_DEC_WHH = 3 * N_HIDDEN     # decoder LSTM recurrent weights
_HEAD    = 4 * N_HIDDEN     # heads: lanes 0:128 z_mean, 128:256 z_logvar, 256:384 x_mean
_W_ROWS  = 5 * N_HIDDEN     # 640


def _softplus(x):
    # numerically stable softplus from exp/log/max only (f32, VPU/EUP)
    return jnp.maximum(x, 0.0) + jnp.log(1.0 + jnp.exp(-jnp.abs(x)))


def vae_lstm_kernel(seq_len, xn_ref, init_ref, w_ref, b_ref, out_ref):
    H = N_HIDDEN

    # ---- loop-invariant parameter views; every slice lands on 128-row/lane
    # boundaries so no relayouts hit the serial critical path ----------------
    enc_w = w_ref[_ENC_WIH:_ENC_WHH + H, :]          # (256, 512) = [wih; whh]
    dec_w = w_ref[_DEC_WIH:_DEC_WHH + H, :]          # (256, 512)
    z_w   = w_ref[_HEAD:_HEAD + H, 0:2 * H]          # (128, 256) = [mu | logvar]
    xm_w  = w_ref[_HEAD:_HEAD + H, 2 * H:3 * H]      # (128, 128)

    enc_b = b_ref[0:1, :]                            # b_ih + b_hh presummed
    dec_b = b_ref[1:2, :]
    z_b   = b_ref[2:3, 0:2 * H]
    xm_b  = b_ref[2:3, 2 * H:3 * H]

    def bdot(a, w):
        # bf16 MXU operands, f32 accumulation; elementwise math stays f32.
        return jnp.dot(a.astype(jnp.bfloat16), w,
                       preferred_element_type=jnp.float32)

    def lstm_cell(x_t, h, c, w, b):
        # PyTorch LSTM cell, gate order (i, f, g, o).
        # Single fused K=256 dot: [x_t | h] @ [wih; whh].
        gates = bdot(jnp.concatenate([x_t, h], axis=1), w) + b   # (B, 4H)
        i = jax.nn.sigmoid(gates[:, 0:H])
        f = jax.nn.sigmoid(gates[:, H:2 * H])
        g = jnp.tanh(gates[:, 2 * H:3 * H])
        o = jax.nn.sigmoid(gates[:, 3 * H:4 * H])
        c_new = f * c + i * g
        h_new = o * jnp.tanh(c_new)
        return h_new, c_new

    # per-window initial states (module's torch.rand / torch.randn)
    h1 = init_ref[:, 0:H]
    c1 = init_ref[:, H:2 * H]
    h2 = init_ref[:, 2 * H:3 * H]
    c2 = init_ref[:, 3 * H:4 * H]

    rows = []
    # Timesteps are serially dependent through (h1,c1,h2,c2): loop stays inside
    # the kernel, fully unrolled (seq_len is the small static n_window).
    for t in range(seq_len):
        x_t     = xn_ref[:, t * 2 * H:t * 2 * H + H]       # (B, 128), feats real
        noise_t = xn_ref[:, t * 2 * H + H:(t + 1) * 2 * H]  # (B, 128), n_latent real

        # encoder LSTM step (sp1(out) is unused downstream in the reference)
        h1, c1 = lstm_cell(x_t, h1, c1, enc_w, enc_b)

        # z_mean / z_log_variance fused in one N=256 matmul
        zz = bdot(h1, z_w) + z_b                           # (B, 256)
        mu, logvar = zz[:, 0:H], zz[:, H:2 * H]            # pad lanes exactly 0
        std = jnp.exp(0.5 * logvar)                        # pad lanes -> 1
        z = mu + noise_t * std                             # pad lanes stay 0

        # decoder LSTM step + softplus + x_mean head (N=128)
        h2, c2 = lstm_cell(z, h2, c2, dec_w, dec_b)
        xm = bdot(_softplus(h2), xm_w) + xm_b              # (B, 128)

        rows.append(jnp.concatenate([xm, mu, logvar, z], axis=1))   # (B, 512)

    # one lane-dense store per grid step: [x_mean | z_mean | z_logvar | z] per t
    out_ref[...] = jnp.concatenate(rows, axis=1)


def init_params(key, feats):
    """PyTorch-default-initialised VAE_LSTM params, packed for the kernel.

    Weight slab (bf16, (640, 512)): five 128-row blocks, each weight already
    transposed to (in, out) and zero-padded so gate blocks and the mu/logvar/
    x_mean heads land exactly on 128-lane boundaries.
    Bias slab (f32, (8, 512)): rows = [enc b_ih+b_hh, dec b_ih+b_hh, heads].
    """
    assert feats <= N_HIDDEN and N_LATENT <= N_HIDDEN
    H, L = N_HIDDEN, N_LATENT
    keys = iter(jax.random.split(key, 16))

    def u(shape, fan_in):
        bound = 1.0 / jnp.sqrt(jnp.float32(fan_in))
        return jax.random.uniform(next(keys), shape, jnp.float32, -bound, bound)

    # raw params, already transposed to (in_features, out_features)
    enc_wih = u((feats, 4 * H), H)
    enc_whh = u((H, 4 * H), H)
    enc_bih = u((4 * H,), H)
    enc_bhh = u((4 * H,), H)
    zm_w = u((H, L), H)
    zm_b = u((L,), H)
    zv_w = u((H, L), H)
    zv_b = u((L,), H)
    dec_wih = u((L, 4 * H), H)
    dec_whh = u((H, 4 * H), H)
    dec_bih = u((4 * H,), H)
    dec_bhh = u((4 * H,), H)
    xm_w = u((H, feats), H)
    xm_b = u((feats,), H)

    def pad_block(w):
        blk = jnp.zeros((H, G), jnp.float32)
        return blk.at[:w.shape[0], :w.shape[1]].set(w)

    head = jnp.zeros((H, G), jnp.float32)
    head = head.at[:, 0:L].set(zm_w)
    head = head.at[:, H:H + L].set(zv_w)
    head = head.at[:, 2 * H:2 * H + feats].set(xm_w)

    w_slab = jnp.concatenate(
        [pad_block(enc_wih), pad_block(enc_whh),
         pad_block(dec_wih), pad_block(dec_whh), head],
        axis=0).astype(jnp.bfloat16)
    assert w_slab.shape == (_W_ROWS, G)

    b_slab = jnp.zeros((8, G), jnp.float32)
    b_slab = b_slab.at[0, :].set(enc_bih + enc_bhh)
    b_slab = b_slab.at[1, :].set(dec_bih + dec_bhh)
    b_slab = b_slab.at[2, 0:L].set(zm_b)
    b_slab = b_slab.at[2, H:H + L].set(zv_b)
    b_slab = b_slab.at[2, 2 * H:2 * H + feats].set(xm_b)

    return {"w_slab": w_slab, "b_slab": b_slab, "feats": feats}


def vae_lstm_forward(x, params, key, *, block_b=16):
    """x: (B, T, feats) — B independent windows (each the PyTorch module's `x`).

    Returns (x_mean (B, T, feats), loss_mats) where loss_mats is the batched
    equivalent of the PyTorch per-timestep tuple list:
    (z_mean, z_log_variance, z, x_mean, x) with leading dims (B, T).
    """
    B, T, feats = x.shape
    H, L = N_HIDDEN, N_LATENT
    assert block_b % 8 == 0
    B_pad = -(-B // block_b) * block_b

    k_h1, k_c1, k_h2, k_c2, k_n = jax.random.split(key, 5)
    # module-internal randomness made explicit, drawn PER WINDOW:
    # torch.rand -> uniform, torch.randn -> normal
    h1 = jax.random.uniform(k_h1, (B, H), jnp.float32)
    c1 = jax.random.normal(k_c1, (B, H), jnp.float32)
    h2 = jax.random.uniform(k_h2, (B, H), jnp.float32)
    c2 = jax.random.normal(k_c2, (B, H), jnp.float32)
    noise = jax.random.normal(k_n, (B, T, L), jnp.float32)

    init = jnp.concatenate([h1, c1, h2, c2], axis=-1)                 # (B, 4H)
    init = jnp.pad(init, ((0, B_pad - B), (0, 0)))

    # lane-dense input: per window, per timestep [x_t (pad to 128) | noise_t (pad to 128)]
    x_p = jnp.pad(x.astype(jnp.float32),
                  ((0, B_pad - B), (0, 0), (0, H - feats)))
    n_p = jnp.pad(noise, ((0, B_pad - B), (0, 0), (0, H - L)))
    xn = jnp.concatenate([x_p, n_p], axis=-1).reshape(B_pad, T * 2 * H)

    grid = (B_pad // block_b,)
    out = pl.pallas_call(
        functools.partial(vae_lstm_kernel, T),
        out_shape=jax.ShapeDtypeStruct((B_pad, T * 4 * H), jnp.float32),
        grid_spec=pltpu.PrefetchScalarGridSpec(
            num_scalar_prefetch=0,
            grid=grid,
            in_specs=[
                pl.BlockSpec((block_b, T * 2 * H), lambda i: (i, 0)),   # x + noise
                pl.BlockSpec((block_b, 4 * H), lambda i: (i, 0)),       # init states
                pl.BlockSpec((_W_ROWS, G), lambda i: (0, 0)),           # resident weights
                pl.BlockSpec((8, G), lambda i: (0, 0)),                 # resident biases
            ],
            out_specs=pl.BlockSpec((block_b, T * 4 * H), lambda i: (i, 0)),
        ),
        compiler_params=pltpu.CompilerParams(
            dimension_semantics=("parallel",)),
    )(xn, init, params["w_slab"], params["b_slab"])

    res = out[:B].reshape(B, T, 4 * H)
    x_mean   = res[..., 0:feats]
    z_mean   = res[..., H:H + L]
    z_logvar = res[..., 2 * H:2 * H + L]
    z        = res[..., 3 * H:3 * H + L]
    # Batched equivalent of PyTorch's per-step (z_mean, z_logvar, z, x_mean, g).
    loss_mats = (z_mean, z_logvar, z, x_mean, x)
    return x_mean, loss_mats


if __name__ == "__main__":
    FEATS = 16
    B = 32          # independent windows, batched over sublanes + parallel grid
    key = jax.random.PRNGKey(0)
    k_params, k_x, k_fwd = jax.random.split(key, 3)

    params = init_params(k_params, FEATS)
    x = jax.random.uniform(k_x, (B, N_WINDOW, FEATS), jnp.float32)

    outputs, loss_mats = vae_lstm_forward(x, params, k_fwd, block_b=16)
    outputs = jax.block_until_ready(outputs)

    z_mean, z_logvar, z, x_mean, g = loss_mats
    assert outputs.shape == (B, N_WINDOW, FEATS)
    assert z_mean.shape == (B, N_WINDOW, N_LATENT)
    assert z_logvar.shape == (B, N_WINDOW, N_LATENT)
    assert z.shape == (B, N_WINDOW, N_LATENT)
    assert x_mean.shape == (B, N_WINDOW, FEATS)
    assert g.shape == (B, N_WINDOW, FEATS)
    for a in (outputs, z_mean, z_logvar, z):
        assert bool(jnp.all(jnp.isfinite(a)))

    print("KERNEL_OK")
</pallas_src>

<mosaic_0001>
module attributes {stable_mosaic.version = 11 : i64} {
  func.func @vae_lstm_kernel(%arg0: i32, %arg1: memref<16x768xf32, #tpu.memory_space<vmem>>, %arg2: memref<16x512xf32, #tpu.memory_space<vmem>>, %arg3: memref<640x512xbf16, #tpu.memory_space<vmem>>, %arg4: memref<8x512xf32, #tpu.memory_space<vmem>>, %arg5: memref<16x1536xf32, #tpu.memory_space<vmem>>) attributes {dimension_semantics = [#tpu.dimension_semantics<parallel>], iteration_bounds = array<i64: 2>, scalar_prefetch = 0 : i64, scratch_operands = 0 : i64, tpu.core_type = #tpu.core_type<tc>, window_params = [{transform_indices = @transform_0, window_bounds = array<i64: 16, 768>}, {transform_indices = @transform_1, window_bounds = array<i64: 16, 512>}, {pipeline_mode = #tpu.pipeline_mode<synchronous>, transform_indices = @transform_2, window_bounds = array<i64: 640, 512>}, {pipeline_mode = #tpu.pipeline_mode<synchronous>, transform_indices = @transform_3, window_bounds = array<i64: 8, 512>}, {transform_indices = @transform_4, window_bounds = array<i64: 16, 1536>}]} {
    %c0 = arith.constant 0 : index
    %c0_0 = arith.constant 0 : index
    %0 = vector.load %arg3[%c0, %c0_0] : memref<640x512xbf16, #tpu.memory_space<vmem>>, vector<256x512xbf16>
    %c256 = arith.constant 256 : index
    %c0_1 = arith.constant 0 : index
    %1 = vector.load %arg3[%c256, %c0_1] : memref<640x512xbf16, #tpu.memory_space<vmem>>, vector<256x512xbf16>
    %c512 = arith.constant 512 : index
    %c0_2 = arith.constant 0 : index
    %2 = vector.load %arg3[%c512, %c0_2] : memref<640x512xbf16, #tpu.memory_space<vmem>>, vector<128x256xbf16>
    %c512_3 = arith.constant 512 : index
    %c256_4 = arith.constant 256 : index
    %3 = vector.load %arg3[%c512_3, %c256_4] : memref<640x512xbf16, #tpu.memory_space<vmem>>, vector<128x128xbf16>
    %c0_5 = arith.constant 0 : index
    %c0_6 = arith.constant 0 : index
    %4 = vector.load %arg4[%c0_5, %c0_6] : memref<8x512xf32, #tpu.memory_space<vmem>>, vector<1x512xf32>
    %c1 = arith.constant 1 : index
    %c0_7 = arith.constant 0 : index
    %5 = vector.load %arg4[%c1, %c0_7] : memref<8x512xf32, #tpu.memory_space<vmem>>, vector<1x512xf32>
    %c2 = arith.constant 2 : index
    %c0_8 = arith.constant 0 : index
    %6 = vector.load %arg4[%c2, %c0_8] : memref<8x512xf32, #tpu.memory_space<vmem>>, vector<1x256xf32>
    %c2_9 = arith.constant 2 : index
    %c256_10 = arith.constant 256 : index
    %7 = vector.load %arg4[%c2_9, %c256_10] : memref<8x512xf32, #tpu.memory_space<vmem>>, vector<1x128xf32>
    %c0_11 = arith.constant 0 : index
    %c0_12 = arith.constant 0 : index
    %8 = vector.load %arg2[%c0_11, %c0_12] : memref<16x512xf32, #tpu.memory_space<vmem>>, vector<16x128xf32>
    %c0_13 = arith.constant 0 : index
    %c128 = arith.constant 128 : index
    %9 = vector.load %arg2[%c0_13, %c128] : memref<16x512xf32, #tpu.memory_space<vmem>>, vector<16x128xf32>
    %c0_14 = arith.constant 0 : index
    %c256_15 = arith.constant 256 : index
    %10 = vector.load %arg2[%c0_14, %c256_15] : memref<16x512xf32, #tpu.memory_space<vmem>>, vector<16x128xf32>
    %c0_16 = arith.constant 0 : index
    %c384 = arith.constant 384 : index
    %11 = vector.load %arg2[%c0_16, %c384] : memref<16x512xf32, #tpu.memory_space<vmem>>, vector<16x128xf32>
    %c0_17 = arith.constant 0 : index
    %c0_18 = arith.constant 0 : index
    %12 = vector.load %arg1[%c0_17, %c0_18] : memref<16x768xf32, #tpu.memory_space<vmem>>, vector<16x128xf32>
    %c0_19 = arith.constant 0 : index
    %c128_20 = arith.constant 128 : index
    %13 = vector.load %arg1[%c0_19, %c128_20] : memref<16x768xf32, #tpu.memory_space<vmem>>, vector<16x128xf32>
    %14 = tpu.concatenate %12, %8 in 1 : vector<16x128xf32>, vector<16x128xf32> -> vector<16x256xf32>
    %15 = arith.truncf %14 : vector<16x256xf32> to vector<16x256xbf16>
    %cst = arith.constant dense<0.000000e+00> : vector<16x512xf32>
    %16 = tpu.matmul %15, %0, %cst {dimension_numbers = #tpu.dot_dimension_numbers<[1], [0], [0], [1], [0, 0, 1, 1], [], []>} : vector<16x256xbf16>, vector<256x512xbf16>, vector<16x512xf32> -> vector<16x512xf32>
    %17 = vector.broadcast %4 : vector<1x512xf32> to vector<16x512xf32>
    %18 = arith.addf %16, %17 : vector<16x512xf32>
    %19 = vector.extract_strided_slice %18 {offsets = [0, 0], sizes = [16, 128], strides = [1, 1]} : vector<16x512xf32> to vector<16x128xf32>
    %20 = arith.negf %19 : vector<16x128xf32>
    %21 = math.exp %20 : vector<16x128xf32>
    %cst_21 = arith.constant 1.000000e+00 : f32
    %22 = vector.broadcast %cst_21 : f32 to vector<16x128xf32>
    %23 = arith.addf %22, %21 : vector<16x128xf32>
    %24 = arith.divf %22, %23 : vector<16x128xf32>
    %25 = vector.extract_strided_slice %18 {offsets = [0, 128], sizes = [16, 128], strides = [1, 1]} : vector<16x512xf32> to vector<16x128xf32>
    %26 = arith.negf %25 : vector<16x128xf32>
    %27 = math.exp %26 : vector<16x128xf32>
    %cst_22 = arith.constant 1.000000e+00 : f32
    %28 = vector.broadcast %cst_22 : f32 to vector<16x128xf32>
    %29 = arith.addf %28, %27 : vector<16x128xf32>
    %30 = arith.divf %28, %29 : vector<16x128xf32>
    %31 = vector.extract_strided_slice %18 {offsets = [0, 256], sizes = [16, 128], strides = [1, 1]} : vector<16x512xf32> to vector<16x128xf32>
    %32 = math.tanh %31 : vector<16x128xf32>
    %33 = vector.extract_strided_slice %18 {offsets = [0, 384], sizes = [16, 128], strides = [1, 1]} : vector<16x512xf32> to vector<16x128xf32>
    %34 = arith.negf %33 : vector<16x128xf32>
    %35 = math.exp %34 : vector<16x128xf32>
    %cst_23 = arith.constant 1.000000e+00 : f32
    %36 = vector.broadcast %cst_23 : f32 to vector<16x128xf32>
    %37 = arith.addf %36, %35 : vector<16x128xf32>
    %38 = arith.divf %36, %37 : vector<16x128xf32>
    %39 = arith.mulf %30, %9 : vector<16x128xf32>
    %40 = arith.mulf %24, %32 : vector<16x128xf32>
    %41 = arith.addf %39, %40 : vector<16x128xf32>
    %42 = math.tanh %41 : vector<16x128xf32>
    %43 = arith.mulf %38, %42 : vector<16x128xf32>
    %44 = arith.truncf %43 : vector<16x128xf32> to vector<16x128xbf16>
    %cst_24 = arith.constant dense<0.000000e+00> : vector<16x256xf32>
    %45 = tpu.matmul %44, %2, %cst_24 {dimension_numbers = #tpu.dot_dimension_numbers<[1], [0], [0], [1], [0, 0, 1, 1], [], []>} : vector<16x128xbf16>, vector<128x256xbf16>, vector<16x256xf32> -> vector<16x256xf32>
    %46 = vector.broadcast %6 : vector<1x256xf32> to vector<16x256xf32>
    %47 = arith.addf %45, %46 : vector<16x256xf32>
    %48 = vector.extract_strided_slice %47 {offsets = [0, 0], sizes = [16, 128], strides = [1, 1]} : vector<16x256xf32> to vector<16x128xf32>
    %49 = vector.extract_strided_slice %47 {offsets = [0, 128], sizes = [16, 128], strides = [1, 1]} : vector<16x256xf32> to vector<16x128xf32>
    %cst_25 = arith.constant 5.000000e-01 : f32
    %50 = vector.broadcast %cst_25 : f32 to vector<16x128xf32>
    %51 = arith.mulf %50, %49 : vector<16x128xf32>
    %52 = math.exp %51 : vector<16x128xf32>
    %53 = arith.mulf %13, %52 : vector<16x128xf32>
    %54 = arith.addf %48, %53 : vector<16x128xf32>
    %55 = tpu.concatenate %54, %10 in 1 : vector<16x128xf32>, vector<16x128xf32> -> vector<16x256xf32>
    %56 = arith.truncf %55 : vector<16x256xf32> to vector<16x256xbf16>
    %cst_26 = arith.constant dense<0.000000e+00> : vector<16x512xf32>
    %57 = tpu.matmul %56, %1, %cst_26 {dimension_numbers = #tpu.dot_dimension_numbers<[1], [0], [0], [1], [0, 0, 1, 1], [], []>} : vector<16x256xbf16>, vector<256x512xbf16>, vector<16x512xf32> -> vector<16x512xf32>
    %58 = vector.broadcast %5 : vector<1x512xf32> to vector<16x512xf32>
    %59 = arith.addf %57, %58 : vector<16x512xf32>
    %60 = vector.extract_strided_slice %59 {offsets = [0, 0], sizes = [16, 128], strides = [1, 1]} : vector<16x512xf32> to vector<16x128xf32>
    %61 = arith.negf %60 : vector<16x128xf32>
    %62 = math.exp %61 : vector<16x128xf32>
    %cst_27 = arith.constant 1.000000e+00 : f32
    %63 = vector.broadcast %cst_27 : f32 to vector<16x128xf32>
    %64 = arith.addf %63, %62 : vector<16x128xf32>
    %65 = arith.divf %63, %64 : vector<16x128xf32>
    %66 = vector.extract_strided_slice %59 {offsets = [0, 128], sizes = [16, 128], strides = [1, 1]} : vector<16x512xf32> to vector<16x128xf32>
    %67 = arith.negf %66 : vector<16x128xf32>
    %68 = math.exp %67 : vector<16x128xf32>
    %cst_28 = arith.constant 1.000000e+00 : f32
    %69 = vector.broadcast %cst_28 : f32 to vector<16x128xf32>
    %70 = arith.addf %69, %68 : vector<16x128xf32>
    %71 = arith.divf %69, %70 : vector<16x128xf32>
    %72 = vector.extract_strided_slice %59 {offsets = [0, 256], sizes = [16, 128], strides = [1, 1]} : vector<16x512xf32> to vector<16x128xf32>
    %73 = math.tanh %72 : vector<16x128xf32>
    %74 = vector.extract_strided_slice %59 {offsets = [0, 384], sizes = [16, 128], strides = [1, 1]} : vector<16x512xf32> to vector<16x128xf32>
    %75 = arith.negf %74 : vector<16x128xf32>
    %76 = math.exp %75 : vector<16x128xf32>
    %cst_29 = arith.constant 1.000000e+00 : f32
    %77 = vector.broadcast %cst_29 : f32 to vector<16x128xf32>
    %78 = arith.addf %77, %76 : vector<16x128xf32>
    %79 = arith.divf %77, %78 : vector<16x128xf32>
    %80 = arith.mulf %71, %11 : vector<16x128xf32>
    %81 = arith.mulf %65, %73 : vector<16x128xf32>
    %82 = arith.addf %80, %81 : vector<16x128xf32>
    %83 = math.tanh %82 : vector<16x128xf32>
    %84 = arith.mulf %79, %83 : vector<16x128xf32>
    %cst_30 = arith.constant 0.000000e+00 : f32
    %85 = vector.broadcast %cst_30 : f32 to vector<16x128xf32>
    %86 = arith.maximumf %84, %85 : vector<16x128xf32>
    %87 = math.absf %84 : vector<16x128xf32>
    %cst_31 = arith.constant 0.000000e+00 : f32
    %88 = vector.broadcast %cst_31 : f32 to vector<16x128xf32>
    %89 = arith.subf %88, %87 : vector<16x128xf32>
    %90 = math.exp %89 : vector<16x128xf32>
    %cst_32 = arith.constant 1.000000e+00 : f32
    %91 = vector.broadcast %cst_32 : f32 to vector<16x128xf32>
    %92 = arith.addf %91, %90 : vector<16x128xf32>
    %93 = math.log %92 : vector<16x128xf32>
    %94 = arith.addf %86, %93 : vector<16x128xf32>
    %95 = arith.truncf %94 : vector<16x128xf32> to vector<16x128xbf16>
    %cst_33 = arith.constant dense<0.000000e+00> : vector<16x128xf32>
    %96 = tpu.matmul %95, %3, %cst_33 {dimension_numbers = #tpu.dot_dimension_numbers<[1], [0], [0], [1], [0, 0, 1, 1], [], []>} : vector<16x128xbf16>, vector<128x128xbf16>, vector<16x128xf32> -> vector<16x128xf32>
    %97 = vector.broadcast %7 : vector<1x128xf32> to vector<16x128xf32>
    %98 = arith.addf %96, %97 : vector<16x128xf32>
    %99 = tpu.concatenate %98, %48, %49, %54 in 1 : vector<16x128xf32>, vector<16x128xf32>, vector<16x128xf32>, vector<16x128xf32> -> vector<16x512xf32>
    %c0_34 = arith.constant 0 : index
    %c256_35 = arith.constant 256 : index
    %100 = vector.load %arg1[%c0_34, %c256_35] : memref<16x768xf32, #tpu.memory_space<vmem>>, vector<16x128xf32>
    %c0_36 = arith.constant 0 : index
    %c384_37 = arith.constant 384 : index
    %101 = vector.load %arg1[%c0_36, %c384_37] : memref<16x768xf32, #tpu.memory_space<vmem>>, vector<16x128xf32>
    %102 = tpu.concatenate %100, %43 in 1 : vector<16x128xf32>, vector<16x128xf32> -> vector<16x256xf32>
    %103 = arith.truncf %102 : vector<16x256xf32> to vector<16x256xbf16>
    %cst_38 = arith.constant dense<0.000000e+00> : vector<16x512xf32>
    %104 = tpu.matmul %103, %0, %cst_38 {dimension_numbers = #tpu.dot_dimension_numbers<[1], [0], [0], [1], [0, 0, 1, 1], [], []>} : vector<16x256xbf16>, vector<256x512xbf16>, vector<16x512xf32> -> vector<16x512xf32>
    %105 = vector.broadcast %4 : vector<1x512xf32> to vector<16x512xf32>
    %106 = arith.addf %104, %105 : vector<16x512xf32>
    %107 = vector.extract_strided_slice %106 {offsets = [0, 0], sizes = [16, 128], strides = [1, 1]} : vector<16x512xf32> to vector<16x128xf32>
    %108 = arith.negf %107 : vector<16x128xf32>
    %109 = math.exp %108 : vector<16x128xf32>
    %cst_39 = arith.constant 1.000000e+00 : f32
    %110 = vector.broadcast %cst_39 : f32 to vector<16x128xf32>
    %111 = arith.addf %110, %109 : vector<16x128xf32>
    %112 = arith.divf %110, %111 : vector<16x128xf32>
    %113 = vector.extract_strided_slice %106 {offsets = [0, 128], sizes = [16, 128], strides = [1, 1]} : vector<16x512xf32> to vector<16x128xf32>
    %114 = arith.negf %113 : vector<16x128xf32>
    %115 = math.exp %114 : vector<16x128xf32>
    %cst_40 = arith.constant 1.000000e+00 : f32
    %116 = vector.broadcast %cst_40 : f32 to vector<16x128xf32>
    %117 = arith.addf %116, %115 : vector<16x128xf32>
    %118 = arith.divf %116, %117 : vector<16x128xf32>
    %119 = vector.extract_strided_slice %106 {offsets = [0, 256], sizes = [16, 128], strides = [1, 1]} : vector<16x512xf32> to vector<16x128xf32>
    %120 = math.tanh %119 : vector<16x128xf32>
    %121 = vector.extract_strided_slice %106 {offsets = [0, 384], sizes = [16, 128], strides = [1, 1]} : vector<16x512xf32> to vector<16x128xf32>
    %122 = arith.negf %121 : vector<16x128xf32>
    %123 = math.exp %122 : vector<16x128xf32>
    %cst_41 = arith.constant 1.000000e+00 : f32
    %124 = vector.broadcast %cst_41 : f32 to vector<16x128xf32>
    %125 = arith.addf %124, %123 : vector<16x128xf32>
    %126 = arith.divf %124, %125 : vector<16x128xf32>
    %127 = arith.mulf %118, %41 : vector<16x128xf32>
    %128 = arith.mulf %112, %120 : vector<16x128xf32>
    %129 = arith.addf %127, %128 : vector<16x128xf32>
    %130 = math.tanh %129 : vector<16x128xf32>
    %131 = arith.mulf %126, %130 : vector<16x128xf32>
    %132 = arith.truncf %131 : vector<16x128xf32> to vector<16x128xbf16>
    %cst_42 = arith.constant dense<0.000000e+00> : vector<16x256xf32>
    %133 = tpu.matmul %132, %2, %cst_42 {dimension_numbers = #tpu.dot_dimension_numbers<[1], [0], [0], [1], [0, 0, 1, 1], [], []>} : vector<16x128xbf16>, vector<128x256xbf16>, vector<16x256xf32> -> vector<16x256xf32>
    %134 = vector.broadcast %6 : vector<1x256xf32> to vector<16x256xf32>
    %135 = arith.addf %133, %134 : vector<16x256xf32>
    %136 = vector.extract_strided_slice %135 {offsets = [0, 0], sizes = [16, 128], strides = [1, 1]} : vector<16x256xf32> to vector<16x128xf32>
    %137 = vector.extract_strided_slice %135 {offsets = [0, 128], sizes = [16, 128], strides = [1, 1]} : vector<16x256xf32> to vector<16x128xf32>
    %cst_43 = arith.constant 5.000000e-01 : f32
    %138 = vector.broadcast %cst_43 : f32 to vector<16x128xf32>
    %139 = arith.mulf %138, %137 : vector<16x128xf32>
    %140 = math.exp %139 : vector<16x128xf32>
    %141 = arith.mulf %101, %140 : vector<16x128xf32>
    %142 = arith.addf %136, %141 : vector<16x128xf32>
    %143 = tpu.concatenate %142, %84 in 1 : vector<16x128xf32>, vector<16x128xf32> -> vector<16x256xf32>
    %144 = arith.truncf %143 : vector<16x256xf32> to vector<16x256xbf16>
    %cst_44 = arith.constant dense<0.000000e+00> : vector<16x512xf32>
    %145 = tpu.matmul %144, %1, %cst_44 {dimension_numbers = #tpu.dot_dimension_numbers<[1], [0], [0], [1], [0, 0, 1, 1], [], []>} : vector<16x256xbf16>, vector<256x512xbf16>, vector<16x512xf32> -> vector<16x512xf32>
    %146 = vector.broadcast %5 : vector<1x512xf32> to vector<16x512xf32>
    %147 = arith.addf %145, %146 : vector<16x512xf32>
    %148 = vector.extract_strided_slice %147 {offsets = [0, 0], sizes = [16, 128], strides = [1, 1]} : vector<16x512xf32> to vector<16x128xf32>
    %149 = arith.negf %148 : vector<16x128xf32>
    %150 = math.exp %149 : vector<16x128xf32>
    %cst_45 = arith.constant 1.000000e+00 : f32
    %151 = vector.broadcast %cst_45 : f32 to vector<16x128xf32>
    %152 = arith.addf %151, %150 : vector<16x128xf32>
    %153 = arith.divf %151, %152 : vector<16x128xf32>
    %154 = vector.extract_strided_slice %147 {offsets = [0, 128], sizes = [16, 128], strides = [1, 1]} : vector<16x512xf32> to vector<16x128xf32>
    %155 = arith.negf %154 : vector<16x128xf32>
    %156 = math.exp %155 : vector<16x128xf32>
    %cst_46 = arith.constant 1.000000e+00 : f32
    %157 = vector.broadcast %cst_46 : f32 to vector<16x128xf32>
    %158 = arith.addf %157, %156 : vector<16x128xf32>
    %159 = arith.divf %157, %158 : vector<16x128xf32>
    %160 = vector.extract_strided_slice %147 {offsets = [0, 256], sizes = [16, 128], strides = [1, 1]} : vector<16x512xf32> to vector<16x128xf32>
    %161 = math.tanh %160 : vector<16x128xf32>
    %162 = vector.extract_strided_slice %147 {offsets = [0, 384], sizes = [16, 128], strides = [1, 1]} : vector<16x512xf32> to vector<16x128xf32>
    %163 = arith.negf %162 : vector<16x128xf32>
    %164 = math.exp %163 : vector<16x128xf32>
    %cst_47 = arith.constant 1.000000e+00 : f32
    %165 = vector.broadcast %cst_47 : f32 to vector<16x128xf32>
    %166 = arith.addf %165, %164 : vector<16x128xf32>
    %167 = arith.divf %165, %166 : vector<16x128xf32>
    %168 = arith.mulf %159, %82 : vector<16x128xf32>
    %169 = arith.mulf %153, %161 : vector<16x128xf32>
    %170 = arith.addf %168, %169 : vector<16x128xf32>
    %171 = math.tanh %170 : vector<16x128xf32>
    %172 = arith.mulf %167, %171 : vector<16x128xf32>
    %cst_48 = arith.constant 0.000000e+00 : f32
    %173 = vector.broadcast %cst_48 : f32 to vector<16x128xf32>
    %174 = arith.maximumf %172, %173 : vector<16x128xf32>
    %175 = math.absf %172 : vector<16x128xf32>
    %cst_49 = arith.constant 0.000000e+00 : f32
    %176 = vector.broadcast %cst_49 : f32 to vector<16x128xf32>
    %177 = arith.subf %176, %175 : vector<16x128xf32>
    %178 = math.exp %177 : vector<16x128xf32>
    %cst_50 = arith.constant 1.000000e+00 : f32
    %179 = vector.broadcast %cst_50 : f32 to vector<16x128xf32>
    %180 = arith.addf %179, %178 : vector<16x128xf32>
    %181 = math.log %180 : vector<16x128xf32>
    %182 = arith.addf %174, %181 : vector<16x128xf32>
    %183 = arith.truncf %182 : vector<16x128xf32> to vector<16x128xbf16>
    %cst_51 = arith.constant dense<0.000000e+00> : vector<16x128xf32>
    %184 = tpu.matmul %183, %3, %cst_51 {dimension_numbers = #tpu.dot_dimension_numbers<[1], [0], [0], [1], [0, 0, 1, 1], [], []>} : vector<16x128xbf16>, vector<128x128xbf16>, vector<16x128xf32> -> vector<16x128xf32>
    %185 = vector.broadcast %7 : vector<1x128xf32> to vector<16x128xf32>
    %186 = arith.addf %184, %185 : vector<16x128xf32>
    %187 = tpu.concatenate %186, %136, %137, %142 in 1 : vector<16x128xf32>, vector<16x128xf32>, vector<16x128xf32>, vector<16x128xf32> -> vector<16x512xf32>
    %c0_52 = arith.constant 0 : index
    %c512_53 = arith.constant 512 : index
    %188 = vector.load %arg1[%c0_52, %c512_53] : memref<16x768xf32, #tpu.memory_space<vmem>>, vector<16x128xf32>
    %c0_54 = arith.constant 0 : index
    %c640 = arith.constant 640 : index
    %189 = vector.load %arg1[%c0_54, %c640] : memref<16x768xf32, #tpu.memory_space<vmem>>, vector<16x128xf32>
    %190 = tpu.concatenate %188, %131 in 1 : vector<16x128xf32>, vector<16x128xf32> -> vector<16x256xf32>
    %191 = arith.truncf %190 : vector<16x256xf32> to vector<16x256xbf16>
    %cst_55 = arith.constant dense<0.000000e+00> : vector<16x512xf32>
    %192 = tpu.matmul %191, %0, %cst_55 {dimension_numbers = #tpu.dot_dimension_numbers<[1], [0], [0], [1], [0, 0, 1, 1], [], []>} : vector<16x256xbf16>, vector<256x512xbf16>, vector<16x512xf32> -> vector<16x512xf32>
    %193 = vector.broadcast %4 : vector<1x512xf32> to vector<16x512xf32>
    %194 = arith.addf %192, %193 : vector<16x512xf32>
    %195 = vector.extract_strided_slice %194 {offsets = [0, 0], sizes = [16, 128], strides = [1, 1]} : vector<16x512xf32> to vector<16x128xf32>
    %196 = arith.negf %195 : vector<16x128xf32>
    %197 = math.exp %196 : vector<16x128xf32>
    %cst_56 = arith.constant 1.000000e+00 : f32
    %198 = vector.broadcast %cst_56 : f32 to vector<16x128xf32>
    %199 = arith.addf %198, %197 : vector<16x128xf32>
    %200 = arith.divf %198, %199 : vector<16x128xf32>
    %201 = vector.extract_strided_slice %194 {offsets = [0, 128], sizes = [16, 128], strides = [1, 1]} : vector<16x512xf32> to vector<16x128xf32>
    %202 = arith.negf %201 : vector<16x128xf32>
    %203 = math.exp %202 : vector<16x128xf32>
    %cst_57 = arith.constant 1.000000e+00 : f32
    %204 = vector.broadcast %cst_57 : f32 to vector<16x128xf32>
    %205 = arith.addf %204, %203 : vector<16x128xf32>
    %206 = arith.divf %204, %205 : vector<16x128xf32>
    %207 = vector.extract_strided_slice %194 {offsets = [0, 256], sizes = [16, 128], strides = [1, 1]} : vector<16x512xf32> to vector<16x128xf32>
    %208 = math.tanh %207 : vector<16x128xf32>
    %209 = vector.extract_strided_slice %194 {offsets = [0, 384], sizes = [16, 128], strides = [1, 1]} : vector<16x512xf32> to vector<16x128xf32>
    %210 = arith.negf %209 : vector<16x128xf32>
    %211 = math.exp %210 : vector<16x128xf32>
    %cst_58 = arith.constant 1.000000e+00 : f32
    %212 = vector.broadcast %cst_58 : f32 to vector<16x128xf32>
    %213 = arith.addf %212, %211 : vector<16x128xf32>
    %214 = arith.divf %212, %213 : vector<16x128xf32>
    %215 = arith.mulf %206, %129 : vector<16x128xf32>
    %216 = arith.mulf %200, %208 : vector<16x128xf32>
    %217 = arith.addf %215, %216 : vector<16x128xf32>
    %218 = math.tanh %217 : vector<16x128xf32>
    %219 = arith.mulf %214, %218 : vector<16x128xf32>
    %220 = arith.truncf %219 : vector<16x128xf32> to vector<16x128xbf16>
    %cst_59 = arith.constant dense<0.000000e+00> : vector<16x256xf32>
    %221 = tpu.matmul %220, %2, %cst_59 {dimension_numbers = #tpu.dot_dimension_numbers<[1], [0], [0], [1], [0, 0, 1, 1], [], []>} : vector<16x128xbf16>, vector<128x256xbf16>, vector<16x256xf32> -> vector<16x256xf32>
    %222 = vector.broadcast %6 : vector<1x256xf32> to vector<16x256xf32>
    %223 = arith.addf %221, %222 : vector<16x256xf32>
    %224 = vector.extract_strided_slice %223 {offsets = [0, 0], sizes = [16, 128], strides = [1, 1]} : vector<16x256xf32> to vector<16x128xf32>
    %225 = vector.extract_strided_slice %223 {offsets = [0, 128], sizes = [16, 128], strides = [1, 1]} : vector<16x256xf32> to vector<16x128xf32>
    %cst_60 = arith.constant 5.000000e-01 : f32
    %226 = vector.broadcast %cst_60 : f32 to vector<16x128xf32>
    %227 = arith.mulf %226, %225 : vector<16x128xf32>
    %228 = math.exp %227 : vector<16x128xf32>
    %229 = arith.mulf %189, %228 : vector<16x128xf32>
    %230 = arith.addf %224, %229 : vector<16x128xf32>
    %231 = tpu.concatenate %230, %172 in 1 : vector<16x128xf32>, vector<16x128xf32> -> vector<16x256xf32>
    %232 = arith.truncf %231 : vector<16x256xf32> to vector<16x256xbf16>
    %cst_61 = arith.constant dense<0.000000e+00> : vector<16x512xf32>
    %233 = tpu.matmul %232, %1, %cst_61 {dimension_numbers = #tpu.dot_dimension_numbers<[1], [0], [0], [1], [0, 0, 1, 1], [], []>} : vector<16x256xbf16>, vector<256x512xbf16>, vector<16x512xf32> -> vector<16x512xf32>
    %234 = vector.broadcast %5 : vector<1x512xf32> to vector<16x512xf32>
    %235 = arith.addf %233, %234 : vector<16x512xf32>
    %236 = vector.extract_strided_slice %235 {offsets = [0, 0], sizes = [16, 128], strides = [1, 1]} : vector<16x512xf32> to vector<16x128xf32>
    %237 = arith.negf %236 : vector<16x128xf32>
    %238 = math.exp %237 : vector<16x128xf32>
    %cst_62 = arith.constant 1.000000e+00 : f32
    %239 = vector.broadcast %cst_62 : f32 to vector<16x128xf32>
    %240 = arith.addf %239, %238 : vector<16x128xf32>
    %241 = arith.divf %239, %240 : vector<16x128xf32>
    %242 = vector.extract_strided_slice %235 {offsets = [0, 128], sizes = [16, 128], strides = [1, 1]} : vector<16x512xf32> to vector<16x128xf32>
    %243 = arith.negf %242 : vector<16x128xf32>
    %244 = math.exp %243 : vector<16x128xf32>
    %cst_63 = arith.constant 1.000000e+00 : f32
    %245 = vector.broadcast %cst_63 : f32 to vector<16x128xf32>
    %246 = arith.addf %245, %244 : vector<16x128xf32>
    %247 = arith.divf %245, %246 : vector<16x128xf32>
    %248 = vector.extract_strided_slice %235 {offsets = [0, 256], sizes = [16, 128], strides = [1, 1]} : vector<16x512xf32> to vector<16x128xf32>
    %249 = math.tanh %248 : vector<16x128xf32>
    %250 = vector.extract_strided_slice %235 {offsets = [0, 384], sizes = [16, 128], strides = [1, 1]} : vector<16x512xf32> to vector<16x128xf32>
    %251 = arith.negf %250 : vector<16x128xf32>
    %252 = math.exp %251 : vector<16x128xf32>
    %cst_64 = arith.constant 1.000000e+00 : f32
    %253 = vector.broadcast %cst_64 : f32 to vector<16x128xf32>
    %254 = arith.addf %253, %252 : vector<16x128xf32>
    %255 = arith.divf %253, %254 : vector<16x128xf32>
    %256 = arith.mulf %247, %170 : vector<16x128xf32>
    %257 = arith.mulf %241, %249 : vector<16x128xf32>
    %258 = arith.addf %256, %257 : vector<16x128xf32>
    %259 = math.tanh %258 : vector<16x128xf32>
    %260 = arith.mulf %255, %259 : vector<16x128xf32>
    %cst_65 = arith.constant 0.000000e+00 : f32
    %261 = vector.broadcast %cst_65 : f32 to vector<16x128xf32>
    %262 = arith.maximumf %260, %261 : vector<16x128xf32>
    %263 = math.absf %260 : vector<16x128xf32>
    %cst_66 = arith.constant 0.000000e+00 : f32
    %264 = vector.broadcast %cst_66 : f32 to vector<16x128xf32>
    %265 = arith.subf %264, %263 : vector<16x128xf32>
    %266 = math.exp %265 : vector<16x128xf32>
    %cst_67 = arith.constant 1.000000e+00 : f32
    %267 = vector.broadcast %cst_67 : f32 to vector<16x128xf32>
    %268 = arith.addf %267, %266 : vector<16x128xf32>
    %269 = math.log %268 : vector<16x128xf32>
    %270 = arith.addf %262, %269 : vector<16x128xf32>
    %271 = arith.truncf %270 : vector<16x128xf32> to vector<16x128xbf16>
    %cst_68 = arith.constant dense<0.000000e+00> : vector<16x128xf32>
    %272 = tpu.matmul %271, %3, %cst_68 {dimension_numbers = #tpu.dot_dimension_numbers<[1], [0], [0], [1], [0, 0, 1, 1], [], []>} : vector<16x128xbf16>, vector<128x128xbf16>, vector<16x128xf32> -> vector<16x128xf32>
    %273 = vector.broadcast %7 : vector<1x128xf32> to vector<16x128xf32>
    %274 = arith.addf %272, %273 : vector<16x128xf32>
    %275 = tpu.concatenate %274, %224, %225, %230 in 1 : vector<16x128xf32>, vector<16x128xf32>, vector<16x128xf32>, vector<16x128xf32> -> vector<16x512xf32>
    %276 = tpu.concatenate %99, %187, %275 in 1 : vector<16x512xf32>, vector<16x512xf32>, vector<16x512xf32> -> vector<16x1536xf32>
    %c0_69 = arith.constant 0 : index
    %c0_70 = arith.constant 0 : index
    %277 = vector.load %arg5[%c0_69, %c0_70] : memref<16x1536xf32, #tpu.memory_space<vmem>>, vector<16x1536xf32>
    tpu.vector_store %arg5[%c0_69, %c0_70], %276 {strides = array<i32>} : memref<16x1536xf32, #tpu.memory_space<vmem>>, vector<16x1536xf32>,
    return
  }
  func.func @transform_0(%arg0: i32) -> (i32, i32) {
    %c0_i32 = arith.constant 0 : i32
    %c0_i32_0 = arith.constant 0 : i32
    return %arg0, %c0_i32 : i32, i32
  }
  func.func @transform_1(%arg0: i32) -> (i32, i32) {
    %c0_i32 = arith.constant 0 : i32
    %c0_i32_0 = arith.constant 0 : i32
    return %arg0, %c0_i32 : i32, i32
  }
  func.func @transform_2(%arg0: i32) -> (i32, i32) {
    %c0_i32 = arith.constant 0 : i32
    %c0_i32_0 = arith.constant 0 : i32
    %c0_i32_1 = arith.constant 0 : i32
    return %c0_i32, %c0_i32_0 : i32, i32
  }
  func.func @transform_3(%arg0: i32) -> (i32, i32) {
    %c0_i32 = arith.constant 0 : i32
    %c0_i32_0 = arith.constant 0 : i32
    %c0_i32_1 = arith.constant 0 : i32
    return %c0_i32, %c0_i32_0 : i32, i32
  }
  func.func @transform_4(%arg0: i32) -> (i32, i32) {
    %c0_i32 = arith.constant 0 : i32
    %c0_i32_0 = arith.constant 0 : i32
    return %arg0, %c0_i32 : i32, i32
  }
}

</mosaic_0001>

<llo_original>
// kernel: tpu_custom_call.1
$region0: #{tpu_custom_call.1}
  #allocation0 [shape = 'u32[]', space=smem, size = 0x4, offset = 0x4, fixed_abs, tag = 'smem constant byte address 0x4 - core index']
  #allocation1 [shape = 'u32[72,128]{1,0:T(1,128)}', space=vmem, size = 0x9000, scoped, tag = 'internal scratch']
  %s0 = inlined_call_operand.hbm [shape: f32[32,768], index: 0, kind: input, shape index: {}]
  %s1 = inlined_call_operand.hbm [shape: f32[32,512], index: 1, kind: input, shape index: {}]
  %s2 = inlined_call_operand.hbm [shape: bf16[640,512], index: 2, kind: input, shape index: {}]
  %s3 = inlined_call_operand.hbm [shape: f32[8,512], index: 3, kind: input, shape index: {}]
  %s4 = inlined_call_operand.hbm [shape: f32[32,1536], index: 4, kind: output, shape index: {}]
  %s5 = sld [smem:[#allocation0]]
  $region65: #{tpu_custom_call.1} parent=0
    _
  %s7 = ssub.s32 1, %s5
  %s8 = scalar_select 0, %s7, %s5
  $region1: #{tpu_custom_call.1} parent=0
    #allocation2 [shape = 'u8[98304]{0}', space=vmem, size = 0x18000, scoped, tag = 'input window, operand 0']
    #allocation3 [shape = 's32[2]{0}', space=sflag, size = 0x8, scoped, tag = 'scoped memory for tpu_custom_call.1']
    #allocation4 [shape = 's32[2]{0}', space=sflag, size = 0x8, scoped, tag = 'scoped memory for tpu_custom_call.1']
    #allocation5 [shape = 'u8[65536]{0}', space=vmem, size = 0x10000, scoped, tag = 'input window, operand 1']
    #allocation6 [shape = 's32[2]{0}', space=sflag, size = 0x8, scoped, tag = 'scoped memory for tpu_custom_call.1']
    #allocation7 [shape = 'u8[655360]{0}', space=vmem, size = 0xa0000, scoped, tag = 'input window, operand 2, single buffered']
    #allocation8 [shape = 'u8[16384]{0}', space=vmem, size = 0x4000, scoped, tag = 'input window, operand 3, single buffered']
    #allocation9 [shape = 's32[1]{0}', space=sflag, size = 0x4, scoped, tag = 'scoped memory for tpu_custom_call.1']
    #allocation10 [shape = 'u8[196608]{0}', space=vmem, size = 0x30000, scoped, tag = 'output window, operand 0']
    %9 = vsyncpa [#allocation3], 0
    %s10 = scalar_lea.sflag [#allocation3], 1
    %11 = vsyncpa %s10, 0
    %12 = vsyncpa [#allocation6], 0
    %s13 = scalar_lea.sflag [#allocation6], 1
    %14 = vsyncpa %s13, 0
    %15 = vsyncpa [#allocation9], 0
    %16 = vsyncpa [#allocation4], 0
    %s17 = scalar_lea.sflag [#allocation4], 1
    %18 = vsyncpa %s17, 0
    loop: start=0, step=1, limit=4
    $region2: #{tpu_custom_call.1} parent=1 // loop_pre_header
      _
    $region3: #{tpu_custom_call.1} parent=1 // loop_header
      %s20 = sphi 0, %s24
      %p21 = scmp.ge.s32.totalorder %s20, 4
      %s30 = sphi 0, %s32
      %s33 = sphi 0, %s30
      %s34 = sphi 0, %s33
      %s50 = sphi 0, %s34
      %s56 = sphi 0, %s58
      %s59 = sphi 0, %s56
      %s60 = sphi 0, %s59
      %s76 = sphi 0, %s60
      %s80 = sphi 0, %s80
      %s82 = sphi 0, %s80
      %s83 = sphi 0, %s82
      %s97 = sphi 0, %s83
      %s101 = sphi 0, %s101
      %s103 = sphi 0, %s101
      %s104 = sphi 0, %s103
      %s118 = sphi 0, %s104
      %s124 = sphi 0, %s126
      %s127 = sphi 0, %s124
      %s128 = sphi 0, %s127
      %s144 = sphi 0, %s128
    $region4: #{tpu_custom_call.1} parent=1 // loop_header_branch
      %23 = sbr.rel (%p21) target = $region8
    $region5: #{tpu_custom_call.1} parent=1 // loop_body
      %s25 = ssub.s32 %s20, 1
      %s26 = ssub.s32 %s20, 2
      %s27 = sadd.s32 %s20, 1
      %s28 = ssub.s32 %s20, %s27
      %p29 = scmp.eq.s32.totalorder %s28, 0
      %s31 = sadd.s32 %s30, 1
      %s32 = scalar_select %p29, %s30, %s31
      %p35 = pneg %p29
      %p36 = scmp.eq.s32.totalorder %s20, 1
      %p37 = por %p35, %p36
      %p38 = scmp.ne.s32.totalorder %s30, %s33
      %p39 = scmp.eq.s32.totalorder %s20, 0
      %p40 = por %p38, %p39
      %p41 = scmp.ne.s32.totalorder %s30, %s33
      %p42 = scmp.eq.s32.totalorder %s25, 1
      %p43 = por %p41, %p42
      %p44 = scmp.ne.s32.totalorder %s33, %s34
      %p45 = scmp.eq.s32.totalorder %s25, 0
      %p46 = por %p44, %p45
      %p47 = scmp.ne.s32.totalorder %s33, %s34
      %p48 = scmp.eq.s32.totalorder %s26, 1
      %p49 = por %p47, %p48
      %p51 = scmp.ne.s32.totalorder %s34, %s50
      %p52 = scmp.eq.s32.totalorder %s26, 0
      %p53 = por %p51, %p52
      %s54 = ssub.s32 %s20, %s27
      %p55 = scmp.eq.s32.totalorder %s54, 0
      %s57 = sadd.s32 %s56, 1
      %s58 = scalar_select %p55, %s56, %s57
      %p61 = pneg %p55
      %p62 = scmp.eq.s32.totalorder %s20, 1
      %p63 = por %p61, %p62
      %p64 = scmp.ne.s32.totalorder %s56, %s59
      %p65 = scmp.eq.s32.totalorder %s20, 0
      %p66 = por %p64, %p65
      %p67 = scmp.ne.s32.totalorder %s56, %s59
      %p68 = scmp.eq.s32.totalorder %s25, 1
      %p69 = por %p67, %p68
      %p70 = scmp.ne.s32.totalorder %s59, %s60
      %p71 = scmp.eq.s32.totalorder %s25, 0
      %p72 = por %p70, %p71
      %p73 = scmp.ne.s32.totalorder %s59, %s60
      %p74 = scmp.eq.s32.totalorder %s26, 1
      %p75 = por %p73, %p74
      %p77 = scmp.ne.s32.totalorder %s60, %s76
      %p78 = scmp.eq.s32.totalorder %s26, 0
      %p79 = por %p77, %p78
      %s81 = sadd.s32 %s80, 1
      %p84 = scmp.eq.s32.totalorder %s20, 1
      %p85 = scmp.ne.s32.totalorder %s80, %s82
      %p86 = scmp.eq.s32.totalorder %s20, 0
      %p87 = por %p85, %p86
      %p88 = scmp.ne.s32.totalorder %s80, %s82
      %p89 = scmp.eq.s32.totalorder %s25, 1
      %p90 = por %p88, %p89
      %p91 = scmp.ne.s32.totalorder %s82, %s83
      %p92 = scmp.eq.s32.totalorder %s25, 0
      %p93 = por %p91, %p92
      %p94 = scmp.ne.s32.totalorder %s82, %s83
      %p95 = scmp.eq.s32.totalorder %s26, 1
      %p96 = por %p94, %p95
      %p98 = scmp.ne.s32.totalorder %s83, %s97
      %p99 = scmp.eq.s32.totalorder %s26, 0
      %p100 = por %p98, %p99
      %s102 = sadd.s32 %s101, 1
      %p105 = scmp.eq.s32.totalorder %s20, 1
      %p106 = scmp.ne.s32.totalorder %s101, %s103
      %p107 = scmp.eq.s32.totalorder %s20, 0
      %p108 = por %p106, %p107
      %p109 = scmp.ne.s32.totalorder %s101, %s103
      %p110 = scmp.eq.s32.totalorder %s25, 1
      %p111 = por %p109, %p110
      %p112 = scmp.ne.s32.totalorder %s103, %s104
      %p113 = scmp.eq.s32.totalorder %s25, 0
      %p114 = por %p112, %p113
      %p115 = scmp.ne.s32.totalorder %s103, %s104
      %p116 = scmp.eq.s32.totalorder %s26, 1
      %p117 = por %p115, %p116
      %p119 = scmp.ne.s32.totalorder %s104, %s118
      %p120 = scmp.eq.s32.totalorder %s26, 0
      %p121 = por %p119, %p120
      %s122 = ssub.s32 %s20, %s27
      %p123 = scmp.eq.s32.totalorder %s122, 0
      %s125 = sadd.s32 %s124, 1
      %s126 = scalar_select %p123, %s124, %s125
      %p129 = pneg %p123
      %p130 = scmp.eq.s32.totalorder %s20, 1
      %p131 = por %p129, %p130
      %p132 = scmp.ne.s32.totalorder %s124, %s127
      %p133 = scmp.eq.s32.totalorder %s20, 0
      %p134 = por %p132, %p133
      %p135 = scmp.ne.s32.totalorder %s124, %s127
      %p136 = scmp.eq.s32.totalorder %s25, 1
      %p137 = por %p135, %p136
      %p138 = scmp.ne.s32.totalorder %s127, %s128
      %p139 = scmp.eq.s32.totalorder %s25, 0
      %p140 = por %p138, %p139
      %p141 = scmp.ne.s32.totalorder %s127, %s128
      %p142 = scmp.eq.s32.totalorder %s26, 1
      %p143 = por %p141, %p142
      %p145 = scmp.ne.s32.totalorder %s128, %s144
      %p146 = scmp.eq.s32.totalorder %s26, 0
      %p147 = por %p145, %p146
      %p148 = scmp.le.s32.totalorder 1, %s20
      %p149 = scmp.lt.s32.totalorder %s20, 3
      %p150 = pnand %p148, %p149
      %p151 = pneg %p150
      // Predicated region
      $region9: #{tpu_custom_call.1} parent=5 // pred_check
        _
      $region10: #{tpu_custom_call.1} parent=5 // pred_check_branch
        %153 = sbr.rel (%p150) target = $region12
      $region11: #{tpu_custom_call.1} parent=5 // pred_region
        %s154 = ssub.s32 %s20, 1
        // Predicated region
        $region13: #{tpu_custom_call.1} parent=11 // pred_check
          %p155 = pneg %p93
        $region14: #{tpu_custom_call.1} parent=11 // pred_check_branch
          %157 = sbr.rel (%p155) target = $region16
        $region15: #{tpu_custom_call.1} parent=11 // pred_region
          %159 = vsyncadd [#allocation6], 0
          %s160 = sshll.u32 %s2, 4
          %s161 = int_to_ptr.hbm [resolvable:$true] %s160
          %s162 = sshll.u32 [#allocation7], 4
          %s163 = int_to_ptr.vmem [resolvable:$true] %s162
          %168 = dma.hbm_to_vmem [thread:$0]  %s161, 20480, %s163, [#allocation6], 256, 256, 16
        $region16: #{tpu_custom_call.1} parent=11 // pred_fallthru
          _
        // Predicated region
        $region17: #{tpu_custom_call.1} parent=11 // pred_check
          %p169 = pneg %p114
        $region18: #{tpu_custom_call.1} parent=11 // pred_check_branch
          %171 = sbr.rel (%p169) target = $region20
        $region19: #{tpu_custom_call.1} parent=11 // pred_region
          %173 = vsyncadd [#allocation9], 0
          %s175 = sshll.u32 %s3, 4
          %s176 = int_to_ptr.hbm [resolvable:$true] %s175
          %s177 = sshll.u32 [#allocation8], 4
          %s178 = int_to_ptr.vmem [resolvable:$true] %s177
          %180 = dma.hbm_to_vmem [thread:$0]  %s176, 512, %s178, [#allocation9]
        $region20: #{tpu_custom_call.1} parent=11 // pred_fallthru
          _
      $region12: #{tpu_custom_call.1} parent=5 // pred_fallthru
        _
      %p181 = scmp.lt.s32.totalorder %s20, 2
      // Predicated region
      $region21: #{tpu_custom_call.1} parent=5 // pred_check
        %p182 = pneg %p181
      $region22: #{tpu_custom_call.1} parent=5 // pred_check_branch
        %184 = sbr.rel (%p182) target = $region24
      $region23: #{tpu_custom_call.1} parent=5 // pred_region
        // Predicated region
        $region25: #{tpu_custom_call.1} parent=23 // pred_check
          %p185 = pneg %p40
        $region26: #{tpu_custom_call.1} parent=23 // pred_check_branch
          %187 = sbr.rel (%p185) target = $region28
        $region27: #{tpu_custom_call.1} parent=23 // pred_region
          %s188 = sand.u32 %s30, 1
          %s189 = scalar_lea.sflag [#allocation3], %s188
          %s190 = sand.u32 %s30, 1
          %s191 = smul.addr %s190, 96
          %s192 = scalar_lea.vmem [#allocation2], %s191
          %s193 = smul.u32 2, %s20
          %195 = vsyncadd %s189, 0
          %s196 = smul.addr %s193, 6
          %s197 = smul.addr %s196, 8
          %s198 = scalar_lea.hbm %s0, %s197
          %s199 = sshll.u32 %s198, 4
          %s200 = int_to_ptr.hbm [resolvable:$true] %s199
          %s201 = sshll.u32 %s192, 4
          %s202 = int_to_ptr.vmem [resolvable:$true] %s201
          %207 = dma.hbm_to_vmem [thread:$0]  %s200, 1536, %s202, %s189, 768, 768, 48
        $region28: #{tpu_custom_call.1} parent=23 // pred_fallthru
          _
        // Predicated region
        $region29: #{tpu_custom_call.1} parent=23 // pred_check
          %p208 = pneg %p66
        $region30: #{tpu_custom_call.1} parent=23 // pred_check_branch
          %210 = sbr.rel (%p208) target = $region32
        $region31: #{tpu_custom_call.1} parent=23 // pred_region
          %s211 = sand.u32 %s20, 1
          %s212 = scalar_lea.sflag [#allocation6], %s211
          %s213 = sand.u32 %s56, 1
          %s214 = smul.addr %s213, 64
          %s215 = scalar_lea.vmem [#allocation5], %s214
          %s216 = smul.u32 2, %s20
          %218 = vsyncadd %s212, 0
          %s219 = smul.addr %s216, 4
          %s220 = smul.addr %s219, 8
          %s221 = scalar_lea.hbm %s1, %s220
          %s222 = sshll.u32 %s221, 4
          %s223 = int_to_ptr.hbm [resolvable:$true] %s222
          %s224 = sshll.u32 %s215, 4
          %s225 = int_to_ptr.vmem [resolvable:$true] %s224
          %230 = dma.hbm_to_vmem [thread:$0]  %s223, 1024, %s225, %s212, 512, 512, 32
        $region32: #{tpu_custom_call.1} parent=23 // pred_fallthru
          _
      $region24: #{tpu_custom_call.1} parent=5 // pred_fallthru
        _
      %p231 = scmp.le.s32.totalorder 1, %s20
      %p232 = scmp.lt.s32.totalorder %s20, 3
      %p233 = pnand %p231, %p232
      %p234 = pneg %p233
      // Predicated region
      $region33: #{tpu_custom_call.1} parent=5 // pred_check
        _
      $region34: #{tpu_custom_call.1} parent=5 // pred_check_branch
        %236 = sbr.rel (%p233) target = $region36
      $region35: #{tpu_custom_call.1} parent=5 // pred_region
        %s237 = ssub.s32 %s20, 1
        %s238 = sand.u32 %s33, 1
        %s239 = scalar_lea.sflag [#allocation3], %s238
        %s240 = sand.u32 %s33, 1
        %s241 = smul.addr %s240, 96
        %s242 = scalar_lea.vmem [#allocation2], %s241
        // Predicated region
        $region37: #{tpu_custom_call.1} parent=35 // pred_check
          %p243 = pneg %p46
        $region38: #{tpu_custom_call.1} parent=35 // pred_check_branch
          %245 = sbr.rel (%p243) target = $region40
        $region39: #{tpu_custom_call.1} parent=35 // pred_region
          %247 = dma.done %s239, 1536
        $region40: #{tpu_custom_call.1} parent=35 // pred_fallthru
          _
        %s248 = sand.u32 %s25, 1
        %s249 = scalar_lea.sflag [#allocation6], %s248
        %s250 = sand.u32 %s59, 1
        %s251 = smul.addr %s250, 64
        %s252 = scalar_lea.vmem [#allocation5], %s251
        // Predicated region
        $region41: #{tpu_custom_call.1} parent=35 // pred_check
          %p253 = pneg %p72
        $region42: #{tpu_custom_call.1} parent=35 // pred_check_branch
          %255 = sbr.rel (%p253) target = $region44
        $region43: #{tpu_custom_call.1} parent=35 // pred_region
          %257 = dma.done %s249, 1024
        $region44: #{tpu_custom_call.1} parent=35 // pred_fallthru
          _
        // Predicated region
        $region45: #{tpu_custom_call.1} parent=35 // pred_check
          %p258 = pneg %p93
        $region46: #{tpu_custom_call.1} parent=35 // pred_check_branch
          %260 = sbr.rel (%p258) target = $region48
        $region47: #{tpu_custom_call.1} parent=35 // pred_region
          %262 = dma.done [#allocation6], 20480
        $region48: #{tpu_custom_call.1} parent=35 // pred_fallthru
          _
        // Predicated region
        $region49: #{tpu_custom_call.1} parent=35 // pred_check
          %p263 = pneg %p114
        $region50: #{tpu_custom_call.1} parent=35 // pred_check_branch
          %265 = sbr.rel (%p263) target = $region52
        $region51: #{tpu_custom_call.1} parent=35 // pred_region
          %267 = dma.done [#allocation9], 512
        $region52: #{tpu_custom_call.1} parent=35 // pred_fallthru
          _
        %s268 = sand.u32 %s33, 1
        %s269 = scalar_lea.sflag [#allocation3], %s268
        %s270 = sand.u32 %s33, 1
        %s271 = smul.addr %s270, 96
        %s272 = scalar_lea.vmem [#allocation2], %s271
        %p273 = pneg %p46
        %p274 = pneg %p43
        %s275 = sand.u32 %s25, 1
        %s276 = scalar_lea.sflag [#allocation6], %s275
        %s277 = sand.u32 %s59, 1
        %s278 = smul.addr %s277, 64
        %s279 = scalar_lea.vmem [#allocation5], %s278
        %p280 = pneg %p72
        %p281 = pneg %p69
        %p282 = pneg %p93
        %p283 = pneg %p90
        %p284 = pneg %p114
        %p285 = pneg %p111
        %p286 = pneg %p140
        %p287 = pneg %p137
        %s288 = sand.u32 %s127, 1
        %s289 = scalar_lea.sflag [#allocation4], %s288
        %s290 = sand.u32 %s127, 1
        %s291 = smul.addr %s290, 192
        %s292 = scalar_lea.vmem [#allocation10], %s291
        %s293 = smul.u32 2, %s25
        %s294 = smul.u32 2, %s25
        %s295 = smul.u32 2, %s25
        %v296 = vld [vmem:[#allocation7] sm:$0xff]
        %v297 = vld [vmem:[#allocation7 + $0x8] sm:$0xff]
        %v298 = vld [vmem:[#allocation7 + $0x10] sm:$0xff]
        %v299 = vld [vmem:[#allocation7 + $0x18] sm:$0xff]
        %v300 = vld [vmem:[#allocation7 + $0x20] sm:$0xff]
        %v301 = vld [vmem:[#allocation7 + $0x28] sm:$0xff]
        %v302 = vld [vmem:[#allocation7 + $0x30] sm:$0xff]
        %v303 = vld [vmem:[#allocation7 + $0x38] sm:$0xff]
        %v304 = vld [vmem:[#allocation7 + $0x40] sm:$0xff]
        %v305 = vld [vmem:[#allocation7 + $0x48] sm:$0xff]
        %v306 = vld [vmem:[#allocation7 + $0x50] sm:$0xff]
        %v307 = vld [vmem:[#allocation7 + $0x58] sm:$0xff]
        %v308 = vld [vmem:[#allocation7 + $0x60] sm:$0xff]
        %v309 = vld [vmem:[#allocation7 + $0x68] sm:$0xff]
        %v310 = vld [vmem:[#allocation7 + $0x70] sm:$0xff]
        %v311 = vld [vmem:[#allocation7 + $0x78] sm:$0xff]
        %v312 = vld [vmem:[#allocation7 + $0x80] sm:$0xff]
        %v313 = vld [vmem:[#allocation7 + $0x88] sm:$0xff]
        %v314 = vld [vmem:[#allocation7 + $0x90] sm:$0xff]
        %v315 = vld [vmem:[#allocation7 + $0x98] sm:$0xff]
        %v316 = vld [vmem:[#allocation7 + $0xa0] sm:$0xff]
        %v317 = vld [vmem:[#allocation7 + $0xa8] sm:$0xff]
        %v318 = vld [vmem:[#allocation7 + $0xb0] sm:$0xff]
        %v319 = vld [vmem:[#allocation7 + $0xb8] sm:$0xff]
        %v320 = vld [vmem:[#allocation7 + $0xc0] sm:$0xff]
        %v321 = vld [vmem:[#allocation7 + $0xc8] sm:$0xff]
        %v322 = vld [vmem:[#allocation7 + $0xd0] sm:$0xff]
        %v323 = vld [vmem:[#allocation7 + $0xd8] sm:$0xff]
        %v324 = vld [vmem:[#allocation7 + $0xe0] sm:$0xff]
        %v325 = vld [vmem:[#allocation7 + $0xe8] sm:$0xff]
        %v326 = vld [vmem:[#allocation7 + $0xf0] sm:$0xff]
        %v327 = vld [vmem:[#allocation7 + $0xf8] sm:$0xff]
        %v328 = vld [vmem:[#allocation7 + $0x100] sm:$0xff]
        %v329 = vld [vmem:[#allocation7 + $0x108] sm:$0xff]
        %v330 = vld [vmem:[#allocation7 + $0x110] sm:$0xff]
        %v331 = vld [vmem:[#allocation7 + $0x118] sm:$0xff]
        %v332 = vld [vmem:[#allocation7 + $0x120] sm:$0xff]
        %v333 = vld [vmem:[#allocation7 + $0x128] sm:$0xff]
        %v334 = vld [vmem:[#allocation7 + $0x130] sm:$0xff]
        %v335 = vld [vmem:[#allocation7 + $0x138] sm:$0xff]
        %v336 = vld [vmem:[#allocation7 + $0x140] sm:$0xff]
        %v337 = vld [vmem:[#allocation7 + $0x148] sm:$0xff]
        %v338 = vld [vmem:[#allocation7 + $0x150] sm:$0xff]
        %v339 = vld [vmem:[#allocation7 + $0x158] sm:$0xff]
        %v340 = vld [vmem:[#allocation7 + $0x160] sm:$0xff]
        %v341 = vld [vmem:[#allocation7 + $0x168] sm:$0xff]
        %v342 = vld [vmem:[#allocation7 + $0x170] sm:$0xff]
        %v343 = vld [vmem:[#allocation7 + $0x178] sm:$0xff]
        %v344 = vld [vmem:[#allocation7 + $0x180] sm:$0xff]
        %v345 = vld [vmem:[#allocation7 + $0x188] sm:$0xff]
        %v346 = vld [vmem:[#allocation7 + $0x190] sm:$0xff]
        %v347 = vld [vmem:[#allocation7 + $0x198] sm:$0xff]
        %v348 = vld [vmem:[#allocation7 + $0x1a0] sm:$0xff]
        %v349 = vld [vmem:[#allocation7 + $0x1a8] sm:$0xff]
        %v350 = vld [vmem:[#allocation7 + $0x1b0] sm:$0xff]
        %v351 = vld [vmem:[#allocation7 + $0x1b8] sm:$0xff]
        %v352 = vld [vmem:[#allocation7 + $0x1c0] sm:$0xff]
        %v353 = vld [vmem:[#allocation7 + $0x1c8] sm:$0xff]
        %v354 = vld [vmem:[#allocation7 + $0x1d0] sm:$0xff]
        %v355 = vld [vmem:[#allocation7 + $0x1d8] sm:$0xff]
        %v356 = vld [vmem:[#allocation7 + $0x1e0] sm:$0xff]
        %v357 = vld [vmem:[#allocation7 + $0x1e8] sm:$0xff]
        %v358 = vld [vmem:[#allocation7 + $0x1f0] sm:$0xff]
        %v359 = vld [vmem:[#allocation7 + $0x1f8] sm:$0xff]
        %v360 = vld [vmem:[#allocation7 + $0x200] sm:$0xff]
        %v361 = vld [vmem:[#allocation7 + $0x208] sm:$0xff]
        %v362 = vld [vmem:[#allocation7 + $0x210] sm:$0xff]
        %v363 = vld [vmem:[#allocation7 + $0x218] sm:$0xff]
        %v364 = vld [vmem:[#allocation7 + $0x220] sm:$0xff]
        %v365 = vld [vmem:[#allocation7 + $0x228] sm:$0xff]
        %v366 = vld [vmem:[#allocation7 + $0x230] sm:$0xff]
        %v367 = vld [vmem:[#allocation7 + $0x238] sm:$0xff]
        %v368 = vld [vmem:[#allocation7 + $0x240] sm:$0xff]
        %v369 = vld [vmem:[#allocation7 + $0x248] sm:$0xff]
        %v370 = vld [vmem:[#allocation7 + $0x250] sm:$0xff]
        %v371 = vld [vmem:[#allocation7 + $0x258] sm:$0xff]
        %v372 = vld [vmem:[#allocation7 + $0x260] sm:$0xff]
        %v373 = vld [vmem:[#allocation7 + $0x268] sm:$0xff]
        %v374 = vld [vmem:[#allocation7 + $0x270] sm:$0xff]
        %v375 = vld [vmem:[#allocation7 + $0x278] sm:$0xff]
        %v376 = vld [vmem:[#allocation7 + $0x280] sm:$0xff]
        %v377 = vld [vmem:[#allocation7 + $0x288] sm:$0xff]
        %v378 = vld [vmem:[#allocation7 + $0x290] sm:$0xff]
        %v379 = vld [vmem:[#allocation7 + $0x298] sm:$0xff]
        %v380 = vld [vmem:[#allocation7 + $0x2a0] sm:$0xff]
        %v381 = vld [vmem:[#allocation7 + $0x2a8] sm:$0xff]
        %v382 = vld [vmem:[#allocation7 + $0x2b0] sm:$0xff]
        %v383 = vld [vmem:[#allocation7 + $0x2b8] sm:$0xff]
        %v384 = vld [vmem:[#allocation7 + $0x2c0] sm:$0xff]
        %v385 = vld [vmem:[#allocation7 + $0x2c8] sm:$0xff]
        %v386 = vld [vmem:[#allocation7 + $0x2d0] sm:$0xff]
        %v387 = vld [vmem:[#allocation7 + $0x2d8] sm:$0xff]
        %v388 = vld [vmem:[#allocation7 + $0x2e0] sm:$0xff]
        %v389 = vld [vmem:[#allocation7 + $0x2e8] sm:$0xff]
        %v390 = vld [vmem:[#allocation7 + $0x2f0] sm:$0xff]
        %v391 = vld [vmem:[#allocation7 + $0x2f8] sm:$0xff]
        %v392 = vld [vmem:[#allocation7 + $0x300] sm:$0xff]
        %v393 = vld [vmem:[#allocation7 + $0x308] sm:$0xff]
        %v394 = vld [vmem:[#allocation7 + $0x310] sm:$0xff]
        %v395 = vld [vmem:[#allocation7 + $0x318] sm:$0xff]
        %v396 = vld [vmem:[#allocation7 + $0x320] sm:$0xff]
        %v397 = vld [vmem:[#allocation7 + $0x328] sm:$0xff]
        %v398 = vld [vmem:[#allocation7 + $0x330] sm:$0xff]
        %v399 = vld [vmem:[#allocation7 + $0x338] sm:$0xff]
        %v400 = vld [vmem:[#allocation7 + $0x340] sm:$0xff]
        %v401 = vld [vmem:[#allocation7 + $0x348] sm:$0xff]
        %v402 = vld [vmem:[#allocation7 + $0x350] sm:$0xff]
        %v403 = vld [vmem:[#allocation7 + $0x358] sm:$0xff]
        %v404 = vld [vmem:[#allocation7 + $0x360] sm:$0xff]
        %v405 = vld [vmem:[#allocation7 + $0x368] sm:$0xff]
        %v406 = vld [vmem:[#allocation7 + $0x370] sm:$0xff]
        %v407 = vld [vmem:[#allocation7 + $0x378] sm:$0xff]
        %v408 = vld [vmem:[#allocation7 + $0x380] sm:$0xff]
        %v409 = vld [vmem:[#allocation7 + $0x388] sm:$0xff]
        %v410 = vld [vmem:[#allocation7 + $0x390] sm:$0xff]
        %v411 = vld [vmem:[#allocation7 + $0x398] sm:$0xff]
        %v412 = vld [vmem:[#allocation7 + $0x3a0] sm:$0xff]
        %v413 = vld [vmem:[#allocation7 + $0x3a8] sm:$0xff]
        %v414 = vld [vmem:[#allocation7 + $0x3b0] sm:$0xff]
        %v415 = vld [vmem:[#allocation7 + $0x3b8] sm:$0xff]
        %v416 = vld [vmem:[#allocation7 + $0x3c0] sm:$0xff]
        %v417 = vld [vmem:[#allocation7 + $0x3c8] sm:$0xff]
        %v418 = vld [vmem:[#allocation7 + $0x3d0] sm:$0xff]
        %v419 = vld [vmem:[#allocation7 + $0x3d8] sm:$0xff]
        %v420 = vld [vmem:[#allocation7 + $0x3e0] sm:$0xff]
        %v421 = vld [vmem:[#allocation7 + $0x3e8] sm:$0xff]
        %v422 = vld [vmem:[#allocation7 + $0x3f0] sm:$0xff]
        %v423 = vld [vmem:[#allocation7 + $0x3f8] sm:$0xff]
        %v424 = vld [vmem:[#allocation7 + $0x400] sm:$0xff]
        %v425 = vld [vmem:[#allocation7 + $0x410] sm:$0xff]
        %v426 = vld [vmem:[#allocation7 + $0x420] sm:$0xff]
        %v427 = vld [vmem:[#allocation7 + $0x430] sm:$0xff]
        %v428 = vld [vmem:[#allocation7 + $0x440] sm:$0xff]
        %v429 = vld [vmem:[#allocation7 + $0x450] sm:$0xff]
        %v430 = vld [vmem:[#allocation7 + $0x460] sm:$0xff]
        %v431 = vld [vmem:[#allocation7 + $0x470] sm:$0xff]
        %v432 = vld [vmem:[#allocation7 + $0x480] sm:$0xff]
        %v433 = vld [vmem:[#allocation7 + $0x490] sm:$0xff]
        %v434 = vld [vmem:[#allocation7 + $0x4a0] sm:$0xff]
        %v435 = vld [vmem:[#allocation7 + $0x4b0] sm:$0xff]
        %v436 = vld [vmem:[#allocation7 + $0x4c0] sm:$0xff]
        %v437 = vld [vmem:[#allocation7 + $0x4d0] sm:$0xff]
        %v438 = vld [vmem:[#allocation7 + $0x4e0] sm:$0xff]
        %v439 = vld [vmem:[#allocation7 + $0x4f0] sm:$0xff]
        %v440 = vld [vmem:[#allocation7 + $0x408] sm:$0xf]
        %v441 = vld [vmem:[#allocation7 + $0x418] sm:$0xf]
        %v442 = vld [vmem:[#allocation7 + $0x428] sm:$0xf]
        %v443 = vld [vmem:[#allocation7 + $0x438] sm:$0xf]
        %v444 = vld [vmem:[#allocation7 + $0x448] sm:$0xf]
        %v445 = vld [vmem:[#allocation7 + $0x458] sm:$0xf]
        %v446 = vld [vmem:[#allocation7 + $0x468] sm:$0xf]
        %v447 = vld [vmem:[#allocation7 + $0x478] sm:$0xf]
        %v448 = vld [vmem:[#allocation7 + $0x488] sm:$0xf]
        %v449 = vld [vmem:[#allocation7 + $0x498] sm:$0xf]
        %v450 = vld [vmem:[#allocation7 + $0x4a8] sm:$0xf]
        %v451 = vld [vmem:[#allocation7 + $0x4b8] sm:$0xf]
        %v452 = vld [vmem:[#allocation7 + $0x4c8] sm:$0xf]
        %v453 = vld [vmem:[#allocation7 + $0x4d8] sm:$0xf]
        %v454 = vld [vmem:[#allocation7 + $0x4e8] sm:$0xf]
        %v455 = vld [vmem:[#allocation7 + $0x4f8] sm:$0xf]
        %v456 = vld [vmem:[#allocation8] ss:$8 sm:$0xf]
        %s457 = scalar_lea.vmem [#allocation8], 1
        %v458 = vld [vmem:[%s457] ss:$8 sm:$0xf]
        %s459 = scalar_lea.vmem [#allocation8], 2
        %v460 = vld [vmem:[%s459] ss:$8 sm:$0x3]
        %v461 = vld [vmem:[#allocation8 + $0x12] ss:$0 sm:$0xff]
        %v462 = vld [vmem:[%s252] sm:$0xff]
        %v463 = vld [vmem:[%s252 + $0x20] sm:$0xff]
        %v464 = vld [vmem:[%s252 + $0x8] sm:$0xff]
        %v465 = vld [vmem:[%s252 + $0x28] sm:$0xff]
        %v466 = vld [vmem:[%s252 + $0x10] sm:$0xff]
        %v467 = vld [vmem:[%s252 + $0x30] sm:$0xff]
        %v468 = vld [vmem:[%s252 + $0x18] sm:$0xff]
        %v469 = vld [vmem:[%s252 + $0x38] sm:$0xff]
        %v470 = vld [vmem:[%s242] sm:$0xff]
        %v471 = vld [vmem:[%s242 + $0x30] sm:$0xff]
        %v472 = vld [vmem:[%s242 + $0x8] sm:$0xff]
        %v473 = vld [vmem:[%s242 + $0x38] sm:$0xff]
        %v474 = vpack.c.bf16 %v471, %v470
        %v475 = vpack.c.bf16 %v463, %v462
        %v477 = vperm.slane %v456, 0
        %v478 = vperm.slane %v456, 1
        %v479 = vperm.slane %v456, 2
        %v480 = vperm.slane %v456, 3
        %v549 = vunpack.c.l.b16 %v296
        %v550 = vunpack.c.h.b16 %v296
        %v551 = vunpack.c.l.b16 %v297
        %v552 = vunpack.c.h.b16 %v297
        %v553 = vunpack.c.l.b16 %v298
        %v554 = vunpack.c.h.b16 %v298
        %v555 = vunpack.c.l.b16 %v299
        %v556 = vunpack.c.h.b16 %v299
        %v557 = vunpack.c.l.b16 %v300
        %v558 = vunpack.c.h.b16 %v300
        %v559 = vunpack.c.l.b16 %v301
        %v560 = vunpack.c.h.b16 %v301
        %v561 = vunpack.c.l.b16 %v302
        %v562 = vunpack.c.h.b16 %v302
        %v563 = vunpack.c.l.b16 %v303
        %v564 = vunpack.c.h.b16 %v303
        %v565 = vunpack.c.l.b16 %v304
        %v566 = vunpack.c.h.b16 %v304
        %v567 = vunpack.c.l.b16 %v305
        %v568 = vunpack.c.h.b16 %v305
        %v569 = vunpack.c.l.b16 %v306
        %v570 = vunpack.c.h.b16 %v306
        %v571 = vunpack.c.l.b16 %v307
        %v572 = vunpack.c.h.b16 %v307
        %v573 = vunpack.c.l.b16 %v308
        %v574 = vunpack.c.h.b16 %v308
        %v575 = vunpack.c.l.b16 %v309
        %v576 = vunpack.c.h.b16 %v309
        %v577 = vunpack.c.l.b16 %v310
        %v578 = vunpack.c.h.b16 %v310
        %v579 = vunpack.c.l.b16 %v311
        %v580 = vunpack.c.h.b16 %v311
        %v581 = vunpack.c.l.b16 %v312
        %v582 = vunpack.c.h.b16 %v312
        %v583 = vunpack.c.l.b16 %v313
        %v584 = vunpack.c.h.b16 %v313
        %v585 = vunpack.c.l.b16 %v314
        %v586 = vunpack.c.h.b16 %v314
        %v587 = vunpack.c.l.b16 %v315
        %v588 = vunpack.c.h.b16 %v315
        %v589 = vunpack.c.l.b16 %v316
        %v590 = vunpack.c.h.b16 %v316
        %v591 = vunpack.c.l.b16 %v317
        %v592 = vunpack.c.h.b16 %v317
        %v593 = vunpack.c.l.b16 %v318
        %v594 = vunpack.c.h.b16 %v318
        %v595 = vunpack.c.l.b16 %v319
        %v596 = vunpack.c.h.b16 %v319
        %v597 = vunpack.c.l.b16 %v320
        %v598 = vunpack.c.h.b16 %v320
        %v599 = vunpack.c.l.b16 %v321
        %v600 = vunpack.c.h.b16 %v321
        %v601 = vunpack.c.l.b16 %v322
        %v602 = vunpack.c.h.b16 %v322
        %v603 = vunpack.c.l.b16 %v323
        %v604 = vunpack.c.h.b16 %v323
        %v605 = vunpack.c.l.b16 %v324
        %v606 = vunpack.c.h.b16 %v324
        %v607 = vunpack.c.l.b16 %v325
        %v608 = vunpack.c.h.b16 %v325
        %v609 = vunpack.c.l.b16 %v326
        %v610 = vunpack.c.h.b16 %v326
        %v611 = vunpack.c.l.b16 %v327
        %v612 = vunpack.c.h.b16 %v327
        %v613 = vunpack.c.l.b16 %v328
        %v614 = vunpack.c.h.b16 %v328
        %v615 = vunpack.c.l.b16 %v329
        %v616 = vunpack.c.h.b16 %v329
        %v617 = vunpack.c.l.b16 %v330
        %v618 = vunpack.c.h.b16 %v330
        %v619 = vunpack.c.l.b16 %v331
        %v620 = vunpack.c.h.b16 %v331
        %v621 = vunpack.c.l.b16 %v332
        %v622 = vunpack.c.h.b16 %v332
        %v623 = vunpack.c.l.b16 %v333
        %v624 = vunpack.c.h.b16 %v333
        %v625 = vunpack.c.l.b16 %v334
        %v626 = vunpack.c.h.b16 %v334
        %v627 = vunpack.c.l.b16 %v335
        %v628 = vunpack.c.h.b16 %v335
        %v629 = vunpack.c.l.b16 %v336
        %v630 = vunpack.c.h.b16 %v336
        %v631 = vunpack.c.l.b16 %v337
        %v632 = vunpack.c.h.b16 %v337
        %v633 = vunpack.c.l.b16 %v338
        %v634 = vunpack.c.h.b16 %v338
        %v635 = vunpack.c.l.b16 %v339
        %v636 = vunpack.c.h.b16 %v339
        %v637 = vunpack.c.l.b16 %v340
        %v638 = vunpack.c.h.b16 %v340
        %v639 = vunpack.c.l.b16 %v341
        %v640 = vunpack.c.h.b16 %v341
        %v641 = vunpack.c.l.b16 %v342
        %v642 = vunpack.c.h.b16 %v342
        %v643 = vunpack.c.l.b16 %v343
        %v644 = vunpack.c.h.b16 %v343
        %v645 = vunpack.c.l.b16 %v344
        %v646 = vunpack.c.h.b16 %v344
        %v647 = vunpack.c.l.b16 %v345
        %v648 = vunpack.c.h.b16 %v345
        %v649 = vunpack.c.l.b16 %v346
        %v650 = vunpack.c.h.b16 %v346
        %v651 = vunpack.c.l.b16 %v347
        %v652 = vunpack.c.h.b16 %v347
        %v653 = vunpack.c.l.b16 %v348
        %v654 = vunpack.c.h.b16 %v348
        %v655 = vunpack.c.l.b16 %v349
        %v656 = vunpack.c.h.b16 %v349
        %v657 = vunpack.c.l.b16 %v350
        %v658 = vunpack.c.h.b16 %v350
        %v659 = vunpack.c.l.b16 %v351
        %v660 = vunpack.c.h.b16 %v351
        %v661 = vunpack.c.l.b16 %v352
        %v662 = vunpack.c.h.b16 %v352
        %v663 = vunpack.c.l.b16 %v353
        %v664 = vunpack.c.h.b16 %v353
        %v665 = vunpack.c.l.b16 %v354
        %v666 = vunpack.c.h.b16 %v354
        %v667 = vunpack.c.l.b16 %v355
        %v668 = vunpack.c.h.b16 %v355
        %v669 = vunpack.c.l.b16 %v356
        %v670 = vunpack.c.h.b16 %v356
        %v671 = vunpack.c.l.b16 %v357
        %v672 = vunpack.c.h.b16 %v357
        %v673 = vunpack.c.l.b16 %v358
        %v674 = vunpack.c.h.b16 %v358
        %v675 = vunpack.c.l.b16 %v359
        %v676 = vunpack.c.h.b16 %v359
        %v677 = vpack.c.b16 %v553, %v549
        %v678 = vpack.c.b16 %v554, %v550
        %v679 = vpack.c.b16 %v555, %v551
        %v680 = vpack.c.b16 %v556, %v552
        %v681 = vpack.c.b16 %v561, %v557
        %v682 = vpack.c.b16 %v562, %v558
        %v683 = vpack.c.b16 %v563, %v559
        %v684 = vpack.c.b16 %v564, %v560
        %v685 = vpack.c.b16 %v569, %v565
        %v686 = vpack.c.b16 %v570, %v566
        %v687 = vpack.c.b16 %v571, %v567
        %v688 = vpack.c.b16 %v572, %v568
        %v689 = vpack.c.b16 %v577, %v573
        %v690 = vpack.c.b16 %v578, %v574
        %v691 = vpack.c.b16 %v579, %v575
        %v692 = vpack.c.b16 %v580, %v576
        %v693 = vpack.c.b16 %v585, %v581
        %v694 = vpack.c.b16 %v586, %v582
        %v695 = vpack.c.b16 %v587, %v583
        %v696 = vpack.c.b16 %v588, %v584
        %v697 = vpack.c.b16 %v593, %v589
        %v698 = vpack.c.b16 %v594, %v590
        %v699 = vpack.c.b16 %v595, %v591
        %v700 = vpack.c.b16 %v596, %v592
        %v701 = vpack.c.b16 %v601, %v597
        %v702 = vpack.c.b16 %v602, %v598
        %v703 = vpack.c.b16 %v603, %v599
        %v704 = vpack.c.b16 %v604, %v600
        %v705 = vpack.c.b16 %v609, %v605
        %v706 = vpack.c.b16 %v610, %v606
        %v707 = vpack.c.b16 %v611, %v607
        %v708 = vpack.c.b16 %v612, %v608
        %v709 = vpack.c.b16 %v617, %v613
        %v710 = vpack.c.b16 %v618, %v614
        %v711 = vpack.c.b16 %v619, %v615
        %v712 = vpack.c.b16 %v620, %v616
        %v713 = vpack.c.b16 %v625, %v621
        %v714 = vpack.c.b16 %v626, %v622
        %v715 = vpack.c.b16 %v627, %v623
        %v716 = vpack.c.b16 %v628, %v624
        %v717 = vpack.c.b16 %v633, %v629
        %v718 = vpack.c.b16 %v634, %v630
        %v719 = vpack.c.b16 %v635, %v631
        %v720 = vpack.c.b16 %v636, %v632
        %v721 = vpack.c.b16 %v641, %v637
        %v722 = vpack.c.b16 %v642, %v638
        %v723 = vpack.c.b16 %v643, %v639
        %v724 = vpack.c.b16 %v644, %v640
        %v725 = vpack.c.b16 %v649, %v645
        %v726 = vpack.c.b16 %v650, %v646
        %v727 = vpack.c.b16 %v651, %v647
        %v728 = vpack.c.b16 %v652, %v648
        %v729 = vpack.c.b16 %v657, %v653
        %v730 = vpack.c.b16 %v658, %v654
        %v731 = vpack.c.b16 %v659, %v655
        %v732 = vpack.c.b16 %v660, %v656
        %v733 = vpack.c.b16 %v665, %v661
        %v734 = vpack.c.b16 %v666, %v662
        %v735 = vpack.c.b16 %v667, %v663
        %v736 = vpack.c.b16 %v668, %v664
        %v737 = vpack.c.b16 %v673, %v669
        %v738 = vpack.c.b16 %v674, %v670
        %v739 = vpack.c.b16 %v675, %v671
        %v740 = vpack.c.b16 %v676, %v672
        %805 = vmatpush.bf16.msra.mxu0 %v705
        %806 = vmatpush.bf16.msra.mxu0 %v701
        %807 = vmatpush.bf16.msra.mxu0 %v697
        %808 = vmatpush.bf16.msra.mxu0 %v693
        %809 = vmatpush.bf16.msra.mxu0 %v689
        %810 = vmatpush.bf16.msra.mxu0 %v685
        %811 = vmatpush.bf16.msra.mxu0 %v681
        %812 = vmatpush.bf16.msra.mxu0 %v677
        %813 = vmatmul.bf16.gmra.mxu0 %v474
        %v814 = vpop.f32.mrf.mxu0
        %v815 = vadd.f32 %v477, %v814
        %v816 = vpop.f32.mrf.mxu0
        %v817 = vadd.f32 %v477, %v816
        %818 = vdwg.mxu0
        %819 = vmatpush.bf16.msra.mxu0 %v737
        %820 = vmatpush.bf16.msra.mxu0 %v733
        %821 = vmatpush.bf16.msra.mxu0 %v729
        %822 = vmatpush.bf16.msra.mxu0 %v725
        %823 = vmatpush.bf16.msra.mxu0 %v721
        %824 = vmatpush.bf16.msra.mxu0 %v717
        %825 = vmatpush.bf16.msra.mxu0 %v713
        %826 = vmatpush.bf16.msra.mxu0 %v709
        %827 = vmatmul.bf16.gmra.mxu0 %v475
        %v828 = vpop.f32.mrf.mxu0
        %v829 = vadd.f32 %v815, %v828
        %v830 = vpop.f32.mrf.mxu0
        %v831 = vadd.f32 %v817, %v830
        %832 = vdwg.mxu0
        %833 = vmatpush.bf16.msra.mxu0 %v706
        %834 = vmatpush.bf16.msra.mxu0 %v702
        %835 = vmatpush.bf16.msra.mxu0 %v698
        %836 = vmatpush.bf16.msra.mxu0 %v694
        %837 = vmatpush.bf16.msra.mxu0 %v690
        %838 = vmatpush.bf16.msra.mxu0 %v686
        %839 = vmatpush.bf16.msra.mxu0 %v682
        %840 = vmatpush.bf16.msra.mxu0 %v678
        %841 = vmatmul.bf16.gmra.mxu0 %v474
        %v842 = vpop.f32.mrf.mxu0
        %v843 = vadd.f32 %v478, %v842
        %v844 = vpop.f32.mrf.mxu0
        %v845 = vadd.f32 %v478, %v844
        %846 = vdwg.mxu0
        %847 = vmatpush.bf16.msra.mxu0 %v738
        %848 = vmatpush.bf16.msra.mxu0 %v734
        %849 = vmatpush.bf16.msra.mxu0 %v730
        %850 = vmatpush.bf16.msra.mxu0 %v726
        %851 = vmatpush.bf16.msra.mxu0 %v722
        %852 = vmatpush.bf16.msra.mxu0 %v718
        %853 = vmatpush.bf16.msra.mxu0 %v714
        %854 = vmatpush.bf16.msra.mxu0 %v710
        %855 = vmatmul.bf16.gmra.mxu0 %v475
        %v856 = vpop.f32.mrf.mxu0
        %v857 = vadd.f32 %v843, %v856
        %v858 = vpop.f32.mrf.mxu0
        %v859 = vadd.f32 %v845, %v858
        %860 = vdwg.mxu0
        %861 = vmatpush.bf16.msra.mxu0 %v707
        %862 = vmatpush.bf16.msra.mxu0 %v703
        %863 = vmatpush.bf16.msra.mxu0 %v699
        %864 = vmatpush.bf16.msra.mxu0 %v695
        %865 = vmatpush.bf16.msra.mxu0 %v691
        %866 = vmatpush.bf16.msra.mxu0 %v687
        %867 = vmatpush.bf16.msra.mxu0 %v683
        %868 = vmatpush.bf16.msra.mxu0 %v679
        %869 = vmatmul.bf16.gmra.mxu0 %v474
        %v870 = vpop.f32.mrf.mxu0
        %v871 = vadd.f32 %v479, %v870
        %v872 = vpop.f32.mrf.mxu0
        %v873 = vadd.f32 %v479, %v872
        %874 = vdwg.mxu0
        %875 = vmatpush.bf16.msra.mxu0 %v739
        %876 = vmatpush.bf16.msra.mxu0 %v735
        %877 = vmatpush.bf16.msra.mxu0 %v731
        %878 = vmatpush.bf16.msra.mxu0 %v727
        %879 = vmatpush.bf16.msra.mxu0 %v723
        %880 = vmatpush.bf16.msra.mxu0 %v719
        %881 = vmatpush.bf16.msra.mxu0 %v715
        %882 = vmatpush.bf16.msra.mxu0 %v711
        %883 = vmatmul.bf16.gmra.mxu0 %v475
        %v884 = vpop.f32.mrf.mxu0
        %v885 = vadd.f32 %v871, %v884
        %v886 = vpop.f32.mrf.mxu0
        %v887 = vadd.f32 %v873, %v886
        %888 = vdwg.mxu0
        %889 = vmatpush.bf16.msra.mxu0 %v708
        %890 = vmatpush.bf16.msra.mxu0 %v704
        %891 = vmatpush.bf16.msra.mxu0 %v700
        %892 = vmatpush.bf16.msra.mxu0 %v696
        %893 = vmatpush.bf16.msra.mxu0 %v692
        %894 = vmatpush.bf16.msra.mxu0 %v688
        %895 = vmatpush.bf16.msra.mxu0 %v684
        %896 = vmatpush.bf16.msra.mxu0 %v680
        %897 = vmatmul.bf16.gmra.mxu0 %v474
        %v898 = vpop.f32.mrf.mxu0
        %v899 = vadd.f32 %v480, %v898
        %v900 = vpop.f32.mrf.mxu0
        %v901 = vadd.f32 %v480, %v900
        %902 = vdwg.mxu0
        %903 = vmatpush.bf16.msra.mxu0 %v740
        %904 = vmatpush.bf16.msra.mxu0 %v736
        %905 = vmatpush.bf16.msra.mxu0 %v732
        %906 = vmatpush.bf16.msra.mxu0 %v728
        %907 = vmatpush.bf16.msra.mxu0 %v724
        %908 = vmatpush.bf16.msra.mxu0 %v720
        %909 = vmatpush.bf16.msra.mxu0 %v716
        %910 = vmatpush.bf16.msra.mxu0 %v712
        %911 = vmatmul.bf16.gmra.mxu0 %v475
        %v912 = vpop.f32.mrf.mxu0
        %v913 = vadd.f32 %v899, %v912
        %v914 = vpop.f32.mrf.mxu0
        %v915 = vadd.f32 %v901, %v914
        %916 = vdwg.mxu0
        %v917 = vxor.u32 %v829, 2147483648
        %v918 = vxor.u32 %v831, 2147483648
        %v919 = vmul.f32 %v917, 1.442695
        %v920 = vpow.pop %v919
        %v921 = vmul.f32 %v918, 1.442695
        %v922 = vpow.pop %v921
        %v923 = vadd.f32 %v920, 1.0
        %v924 = vadd.f32 %v922, 1.0
        %v925 = vrcp.pop %v923
        %v926 = vmul.f32 %v923, %v925
        %v927 = vsub.f32 1.0, %v926
        %v928 = vmul.f32 %v925, %v927
        %v929 = vadd.f32 %v925, %v928
        %vm930 = vweird.f32 %v923
        %vm931 = vweird.f32 %v925
        %vm932 = vmor %vm930, %vm931
        %v933 = vsel %vm932, %v925, %v929
        %v934 = vand.u32 2147483647, %v923
        %vm935 = vcmp.eq.f32.partialorder %v934, 8.507059e+37
        %v936 = vand.u32 %v923, 2147483648
        %v937 = vor.u32 1.1754944e-38, %v936
        %v938 = vsel %vm935, %v937, %v933
        %v939 = vmul.f32 1.0, %v938
        %v940 = vrcp.pop %v924
        %v941 = vmul.f32 %v924, %v940
        %v942 = vsub.f32 1.0, %v941
        %v943 = vmul.f32 %v940, %v942
        %v944 = vadd.f32 %v940, %v943
        %vm945 = vweird.f32 %v924
        %vm946 = vweird.f32 %v940
        %vm947 = vmor %vm945, %vm946
        %v948 = vsel %vm947, %v940, %v944
        %v949 = vand.u32 2147483647, %v924
        %vm950 = vcmp.eq.f32.partialorder %v949, 8.507059e+37
        %v951 = vand.u32 %v924, 2147483648
        %v952 = vor.u32 1.1754944e-38, %v951
        %v953 = vsel %vm950, %v952, %v948
        %v954 = vmul.f32 1.0, %v953
        %v955 = vxor.u32 %v857, 2147483648
        %v956 = vxor.u32 %v859, 2147483648
        %v957 = vmul.f32 %v955, 1.442695
        %v958 = vpow.pop %v957
        %v959 = vmul.f32 %v956, 1.442695
        %v960 = vpow.pop %v959
        %v961 = vadd.f32 %v958, 1.0
        %v962 = vadd.f32 %v960, 1.0
        %v963 = vrcp.pop %v961
        %v964 = vmul.f32 %v961, %v963
        %v965 = vsub.f32 1.0, %v964
        %v966 = vmul.f32 %v963, %v965
        %v967 = vadd.f32 %v963, %v966
        %vm968 = vweird.f32 %v961
        %vm969 = vweird.f32 %v963
        %vm970 = vmor %vm968, %vm969
        %v971 = vsel %vm970, %v963, %v967
        %v972 = vand.u32 2147483647, %v961
        %vm973 = vcmp.eq.f32.partialorder %v972, 8.507059e+37
        %v974 = vand.u32 %v961, 2147483648
        %v975 = vor.u32 1.1754944e-38, %v974
        %v976 = vsel %vm973, %v975, %v971
        %v977 = vmul.f32 1.0, %v976
        %v978 = vrcp.pop %v962
        %v979 = vmul.f32 %v962, %v978
        %v980 = vsub.f32 1.0, %v979
        %v981 = vmul.f32 %v978, %v980
        %v982 = vadd.f32 %v978, %v981
        %vm983 = vweird.f32 %v962
        %vm984 = vweird.f32 %v978
        %vm985 = vmor %vm983, %vm984
        %v986 = vsel %vm985, %v978, %v982
        %v987 = vand.u32 2147483647, %v962
        %vm988 = vcmp.eq.f32.partialorder %v987, 8.507059e+37
        %v989 = vand.u32 %v962, 2147483648
        %v990 = vor.u32 1.1754944e-38, %v989
        %v991 = vsel %vm988, %v990, %v986
        %v992 = vmul.f32 1.0, %v991
        %v993 = vtanh.pop %v885
        %v994 = vtanh.pop %v887
        %v995 = vxor.u32 %v913, 2147483648
        %v996 = vxor.u32 %v915, 2147483648
        %v997 = vmul.f32 %v995, 1.442695
        %v998 = vpow.pop %v997
        %v999 = vmul.f32 %v996, 1.442695
        %v1000 = vpow.pop %v999
        %v1001 = vadd.f32 %v998, 1.0
        %v1002 = vadd.f32 %v1000, 1.0
        %v1003 = vrcp.pop %v1001
        %v1004 = vmul.f32 %v1001, %v1003
        %v1005 = vsub.f32 1.0, %v1004
        %v1006 = vmul.f32 %v1003, %v1005
        %v1007 = vadd.f32 %v1003, %v1006
        %vm1008 = vweird.f32 %v1001
        %vm1009 = vweird.f32 %v1003
        %vm1010 = vmor %vm1008, %vm1009
        %v1011 = vsel %vm1010, %v1003, %v1007
        %v1012 = vand.u32 2147483647, %v1001
        %vm1013 = vcmp.eq.f32.partialorder %v1012, 8.507059e+37
        %v1014 = vand.u32 %v1001, 2147483648
        %v1015 = vor.u32 1.1754944e-38, %v1014
        %v1016 = vsel %vm1013, %v1015, %v1011
        %v1017 = vmul.f32 1.0, %v1016
        %v1018 = vrcp.pop %v1002
        %v1019 = vmul.f32 %v1002, %v1018
        %v1020 = vsub.f32 1.0, %v1019
        %v1021 = vmul.f32 %v1018, %v1020
        %v1022 = vadd.f32 %v1018, %v1021
        %vm1023 = vweird.f32 %v1002
        %vm1024 = vweird.f32 %v1018
        %vm1025 = vmor %vm1023, %vm1024
        %v1026 = vsel %vm1025, %v1018, %v1022
        %v1027 = vand.u32 2147483647, %v1002
        %vm1028 = vcmp.eq.f32.partialorder %v1027, 8.507059e+37
        %v1029 = vand.u32 %v1002, 2147483648
        %v1030 = vor.u32 1.1754944e-38, %v1029
        %v1031 = vsel %vm1028, %v1030, %v1026
        %v1032 = vmul.f32 1.0, %v1031
        %v1033 = vmul.f32 %v977, %v464
        %v1034 = vmul.f32 %v992, %v465
        %v1035 = vmul.f32 %v939, %v993
        %v1036 = vmul.f32 %v954, %v994
        %v1037 = vadd.f32 %v1033, %v1035
        %v1038 = vadd.f32 %v1034, %v1036
        %v1039 = vtanh.pop %v1037
        %v1040 = vtanh.pop %v1038
        %v1041 = vmul.f32 %v1017, %v1039
        %v1042 = vmul.f32 %v1032, %v1040
        %v1043 = vpack.c.bf16 %v1042, %v1041
        %v1045 = vperm.slane %v460, 0
        %v1046 = vperm.slane %v460, 1
        %v1065 = vunpack.c.l.b16 %v424
        %v1066 = vunpack.c.h.b16 %v424
        %v1067 = vunpack.c.l.b16 %v425
        %v1068 = vunpack.c.h.b16 %v425
        %v1069 = vunpack.c.l.b16 %v426
        %v1070 = vunpack.c.h.b16 %v426
        %v1071 = vunpack.c.l.b16 %v427
        %v1072 = vunpack.c.h.b16 %v427
        %v1073 = vunpack.c.l.b16 %v428
        %v1074 = vunpack.c.h.b16 %v428
        %v1075 = vunpack.c.l.b16 %v429
        %v1076 = vunpack.c.h.b16 %v429
        %v1077 = vunpack.c.l.b16 %v430
        %v1078 = vunpack.c.h.b16 %v430
        %v1079 = vunpack.c.l.b16 %v431
        %v1080 = vunpack.c.h.b16 %v431
        %v1081 = vunpack.c.l.b16 %v432
        %v1082 = vunpack.c.h.b16 %v432
        %v1083 = vunpack.c.l.b16 %v433
        %v1084 = vunpack.c.h.b16 %v433
        %v1085 = vunpack.c.l.b16 %v434
        %v1086 = vunpack.c.h.b16 %v434
        %v1087 = vunpack.c.l.b16 %v435
        %v1088 = vunpack.c.h.b16 %v435
        %v1089 = vunpack.c.l.b16 %v436
        %v1090 = vunpack.c.h.b16 %v436
        %v1091 = vunpack.c.l.b16 %v437
        %v1092 = vunpack.c.h.b16 %v437
        %v1093 = vunpack.c.l.b16 %v438
        %v1094 = vunpack.c.h.b16 %v438
        %v1095 = vunpack.c.l.b16 %v439
        %v1096 = vunpack.c.h.b16 %v439
        %v1097 = vpack.c.b16 %v1067, %v1065
        %v1098 = vpack.c.b16 %v1068, %v1066
        %v1099 = vpack.c.b16 %v1071, %v1069
        %v1100 = vpack.c.b16 %v1072, %v1070
        %v1101 = vpack.c.b16 %v1075, %v1073
        %v1102 = vpack.c.b16 %v1076, %v1074
        %v1103 = vpack.c.b16 %v1079, %v1077
        %v1104 = vpack.c.b16 %v1080, %v1078
        %v1105 = vpack.c.b16 %v1083, %v1081
        %v1106 = vpack.c.b16 %v1084, %v1082
        %v1107 = vpack.c.b16 %v1087, %v1085
        %v1108 = vpack.c.b16 %v1088, %v1086
        %v1109 = vpack.c.b16 %v1091, %v1089
        %v1110 = vpack.c.b16 %v1092, %v1090
        %v1111 = vpack.c.b16 %v1095, %v1093
        %v1112 = vpack.c.b16 %v1096, %v1094
        %1129 = vmatpush.bf16.msra.mxu0 %v1111
        %1130 = vmatpush.bf16.msra.mxu0 %v1109
        %1131 = vmatpush.bf16.msra.mxu0 %v1107
        %1132 = vmatpush.bf16.msra.mxu0 %v1105
        %1133 = vmatpush.bf16.msra.mxu0 %v1103
        %1134 = vmatpush.bf16.msra.mxu0 %v1101
        %1135 = vmatpush.bf16.msra.mxu0 %v1099
        %1136 = vmatpush.bf16.msra.mxu0 %v1097
        %1137 = vmatmul.bf16.gmra.mxu0 %v1043
        %v1138 = vpop.f32.mrf.mxu0
        %v1139 = vadd.f32 %v1045, %v1138
        %v1140 = vpop.f32.mrf.mxu0
        %v1141 = vadd.f32 %v1045, %v1140
        %1142 = vdwg.mxu0
        %1143 = vmatpush.bf16.msra.mxu0 %v1112
        %1144 = vmatpush.bf16.msra.mxu0 %v1110
        %1145 = vmatpush.bf16.msra.mxu0 %v1108
        %1146 = vmatpush.bf16.msra.mxu0 %v1106
        %1147 = vmatpush.bf16.msra.mxu0 %v1104
        %1148 = vmatpush.bf16.msra.mxu0 %v1102
        %1149 = vmatpush.bf16.msra.mxu0 %v1100
        %1150 = vmatpush.bf16.msra.mxu0 %v1098
        %1151 = vmatmul.bf16.gmra.mxu0 %v1043
        %v1152 = vpop.f32.mrf.mxu0
        %v1153 = vadd.f32 %v1046, %v1152
        %v1154 = vpop.f32.mrf.mxu0
        %v1155 = vadd.f32 %v1046, %v1154
        %1156 = vdwg.mxu0
        %v1157 = vmul.f32 %v1153, 0.5
        %v1158 = vmul.f32 %v1155, 0.5
        %v1159 = vmul.f32 %v1157, 1.442695
        %v1160 = vpow.pop %v1159
        %v1161 = vmul.f32 %v1158, 1.442695
        %v1162 = vpow.pop %v1161
        %v1163 = vmul.f32 %v472, %v1160
        %v1164 = vmul.f32 %v473, %v1162
        %v1165 = vadd.f32 %v1139, %v1163
        %v1166 = vadd.f32 %v1141, %v1164
        %v1167 = vpack.c.bf16 %v1166, %v1165
        %v1168 = vpack.c.bf16 %v467, %v466
        %v1170 = vperm.slane %v458, 0
        %v1171 = vperm.slane %v458, 1
        %v1172 = vperm.slane %v458, 2
        %v1173 = vperm.slane %v458, 3
        %v1242 = vunpack.c.l.b16 %v360
        %v1243 = vunpack.c.h.b16 %v360
        %v1244 = vunpack.c.l.b16 %v361
        %v1245 = vunpack.c.h.b16 %v361
        %v1246 = vunpack.c.l.b16 %v362
        %v1247 = vunpack.c.h.b16 %v362
        %v1248 = vunpack.c.l.b16 %v363
        %v1249 = vunpack.c.h.b16 %v363
        %v1250 = vunpack.c.l.b16 %v364
        %v1251 = vunpack.c.h.b16 %v364
        %v1252 = vunpack.c.l.b16 %v365
        %v1253 = vunpack.c.h.b16 %v365
        %v1254 = vunpack.c.l.b16 %v366
        %v1255 = vunpack.c.h.b16 %v366
        %v1256 = vunpack.c.l.b16 %v367
        %v1257 = vunpack.c.h.b16 %v367
        %v1258 = vunpack.c.l.b16 %v368
        %v1259 = vunpack.c.h.b16 %v368
        %v1260 = vunpack.c.l.b16 %v369
        %v1261 = vunpack.c.h.b16 %v369
        %v1262 = vunpack.c.l.b16 %v370
        %v1263 = vunpack.c.h.b16 %v370
        %v1264 = vunpack.c.l.b16 %v371
        %v1265 = vunpack.c.h.b16 %v371
        %v1266 = vunpack.c.l.b16 %v372
        %v1267 = vunpack.c.h.b16 %v372
        %v1268 = vunpack.c.l.b16 %v373
        %v1269 = vunpack.c.h.b16 %v373
        %v1270 = vunpack.c.l.b16 %v374
        %v1271 = vunpack.c.h.b16 %v374
        %v1272 = vunpack.c.l.b16 %v375
        %v1273 = vunpack.c.h.b16 %v375
        %v1274 = vunpack.c.l.b16 %v376
        %v1275 = vunpack.c.h.b16 %v376
        %v1276 = vunpack.c.l.b16 %v377
        %v1277 = vunpack.c.h.b16 %v377
        %v1278 = vunpack.c.l.b16 %v378
        %v1279 = vunpack.c.h.b16 %v378
        %v1280 = vunpack.c.l.b16 %v379
        %v1281 = vunpack.c.h.b16 %v379
        %v1282 = vunpack.c.l.b16 %v380
        %v1283 = vunpack.c.h.b16 %v380
        %v1284 = vunpack.c.l.b16 %v381
        %v1285 = vunpack.c.h.b16 %v381
        %v1286 = vunpack.c.l.b16 %v382
        %v1287 = vunpack.c.h.b16 %v382
        %v1288 = vunpack.c.l.b16 %v383
        %v1289 = vunpack.c.h.b16 %v383
        %v1290 = vunpack.c.l.b16 %v384
        %v1291 = vunpack.c.h.b16 %v384
        %v1292 = vunpack.c.l.b16 %v385
        %v1293 = vunpack.c.h.b16 %v385
        %v1294 = vunpack.c.l.b16 %v386
        %v1295 = vunpack.c.h.b16 %v386
        %v1296 = vunpack.c.l.b16 %v387
        %v1297 = vunpack.c.h.b16 %v387
        %v1298 = vunpack.c.l.b16 %v388
        %v1299 = vunpack.c.h.b16 %v388
        %v1300 = vunpack.c.l.b16 %v389
        %v1301 = vunpack.c.h.b16 %v389
        %v1302 = vunpack.c.l.b16 %v390
        %v1303 = vunpack.c.h.b16 %v390
        %v1304 = vunpack.c.l.b16 %v391
        %v1305 = vunpack.c.h.b16 %v391
        %v1306 = vunpack.c.l.b16 %v392
        %v1307 = vunpack.c.h.b16 %v392
        %v1308 = vunpack.c.l.b16 %v393
        %v1309 = vunpack.c.h.b16 %v393
        %v1310 = vunpack.c.l.b16 %v394
        %v1311 = vunpack.c.h.b16 %v394
        %v1312 = vunpack.c.l.b16 %v395
        %v1313 = vunpack.c.h.b16 %v395
        %v1314 = vunpack.c.l.b16 %v396
        %v1315 = vunpack.c.h.b16 %v396
        %v1316 = vunpack.c.l.b16 %v397
        %v1317 = vunpack.c.h.b16 %v397
        %v1318 = vunpack.c.l.b16 %v398
        %v1319 = vunpack.c.h.b16 %v398
        %v1320 = vunpack.c.l.b16 %v399
        %v1321 = vunpack.c.h.b16 %v399
        %v1322 = vunpack.c.l.b16 %v400
        %v1323 = vunpack.c.h.b16 %v400
        %v1324 = vunpack.c.l.b16 %v401
        %v1325 = vunpack.c.h.b16 %v401
        %v1326 = vunpack.c.l.b16 %v402
        %v1327 = vunpack.c.h.b16 %v402
        %v1328 = vunpack.c.l.b16 %v403
        %v1329 = vunpack.c.h.b16 %v403
        %v1330 = vunpack.c.l.b16 %v404
        %v1331 = vunpack.c.h.b16 %v404
        %v1332 = vunpack.c.l.b16 %v405
        %v1333 = vunpack.c.h.b16 %v405
        %v1334 = vunpack.c.l.b16 %v406
        %v1335 = vunpack.c.h.b16 %v406
        %v1336 = vunpack.c.l.b16 %v407
        %v1337 = vunpack.c.h.b16 %v407
        %v1338 = vunpack.c.l.b16 %v408
        %v1339 = vunpack.c.h.b16 %v408
        %v1340 = vunpack.c.l.b16 %v409
        %v1341 = vunpack.c.h.b16 %v409
        %v1342 = vunpack.c.l.b16 %v410
        %v1343 = vunpack.c.h.b16 %v410
        %v1344 = vunpack.c.l.b16 %v411
        %v1345 = vunpack.c.h.b16 %v411
        %v1346 = vunpack.c.l.b16 %v412
        %v1347 = vunpack.c.h.b16 %v412
        %v1348 = vunpack.c.l.b16 %v413
        %v1349 = vunpack.c.h.b16 %v413
        %v1350 = vunpack.c.l.b16 %v414
        %v1351 = vunpack.c.h.b16 %v414
        %v1352 = vunpack.c.l.b16 %v415
        %v1353 = vunpack.c.h.b16 %v415
        %v1354 = vunpack.c.l.b16 %v416
        %v1355 = vunpack.c.h.b16 %v416
        %v1356 = vunpack.c.l.b16 %v417
        %v1357 = vunpack.c.h.b16 %v417
        %v1358 = vunpack.c.l.b16 %v418
        %v1359 = vunpack.c.h.b16 %v418
        %v1360 = vunpack.c.l.b16 %v419
        %v1361 = vunpack.c.h.b16 %v419
        %v1362 = vunpack.c.l.b16 %v420
        %v1363 = vunpack.c.h.b16 %v420
        %v1364 = vunpack.c.l.b16 %v421
        %v1365 = vunpack.c.h.b16 %v421
        %v1366 = vunpack.c.l.b16 %v422
        %v1367 = vunpack.c.h.b16 %v422
        %v1368 = vunpack.c.l.b16 %v423
        %v1369 = vunpack.c.h.b16 %v423
        %v1370 = vpack.c.b16 %v1246, %v1242
        %v1371 = vpack.c.b16 %v1247, %v1243
        %v1372 = vpack.c.b16 %v1248, %v1244
        %v1373 = vpack.c.b16 %v1249, %v1245
        %v1374 = vpack.c.b16 %v1254, %v1250
        %v1375 = vpack.c.b16 %v1255, %v1251
        %v1376 = vpack.c.b16 %v1256, %v1252
        %v1377 = vpack.c.b16 %v1257, %v1253
        %v1378 = vpack.c.b16 %v1262, %v1258
        %v1379 = vpack.c.b16 %v1263, %v1259
        %v1380 = vpack.c.b16 %v1264, %v1260
        %v1381 = vpack.c.b16 %v1265, %v1261
        %v1382 = vpack.c.b16 %v1270, %v1266
        %v1383 = vpack.c.b16 %v1271, %v1267
        %v1384 = vpack.c.b16 %v1272, %v1268
        %v1385 = vpack.c.b16 %v1273, %v1269
        %v1386 = vpack.c.b16 %v1278, %v1274
        %v1387 = vpack.c.b16 %v1279, %v1275
        %v1388 = vpack.c.b16 %v1280, %v1276
        %v1389 = vpack.c.b16 %v1281, %v1277
        %v1390 = vpack.c.b16 %v1286, %v1282
        %v1391 = vpack.c.b16 %v1287, %v1283
        %v1392 = vpack.c.b16 %v1288, %v1284
        %v1393 = vpack.c.b16 %v1289, %v1285
        %v1394 = vpack.c.b16 %v1294, %v1290
        %v1395 = vpack.c.b16 %v1295, %v1291
        %v1396 = vpack.c.b16 %v1296, %v1292
        %v1397 = vpack.c.b16 %v1297, %v1293
        %v1398 = vpack.c.b16 %v1302, %v1298
        %v1399 = vpack.c.b16 %v1303, %v1299
        %v1400 = vpack.c.b16 %v1304, %v1300
        %v1401 = vpack.c.b16 %v1305, %v1301
        %v1402 = vpack.c.b16 %v1310, %v1306
        %v1403 = vpack.c.b16 %v1311, %v1307
        %v1404 = vpack.c.b16 %v1312, %v1308
        %v1405 = vpack.c.b16 %v1313, %v1309
        %v1406 = vpack.c.b16 %v1318, %v1314
        %v1407 = vpack.c.b16 %v1319, %v1315
        %v1408 = vpack.c.b16 %v1320, %v1316
        %v1409 = vpack.c.b16 %v1321, %v1317
        %v1410 = vpack.c.b16 %v1326, %v1322
        %v1411 = vpack.c.b16 %v1327, %v1323
        %v1412 = vpack.c.b16 %v1328, %v1324
        %v1413 = vpack.c.b16 %v1329, %v1325
        %v1414 = vpack.c.b16 %v1334, %v1330
        %v1415 = vpack.c.b16 %v1335, %v1331
        %v1416 = vpack.c.b16 %v1336, %v1332
        %v1417 = vpack.c.b16 %v1337, %v1333
        %v1418 = vpack.c.b16 %v1342, %v1338
        %v1419 = vpack.c.b16 %v1343, %v1339
        %v1420 = vpack.c.b16 %v1344, %v1340
        %v1421 = vpack.c.b16 %v1345, %v1341
        %v1422 = vpack.c.b16 %v1350, %v1346
        %v1423 = vpack.c.b16 %v1351, %v1347
        %v1424 = vpack.c.b16 %v1352, %v1348
        %v1425 = vpack.c.b16 %v1353, %v1349
        %v1426 = vpack.c.b16 %v1358, %v1354
        %v1427 = vpack.c.b16 %v1359, %v1355
        %v1428 = vpack.c.b16 %v1360, %v1356
        %v1429 = vpack.c.b16 %v1361, %v1357
        %v1430 = vpack.c.b16 %v1366, %v1362
        %v1431 = vpack.c.b16 %v1367, %v1363
        %v1432 = vpack.c.b16 %v1368, %v1364
        %v1433 = vpack.c.b16 %v1369, %v1365
        %1498 = vmatpush.bf16.msra.mxu0 %v1398
        %1499 = vmatpush.bf16.msra.mxu0 %v1394
        %1500 = vmatpush.bf16.msra.mxu0 %v1390
        %1501 = vmatpush.bf16.msra.mxu0 %v1386
        %1502 = vmatpush.bf16.msra.mxu0 %v1382
        %1503 = vmatpush.bf16.msra.mxu0 %v1378
        %1504 = vmatpush.bf16.msra.mxu0 %v1374
        %1505 = vmatpush.bf16.msra.mxu0 %v1370
        %1506 = vmatmul.bf16.gmra.mxu0 %v1167
        %v1507 = vpop.f32.mrf.mxu0
        %v1508 = vadd.f32 %v1170, %v1507
        %v1509 = vpop.f32.mrf.mxu0
        %v1510 = vadd.f32 %v1170, %v1509
        %1511 = vdwg.mxu0
        %1512 = vmatpush.bf16.msra.mxu0 %v1430
        %1513 = vmatpush.bf16.msra.mxu0 %v1426
        %1514 = vmatpush.bf16.msra.mxu0 %v1422
        %1515 = vmatpush.bf16.msra.mxu0 %v1418
        %1516 = vmatpush.bf16.msra.mxu0 %v1414
        %1517 = vmatpush.bf16.msra.mxu0 %v1410
        %1518 = vmatpush.bf16.msra.mxu0 %v1406
        %1519 = vmatpush.bf16.msra.mxu0 %v1402
        %1520 = vmatmul.bf16.gmra.mxu0 %v1168
        %v1521 = vpop.f32.mrf.mxu0
        %v1522 = vadd.f32 %v1508, %v1521
        %v1523 = vpop.f32.mrf.mxu0
        %v1524 = vadd.f32 %v1510, %v1523
        %1525 = vdwg.mxu0
        %1526 = vmatpush.bf16.msra.mxu0 %v1399
        %1527 = vmatpush.bf16.msra.mxu0 %v1395
        %1528 = vmatpush.bf16.msra.mxu0 %v1391
        %1529 = vmatpush.bf16.msra.mxu0 %v1387
        %1530 = vmatpush.bf16.msra.mxu0 %v1383
        %1531 = vmatpush.bf16.msra.mxu0 %v1379
        %1532 = vmatpush.bf16.msra.mxu0 %v1375
        %1533 = vmatpush.bf16.msra.mxu0 %v1371
        %1534 = vmatmul.bf16.gmra.mxu0 %v1167
        %v1535 = vpop.f32.mrf.mxu0
        %v1536 = vadd.f32 %v1171, %v1535
        %v1537 = vpop.f32.mrf.mxu0
        %v1538 = vadd.f32 %v1171, %v1537
        %1539 = vdwg.mxu0
        %1540 = vmatpush.bf16.msra.mxu0 %v1431
        %1541 = vmatpush.bf16.msra.mxu0 %v1427
        %1542 = vmatpush.bf16.msra.mxu0 %v1423
        %1543 = vmatpush.bf16.msra.mxu0 %v1419
        %1544 = vmatpush.bf16.msra.mxu0 %v1415
        %1545 = vmatpush.bf16.msra.mxu0 %v1411
        %1546 = vmatpush.bf16.msra.mxu0 %v1407
        %1547 = vmatpush.bf16.msra.mxu0 %v1403
        %1548 = vmatmul.bf16.gmra.mxu0 %v1168
        %v1549 = vpop.f32.mrf.mxu0
        %v1550 = vadd.f32 %v1536, %v1549
        %v1551 = vpop.f32.mrf.mxu0
        %v1552 = vadd.f32 %v1538, %v1551
        %1553 = vdwg.mxu0
        %1554 = vmatpush.bf16.msra.mxu0 %v1400
        %1555 = vmatpush.bf16.msra.mxu0 %v1396
        %1556 = vmatpush.bf16.msra.mxu0 %v1392
        %1557 = vmatpush.bf16.msra.mxu0 %v1388
        %1558 = vmatpush.bf16.msra.mxu0 %v1384
        %1559 = vmatpush.bf16.msra.mxu0 %v1380
        %1560 = vmatpush.bf16.msra.mxu0 %v1376
        %1561 = vmatpush.bf16.msra.mxu0 %v1372
        %1562 = vmatmul.bf16.gmra.mxu0 %v1167
        %v1563 = vpop.f32.mrf.mxu0
        %v1564 = vadd.f32 %v1172, %v1563
        %v1565 = vpop.f32.mrf.mxu0
        %v1566 = vadd.f32 %v1172, %v1565
        %1567 = vdwg.mxu0
        %1568 = vmatpush.bf16.msra.mxu0 %v1432
        %1569 = vmatpush.bf16.msra.mxu0 %v1428
        %1570 = vmatpush.bf16.msra.mxu0 %v1424
        %1571 = vmatpush.bf16.msra.mxu0 %v1420
        %1572 = vmatpush.bf16.msra.mxu0 %v1416
        %1573 = vmatpush.bf16.msra.mxu0 %v1412
        %1574 = vmatpush.bf16.msra.mxu0 %v1408
        %1575 = vmatpush.bf16.msra.mxu0 %v1404
        %1576 = vmatmul.bf16.gmra.mxu0 %v1168
        %v1577 = vpop.f32.mrf.mxu0
        %v1578 = vadd.f32 %v1564, %v1577
        %v1579 = vpop.f32.mrf.mxu0
        %v1580 = vadd.f32 %v1566, %v1579
        %1581 = vdwg.mxu0
        %1582 = vmatpush.bf16.msra.mxu0 %v1401
        %1583 = vmatpush.bf16.msra.mxu0 %v1397
        %1584 = vmatpush.bf16.msra.mxu0 %v1393
        %1585 = vmatpush.bf16.msra.mxu0 %v1389
        %1586 = vmatpush.bf16.msra.mxu0 %v1385
        %1587 = vmatpush.bf16.msra.mxu0 %v1381
        %1588 = vmatpush.bf16.msra.mxu0 %v1377
        %1589 = vmatpush.bf16.msra.mxu0 %v1373
        %1590 = vmatmul.bf16.gmra.mxu0 %v1167
        %v1591 = vpop.f32.mrf.mxu0
        %v1592 = vadd.f32 %v1173, %v1591
        %v1593 = vpop.f32.mrf.mxu0
        %v1594 = vadd.f32 %v1173, %v1593
        %1595 = vdwg.mxu0
        %1596 = vmatpush.bf16.msra.mxu0 %v1433
        %1597 = vmatpush.bf16.msra.mxu0 %v1429
        %1598 = vmatpush.bf16.msra.mxu0 %v1425
        %1599 = vmatpush.bf16.msra.mxu0 %v1421
        %1600 = vmatpush.bf16.msra.mxu0 %v1417
        %1601 = vmatpush.bf16.msra.mxu0 %v1413
        %1602 = vmatpush.bf16.msra.mxu0 %v1409
        %1603 = vmatpush.bf16.msra.mxu0 %v1405
        %1604 = vmatmul.bf16.gmra.mxu0 %v1168
        %v1605 = vpop.f32.mrf.mxu0
        %v1606 = vadd.f32 %v1592, %v1605
        %v1607 = vpop.f32.mrf.mxu0
        %v1608 = vadd.f32 %v1594, %v1607
        %1609 = vdwg.mxu0
        %v1610 = vxor.u32 %v1522, 2147483648
        %v1611 = vxor.u32 %v1524, 2147483648
        %v1612 = vmul.f32 %v1610, 1.442695
        %v1613 = vpow.pop %v1612
        %v1614 = vmul.f32 %v1611, 1.442695
        %v1615 = vpow.pop %v1614
        %v1616 = vadd.f32 %v1613, 1.0
        %v1617 = vadd.f32 %v1615, 1.0
        %v1618 = vrcp.pop %v1616
        %v1619 = vmul.f32 %v1616, %v1618
        %v1620 = vsub.f32 1.0, %v1619
        %v1621 = vmul.f32 %v1618, %v1620
        %v1622 = vadd.f32 %v1618, %v1621
        %vm1623 = vweird.f32 %v1616
        %vm1624 = vweird.f32 %v1618
        %vm1625 = vmor %vm1623, %vm1624
        %v1626 = vsel %vm1625, %v1618, %v1622
        %v1627 = vand.u32 2147483647, %v1616
        %vm1628 = vcmp.eq.f32.partialorder %v1627, 8.507059e+37
        %v1629 = vand.u32 %v1616, 2147483648
        %v1630 = vor.u32 1.1754944e-38, %v1629
        %v1631 = vsel %vm1628, %v1630, %v1626
        %v1632 = vmul.f32 1.0, %v1631
        %v1633 = vrcp.pop %v1617
        %v1634 = vmul.f32 %v1617, %v1633
        %v1635 = vsub.f32 1.0, %v1634
        %v1636 = vmul.f32 %v1633, %v1635
        %v1637 = vadd.f32 %v1633, %v1636
        %vm1638 = vweird.f32 %v1617
        %vm1639 = vweird.f32 %v1633
        %vm1640 = vmor %vm1638, %vm1639
        %v1641 = vsel %vm1640, %v1633, %v1637
        %v1642 = vand.u32 2147483647, %v1617
        %vm1643 = vcmp.eq.f32.partialorder %v1642, 8.507059e+37
        %v1644 = vand.u32 %v1617, 2147483648
        %v1645 = vor.u32 1.1754944e-38, %v1644
        %v1646 = vsel %vm1643, %v1645, %v1641
        %v1647 = vmul.f32 1.0, %v1646
        %v1648 = vxor.u32 %v1550, 2147483648
        %v1649 = vxor.u32 %v1552, 2147483648
        %v1650 = vmul.f32 %v1648, 1.442695
        %v1651 = vpow.pop %v1650
        %v1652 = vmul.f32 %v1649, 1.442695
        %v1653 = vpow.pop %v1652
        %v1654 = vadd.f32 %v1651, 1.0
        %v1655 = vadd.f32 %v1653, 1.0
        %v1656 = vrcp.pop %v1654
        %v1657 = vmul.f32 %v1654, %v1656
        %v1658 = vsub.f32 1.0, %v1657
        %v1659 = vmul.f32 %v1656, %v1658
        %v1660 = vadd.f32 %v1656, %v1659
        %vm1661 = vweird.f32 %v1654
        %vm1662 = vweird.f32 %v1656
        %vm1663 = vmor %vm1661, %vm1662
        %v1664 = vsel %vm1663, %v1656, %v1660
        %v1665 = vand.u32 2147483647, %v1654
        %vm1666 = vcmp.eq.f32.partialorder %v1665, 8.507059e+37
        %v1667 = vand.u32 %v1654, 2147483648
        %v1668 = vor.u32 1.1754944e-38, %v1667
        %v1669 = vsel %vm1666, %v1668, %v1664
        %v1670 = vmul.f32 1.0, %v1669
        %v1671 = vrcp.pop %v1655
        %v1672 = vmul.f32 %v1655, %v1671
        %v1673 = vsub.f32 1.0, %v1672
        %v1674 = vmul.f32 %v1671, %v1673
        %v1675 = vadd.f32 %v1671, %v1674
        %vm1676 = vweird.f32 %v1655
        %vm1677 = vweird.f32 %v1671
        %vm1678 = vmor %vm1676, %vm1677
        %v1679 = vsel %vm1678, %v1671, %v1675
        %v1680 = vand.u32 2147483647, %v1655
        %vm1681 = vcmp.eq.f32.partialorder %v1680, 8.507059e+37
        %v1682 = vand.u32 %v1655, 2147483648
        %v1683 = vor.u32 1.1754944e-38, %v1682
        %v1684 = vsel %vm1681, %v1683, %v1679
        %v1685 = vmul.f32 1.0, %v1684
        %v1686 = vtanh.pop %v1578
        %v1687 = vtanh.pop %v1580
        %v1688 = vxor.u32 %v1606, 2147483648
        %v1689 = vxor.u32 %v1608, 2147483648
        %v1690 = vmul.f32 %v1688, 1.442695
        %v1691 = vpow.pop %v1690
        %v1692 = vmul.f32 %v1689, 1.442695
        %v1693 = vpow.pop %v1692
        %v1694 = vadd.f32 %v1691, 1.0
        %v1695 = vadd.f32 %v1693, 1.0
        %v1696 = vrcp.pop %v1694
        %v1697 = vmul.f32 %v1694, %v1696
        %v1698 = vsub.f32 1.0, %v1697
        %v1699 = vmul.f32 %v1696, %v1698
        %v1700 = vadd.f32 %v1696, %v1699
        %vm1701 = vweird.f32 %v1694
        %vm1702 = vweird.f32 %v1696
        %vm1703 = vmor %vm1701, %vm1702
        %v1704 = vsel %vm1703, %v1696, %v1700
        %v1705 = vand.u32 2147483647, %v1694
        %vm1706 = vcmp.eq.f32.partialorder %v1705, 8.507059e+37
        %v1707 = vand.u32 %v1694, 2147483648
        %v1708 = vor.u32 1.1754944e-38, %v1707
        %v1709 = vsel %vm1706, %v1708, %v1704
        %v1710 = vmul.f32 1.0, %v1709
        %v1711 = vrcp.pop %v1695
        %v1712 = vmul.f32 %v1695, %v1711
        %v1713 = vsub.f32 1.0, %v1712
        %v1714 = vmul.f32 %v1711, %v1713
        %v1715 = vadd.f32 %v1711, %v1714
        %vm1716 = vweird.f32 %v1695
        %vm1717 = vweird.f32 %v1711
        %vm1718 = vmor %vm1716, %vm1717
        %v1719 = vsel %vm1718, %v1711, %v1715
        %v1720 = vand.u32 2147483647, %v1695
        %vm1721 = vcmp.eq.f32.partialorder %v1720, 8.507059e+37
        %v1722 = vand.u32 %v1695, 2147483648
        %v1723 = vor.u32 1.1754944e-38, %v1722
        %v1724 = vsel %vm1721, %v1723, %v1719
        %v1725 = vmul.f32 1.0, %v1724
        %v1726 = vmul.f32 %v1670, %v468
        %v1727 = vmul.f32 %v1685, %v469
        %v1728 = vmul.f32 %v1632, %v1686
        %v1729 = vmul.f32 %v1647, %v1687
        %v1730 = vadd.f32 %v1726, %v1728
        %v1731 = vadd.f32 %v1727, %v1729
        %v1732 = vtanh.pop %v1730
        %v1733 = vtanh.pop %v1731
        %v1734 = vmul.f32 %v1710, %v1732
        %v1735 = vmul.f32 %v1725, %v1733
        %v1736 = vmax.f32 %v1734, 0.0
        %v1737 = vmax.f32 %v1735, 0.0
        %v1738 = vand.u32 2147483647, %v1734
        %v1739 = vand.u32 2147483647, %v1735
        %v1740 = vsub.f32 0.0, %v1738
        %v1741 = vsub.f32 0.0, %v1739
        %v1742 = vmul.f32 %v1740, 1.442695
        %v1743 = vpow.pop %v1742
        %v1744 = vmul.f32 %v1741, 1.442695
        %v1745 = vpow.pop %v1744
        %v1746 = vadd.f32 %v1743, 1.0
        %v1747 = vadd.f32 %v1745, 1.0
        %v1748 = vlog2.pop %v1746
        %v1749 = vmul.f32 %v1748, 0.6931472
        %v1750 = vlog2.pop %v1747
        %v1751 = vmul.f32 %v1750, 0.6931472
        %v1752 = vadd.f32 %v1736, %v1749
        %v1753 = vadd.f32 %v1737, %v1751
        %v1754 = vpack.c.bf16 %v1753, %v1752
        %v1771 = vunpack.c.l.b16 %v440
        %v1772 = vunpack.c.l.b16 %v441
        %v1773 = vunpack.c.l.b16 %v442
        %v1774 = vunpack.c.l.b16 %v443
        %v1775 = vunpack.c.l.b16 %v444
        %v1776 = vunpack.c.l.b16 %v445
        %v1777 = vunpack.c.l.b16 %v446
        %v1778 = vunpack.c.l.b16 %v447
        %v1779 = vunpack.c.l.b16 %v448
        %v1780 = vunpack.c.l.b16 %v449
        %v1781 = vunpack.c.l.b16 %v450
        %v1782 = vunpack.c.l.b16 %v451
        %v1783 = vunpack.c.l.b16 %v452
        %v1784 = vunpack.c.l.b16 %v453
        %v1785 = vunpack.c.l.b16 %v454
        %v1786 = vunpack.c.l.b16 %v455
        %v1787 = vpack.c.b16 %v1772, %v1771
        %v1788 = vpack.c.b16 %v1774, %v1773
        %v1789 = vpack.c.b16 %v1776, %v1775
        %v1790 = vpack.c.b16 %v1778, %v1777
        %v1791 = vpack.c.b16 %v1780, %v1779
        %v1792 = vpack.c.b16 %v1782, %v1781
        %v1793 = vpack.c.b16 %v1784, %v1783
        %v1794 = vpack.c.b16 %v1786, %v1785
        %1803 = vmatpush.bf16.msra.mxu0 %v1794
        %1804 = vmatpush.bf16.msra.mxu0 %v1793
        %1805 = vmatpush.bf16.msra.mxu0 %v1792
        %1806 = vmatpush.bf16.msra.mxu0 %v1791
        %1807 = vmatpush.bf16.msra.mxu0 %v1790
        %1808 = vmatpush.bf16.msra.mxu0 %v1789
        %1809 = vmatpush.bf16.msra.mxu0 %v1788
        %1810 = vmatpush.bf16.msra.mxu0 %v1787
        %1811 = vmatmul.bf16.gmra.mxu0 %v1754
        %v1812 = vpop.f32.mrf.mxu0
        %v1813 = vadd.f32 %v461, %v1812
        %v1814 = vpop.f32.mrf.mxu0
        %v1815 = vadd.f32 %v461, %v1814
        %1816 = vdwg.mxu0
        %v1817 = vld [vmem:[%s242 + $0x10] sm:$0xff]
        %v1818 = vld [vmem:[%s242 + $0x40] sm:$0xff]
        %v1819 = vld [vmem:[%s242 + $0x18] sm:$0xff]
        %v1820 = vld [vmem:[%s242 + $0x48] sm:$0xff]
        %v1821 = vpack.c.bf16 %v1818, %v1817
        %1822 = vmatpush.bf16.msra.mxu0 %v705
        %1823 = vmatpush.bf16.msra.mxu0 %v701
        %1824 = vmatpush.bf16.msra.mxu0 %v697
        %1825 = vmatpush.bf16.msra.mxu0 %v693
        %1826 = vmatpush.bf16.msra.mxu0 %v689
        %1827 = vmatpush.bf16.msra.mxu0 %v685
        %1828 = vmatpush.bf16.msra.mxu0 %v681
        %1829 = vmatpush.bf16.msra.mxu0 %v677
        %1830 = vmatmul.bf16.gmra.mxu0 %v1821
        %v1831 = vpop.f32.mrf.mxu0
        %v1832 = vadd.f32 %v477, %v1831
        %v1833 = vpop.f32.mrf.mxu0
        %v1834 = vadd.f32 %v477, %v1833
        %1835 = vdwg.mxu0
        %1836 = vmatpush.bf16.msra.mxu0 %v737
        %1837 = vmatpush.bf16.msra.mxu0 %v733
        %1838 = vmatpush.bf16.msra.mxu0 %v729
        %1839 = vmatpush.bf16.msra.mxu0 %v725
        %1840 = vmatpush.bf16.msra.mxu0 %v721
        %1841 = vmatpush.bf16.msra.mxu0 %v717
        %1842 = vmatpush.bf16.msra.mxu0 %v713
        %1843 = vmatpush.bf16.msra.mxu0 %v709
        %1844 = vmatmul.bf16.gmra.mxu0 %v1043
        %v1845 = vpop.f32.mrf.mxu0
        %v1846 = vadd.f32 %v1832, %v1845
        %v1847 = vpop.f32.mrf.mxu0
        %v1848 = vadd.f32 %v1834, %v1847
        %1849 = vdwg.mxu0
        %1850 = vmatpush.bf16.msra.mxu0 %v706
        %1851 = vmatpush.bf16.msra.mxu0 %v702
        %1852 = vmatpush.bf16.msra.mxu0 %v698
        %1853 = vmatpush.bf16.msra.mxu0 %v694
        %1854 = vmatpush.bf16.msra.mxu0 %v690
        %1855 = vmatpush.bf16.msra.mxu0 %v686
        %1856 = vmatpush.bf16.msra.mxu0 %v682
        %1857 = vmatpush.bf16.msra.mxu0 %v678
        %1858 = vmatmul.bf16.gmra.mxu0 %v1821
        %v1859 = vpop.f32.mrf.mxu0
        %v1860 = vadd.f32 %v478, %v1859
        %v1861 = vpop.f32.mrf.mxu0
        %v1862 = vadd.f32 %v478, %v1861
        %1863 = vdwg.mxu0
        %1864 = vmatpush.bf16.msra.mxu0 %v738
        %1865 = vmatpush.bf16.msra.mxu0 %v734
        %1866 = vmatpush.bf16.msra.mxu0 %v730
        %1867 = vmatpush.bf16.msra.mxu0 %v726
        %1868 = vmatpush.bf16.msra.mxu0 %v722
        %1869 = vmatpush.bf16.msra.mxu0 %v718
        %1870 = vmatpush.bf16.msra.mxu0 %v714
        %1871 = vmatpush.bf16.msra.mxu0 %v710
        %1872 = vmatmul.bf16.gmra.mxu0 %v1043
        %v1873 = vpop.f32.mrf.mxu0
        %v1874 = vadd.f32 %v1860, %v1873
        %v1875 = vpop.f32.mrf.mxu0
        %v1876 = vadd.f32 %v1862, %v1875
        %1877 = vdwg.mxu0
        %1878 = vmatpush.bf16.msra.mxu0 %v707
        %1879 = vmatpush.bf16.msra.mxu0 %v703
        %1880 = vmatpush.bf16.msra.mxu0 %v699
        %1881 = vmatpush.bf16.msra.mxu0 %v695
        %1882 = vmatpush.bf16.msra.mxu0 %v691
        %1883 = vmatpush.bf16.msra.mxu0 %v687
        %1884 = vmatpush.bf16.msra.mxu0 %v683
        %1885 = vmatpush.bf16.msra.mxu0 %v679
        %1886 = vmatmul.bf16.gmra.mxu0 %v1821
        %v1887 = vpop.f32.mrf.mxu0
        %v1888 = vadd.f32 %v479, %v1887
        %v1889 = vpop.f32.mrf.mxu0
        %v1890 = vadd.f32 %v479, %v1889
        %1891 = vdwg.mxu0
        %1892 = vmatpush.bf16.msra.mxu0 %v739
        %1893 = vmatpush.bf16.msra.mxu0 %v735
        %1894 = vmatpush.bf16.msra.mxu0 %v731
        %1895 = vmatpush.bf16.msra.mxu0 %v727
        %1896 = vmatpush.bf16.msra.mxu0 %v723
        %1897 = vmatpush.bf16.msra.mxu0 %v719
        %1898 = vmatpush.bf16.msra.mxu0 %v715
        %1899 = vmatpush.bf16.msra.mxu0 %v711
        %1900 = vmatmul.bf16.gmra.mxu0 %v1043
        %v1901 = vpop.f32.mrf.mxu0
        %v1902 = vadd.f32 %v1888, %v1901
        %v1903 = vpop.f32.mrf.mxu0
        %v1904 = vadd.f32 %v1890, %v1903
        %1905 = vdwg.mxu0
        %1906 = vmatpush.bf16.msra.mxu0 %v708
        %1907 = vmatpush.bf16.msra.mxu0 %v704
        %1908 = vmatpush.bf16.msra.mxu0 %v700
        %1909 = vmatpush.bf16.msra.mxu0 %v696
        %1910 = vmatpush.bf16.msra.mxu0 %v692
        %1911 = vmatpush.bf16.msra.mxu0 %v688
        %1912 = vmatpush.bf16.msra.mxu0 %v684
        %1913 = vmatpush.bf16.msra.mxu0 %v680
        %1914 = vmatmul.bf16.gmra.mxu0 %v1821
        %v1915 = vpop.f32.mrf.mxu0
        %v1916 = vadd.f32 %v480, %v1915
        %v1917 = vpop.f32.mrf.mxu0
        %v1918 = vadd.f32 %v480, %v1917
        %1919 = vdwg.mxu0
        %1920 = vmatpush.bf16.msra.mxu0 %v740
        %1921 = vmatpush.bf16.msra.mxu0 %v736
        %1922 = vmatpush.bf16.msra.mxu0 %v732
        %1923 = vmatpush.bf16.msra.mxu0 %v728
        %1924 = vmatpush.bf16.msra.mxu0 %v724
        %1925 = vmatpush.bf16.msra.mxu0 %v720
        %1926 = vmatpush.bf16.msra.mxu0 %v716
        %1927 = vmatpush.bf16.msra.mxu0 %v712
        %1928 = vmatmul.bf16.gmra.mxu0 %v1043
        %v1929 = vpop.f32.mrf.mxu0
        %v1930 = vadd.f32 %v1916, %v1929
        %v1931 = vpop.f32.mrf.mxu0
        %v1932 = vadd.f32 %v1918, %v1931
        %1933 = vdwg.mxu0
        %v1934 = vxor.u32 %v1846, 2147483648
        %v1935 = vxor.u32 %v1848, 2147483648
        %v1936 = vmul.f32 %v1934, 1.442695
        %v1937 = vpow.pop %v1936
        %v1938 = vmul.f32 %v1935, 1.442695
        %v1939 = vpow.pop %v1938
        %v1940 = vadd.f32 %v1937, 1.0
        %v1941 = vadd.f32 %v1939, 1.0
        %v1942 = vrcp.pop %v1940
        %v1943 = vmul.f32 %v1940, %v1942
        %v1944 = vsub.f32 1.0, %v1943
        %v1945 = vmul.f32 %v1942, %v1944
        %v1946 = vadd.f32 %v1942, %v1945
        %vm1947 = vweird.f32 %v1940
        %vm1948 = vweird.f32 %v1942
        %vm1949 = vmor %vm1947, %vm1948
        %v1950 = vsel %vm1949, %v1942, %v1946
        %v1951 = vand.u32 2147483647, %v1940
        %vm1952 = vcmp.eq.f32.partialorder %v1951, 8.507059e+37
        %v1953 = vand.u32 %v1940, 2147483648
        %v1954 = vor.u32 1.1754944e-38, %v1953
        %v1955 = vsel %vm1952, %v1954, %v1950
        %v1956 = vmul.f32 1.0, %v1955
        %v1957 = vrcp.pop %v1941
        %v1958 = vmul.f32 %v1941, %v1957
        %v1959 = vsub.f32 1.0, %v1958
        %v1960 = vmul.f32 %v1957, %v1959
        %v1961 = vadd.f32 %v1957, %v1960
        %vm1962 = vweird.f32 %v1941
        %vm1963 = vweird.f32 %v1957
        %vm1964 = vmor %vm1962, %vm1963
        %v1965 = vsel %vm1964, %v1957, %v1961
        %v1966 = vand.u32 2147483647, %v1941
        %vm1967 = vcmp.eq.f32.partialorder %v1966, 8.507059e+37
        %v1968 = vand.u32 %v1941, 2147483648
        %v1969 = vor.u32 1.1754944e-38, %v1968
        %v1970 = vsel %vm1967, %v1969, %v1965
        %v1971 = vmul.f32 1.0, %v1970
        %v1972 = vxor.u32 %v1874, 2147483648
        %v1973 = vxor.u32 %v1876, 2147483648
        %v1974 = vmul.f32 %v1972, 1.442695
        %v1975 = vpow.pop %v1974
        %v1976 = vmul.f32 %v1973, 1.442695
        %v1977 = vpow.pop %v1976
        %v1978 = vadd.f32 %v1975, 1.0
        %v1979 = vadd.f32 %v1977, 1.0
        %v1980 = vrcp.pop %v1978
        %v1981 = vmul.f32 %v1978, %v1980
        %v1982 = vsub.f32 1.0, %v1981
        %v1983 = vmul.f32 %v1980, %v1982
        %v1984 = vadd.f32 %v1980, %v1983
        %vm1985 = vweird.f32 %v1978
        %vm1986 = vweird.f32 %v1980
        %vm1987 = vmor %vm1985, %vm1986
        %v1988 = vsel %vm1987, %v1980, %v1984
        %v1989 = vand.u32 2147483647, %v1978
        %vm1990 = vcmp.eq.f32.partialorder %v1989, 8.507059e+37
        %v1991 = vand.u32 %v1978, 2147483648
        %v1992 = vor.u32 1.1754944e-38, %v1991
        %v1993 = vsel %vm1990, %v1992, %v1988
        %v1994 = vmul.f32 1.0, %v1993
        %v1995 = vrcp.pop %v1979
        %v1996 = vmul.f32 %v1979, %v1995
        %v1997 = vsub.f32 1.0, %v1996
        %v1998 = vmul.f32 %v1995, %v1997
        %v1999 = vadd.f32 %v1995, %v1998
        %vm2000 = vweird.f32 %v1979
        %vm2001 = vweird.f32 %v1995
        %vm2002 = vmor %vm2000, %vm2001
        %v2003 = vsel %vm2002, %v1995, %v1999
        %v2004 = vand.u32 2147483647, %v1979
        %vm2005 = vcmp.eq.f32.partialorder %v2004, 8.507059e+37
        %v2006 = vand.u32 %v1979, 2147483648
        %v2007 = vor.u32 1.1754944e-38, %v2006
        %v2008 = vsel %vm2005, %v2007, %v2003
        %v2009 = vmul.f32 1.0, %v2008
        %v2010 = vtanh.pop %v1902
        %v2011 = vtanh.pop %v1904
        %v2012 = vxor.u32 %v1930, 2147483648
        %v2013 = vxor.u32 %v1932, 2147483648
        %v2014 = vmul.f32 %v2012, 1.442695
        %v2015 = vpow.pop %v2014
        %v2016 = vmul.f32 %v2013, 1.442695
        %v2017 = vpow.pop %v2016
        %v2018 = vadd.f32 %v2015, 1.0
        %v2019 = vadd.f32 %v2017, 1.0
        %v2020 = vrcp.pop %v2018
        %v2021 = vmul.f32 %v2018, %v2020
        %v2022 = vsub.f32 1.0, %v2021
        %v2023 = vmul.f32 %v2020, %v2022
        %v2024 = vadd.f32 %v2020, %v2023
        %vm2025 = vweird.f32 %v2018
        %vm2026 = vweird.f32 %v2020
        %vm2027 = vmor %vm2025, %vm2026
        %v2028 = vsel %vm2027, %v2020, %v2024
        %v2029 = vand.u32 2147483647, %v2018
        %vm2030 = vcmp.eq.f32.partialorder %v2029, 8.507059e+37
        %v2031 = vand.u32 %v2018, 2147483648
        %v2032 = vor.u32 1.1754944e-38, %v2031
        %v2033 = vsel %vm2030, %v2032, %v2028
        %v2034 = vmul.f32 1.0, %v2033
        %v2035 = vrcp.pop %v2019
        %v2036 = vmul.f32 %v2019, %v2035
        %v2037 = vsub.f32 1.0, %v2036
        %v2038 = vmul.f32 %v2035, %v2037
        %v2039 = vadd.f32 %v2035, %v2038
        %vm2040 = vweird.f32 %v2019
        %vm2041 = vweird.f32 %v2035
        %vm2042 = vmor %vm2040, %vm2041
        %v2043 = vsel %vm2042, %v2035, %v2039
        %v2044 = vand.u32 2147483647, %v2019
        %vm2045 = vcmp.eq.f32.partialorder %v2044, 8.507059e+37
        %v2046 = vand.u32 %v2019, 2147483648
        %v2047 = vor.u32 1.1754944e-38, %v2046
        %v2048 = vsel %vm2045, %v2047, %v2043
        %v2049 = vmul.f32 1.0, %v2048
        %v2050 = vmul.f32 %v1994, %v1037
        %v2051 = vmul.f32 %v2009, %v1038
        %v2052 = vmul.f32 %v1956, %v2010
        %v2053 = vmul.f32 %v1971, %v2011
        %v2054 = vadd.f32 %v2050, %v2052
        %v2055 = vadd.f32 %v2051, %v2053
        %v2056 = vtanh.pop %v2054
        %v2057 = vtanh.pop %v2055
        %v2058 = vmul.f32 %v2034, %v2056
        %v2059 = vmul.f32 %v2049, %v2057
        %v2060 = vpack.c.bf16 %v2059, %v2058
        %2061 = vmatpush.bf16.msra.mxu0 %v1111
        %2062 = vmatpush.bf16.msra.mxu0 %v1109
        %2063 = vmatpush.bf16.msra.mxu0 %v1107
        %2064 = vmatpush.bf16.msra.mxu0 %v1105
        %2065 = vmatpush.bf16.msra.mxu0 %v1103
        %2066 = vmatpush.bf16.msra.mxu0 %v1101
        %2067 = vmatpush.bf16.msra.mxu0 %v1099
        %2068 = vmatpush.bf16.msra.mxu0 %v1097
        %2069 = vmatmul.bf16.gmra.mxu0 %v2060
        %v2070 = vpop.f32.mrf.mxu0
        %v2071 = vadd.f32 %v1045, %v2070
        %v2072 = vpop.f32.mrf.mxu0
        %v2073 = vadd.f32 %v1045, %v2072
        %2074 = vdwg.mxu0
        %2075 = vmatpush.bf16.msra.mxu0 %v1112
        %2076 = vmatpush.bf16.msra.mxu0 %v1110
        %2077 = vmatpush.bf16.msra.mxu0 %v1108
        %2078 = vmatpush.bf16.msra.mxu0 %v1106
        %2079 = vmatpush.bf16.msra.mxu0 %v1104
        %2080 = vmatpush.bf16.msra.mxu0 %v1102
        %2081 = vmatpush.bf16.msra.mxu0 %v1100
        %2082 = vmatpush.bf16.msra.mxu0 %v1098
        %2083 = vmatmul.bf16.gmra.mxu0 %v2060
        %v2084 = vpop.f32.mrf.mxu0
        %v2085 = vadd.f32 %v1046, %v2084
        %v2086 = vpop.f32.mrf.mxu0
        %v2087 = vadd.f32 %v1046, %v2086
        %2088 = vdwg.mxu0
        %v2089 = vmul.f32 %v2085, 0.5
        %v2090 = vmul.f32 %v2087, 0.5
        %v2091 = vmul.f32 %v2089, 1.442695
        %v2092 = vpow.pop %v2091
        %v2093 = vmul.f32 %v2090, 1.442695
        %v2094 = vpow.pop %v2093
        %v2095 = vmul.f32 %v1819, %v2092
        %v2096 = vmul.f32 %v1820, %v2094
        %v2097 = vadd.f32 %v2071, %v2095
        %v2098 = vadd.f32 %v2073, %v2096
        %v2099 = vpack.c.bf16 %v2098, %v2097
        %v2100 = vpack.c.bf16 %v1735, %v1734
        %2101 = vmatpush.bf16.msra.mxu0 %v1398
        %2102 = vmatpush.bf16.msra.mxu0 %v1394
        %2103 = vmatpush.bf16.msra.mxu0 %v1390
        %2104 = vmatpush.bf16.msra.mxu0 %v1386
        %2105 = vmatpush.bf16.msra.mxu0 %v1382
        %2106 = vmatpush.bf16.msra.mxu0 %v1378
        %2107 = vmatpush.bf16.msra.mxu0 %v1374
        %2108 = vmatpush.bf16.msra.mxu0 %v1370
        %2109 = vmatmul.bf16.gmra.mxu0 %v2099
        %v2110 = vpop.f32.mrf.mxu0
        %v2111 = vadd.f32 %v1170, %v2110
        %v2112 = vpop.f32.mrf.mxu0
        %v2113 = vadd.f32 %v1170, %v2112
        %2114 = vdwg.mxu0
        %2115 = vmatpush.bf16.msra.mxu0 %v1430
        %2116 = vmatpush.bf16.msra.mxu0 %v1426
        %2117 = vmatpush.bf16.msra.mxu0 %v1422
        %2118 = vmatpush.bf16.msra.mxu0 %v1418
        %2119 = vmatpush.bf16.msra.mxu0 %v1414
        %2120 = vmatpush.bf16.msra.mxu0 %v1410
        %2121 = vmatpush.bf16.msra.mxu0 %v1406
        %2122 = vmatpush.bf16.msra.mxu0 %v1402
        %2123 = vmatmul.bf16.gmra.mxu0 %v2100
        %v2124 = vpop.f32.mrf.mxu0
        %v2125 = vadd.f32 %v2111, %v2124
        %v2126 = vpop.f32.mrf.mxu0
        %v2127 = vadd.f32 %v2113, %v2126
        %2128 = vdwg.mxu0
        %2129 = vmatpush.bf16.msra.mxu0 %v1399
        %2130 = vmatpush.bf16.msra.mxu0 %v1395
        %2131 = vmatpush.bf16.msra.mxu0 %v1391
        %2132 = vmatpush.bf16.msra.mxu0 %v1387
        %2133 = vmatpush.bf16.msra.mxu0 %v1383
        %2134 = vmatpush.bf16.msra.mxu0 %v1379
        %2135 = vmatpush.bf16.msra.mxu0 %v1375
        %2136 = vmatpush.bf16.msra.mxu0 %v1371
        %2137 = vmatmul.bf16.gmra.mxu0 %v2099
        %v2138 = vpop.f32.mrf.mxu0
        %v2139 = vadd.f32 %v1171, %v2138
        %v2140 = vpop.f32.mrf.mxu0
        %v2141 = vadd.f32 %v1171, %v2140
        %2142 = vdwg.mxu0
        %2143 = vmatpush.bf16.msra.mxu0 %v1431
        %2144 = vmatpush.bf16.msra.mxu0 %v1427
        %2145 = vmatpush.bf16.msra.mxu0 %v1423
        %2146 = vmatpush.bf16.msra.mxu0 %v1419
        %2147 = vmatpush.bf16.msra.mxu0 %v1415
        %2148 = vmatpush.bf16.msra.mxu0 %v1411
        %2149 = vmatpush.bf16.msra.mxu0 %v1407
        %2150 = vmatpush.bf16.msra.mxu0 %v1403
        %2151 = vmatmul.bf16.gmra.mxu0 %v2100
        %v2152 = vpop.f32.mrf.mxu0
        %v2153 = vadd.f32 %v2139, %v2152
        %v2154 = vpop.f32.mrf.mxu0
        %v2155 = vadd.f32 %v2141, %v2154
        %2156 = vdwg.mxu0
        %2157 = vmatpush.bf16.msra.mxu0 %v1400
        %2158 = vmatpush.bf16.msra.mxu0 %v1396
        %2159 = vmatpush.bf16.msra.mxu0 %v1392
        %2160 = vmatpush.bf16.msra.mxu0 %v1388
        %2161 = vmatpush.bf16.msra.mxu0 %v1384
        %2162 = vmatpush.bf16.msra.mxu0 %v1380
        %2163 = vmatpush.bf16.msra.mxu0 %v1376
        %2164 = vmatpush.bf16.msra.mxu0 %v1372
        %2165 = vmatmul.bf16.gmra.mxu0 %v2099
        %v2166 = vpop.f32.mrf.mxu0
        %v2167 = vadd.f32 %v1172, %v2166
        %v2168 = vpop.f32.mrf.mxu0
        %v2169 = vadd.f32 %v1172, %v2168
        %2170 = vdwg.mxu0
        %2171 = vmatpush.bf16.msra.mxu0 %v1432
        %2172 = vmatpush.bf16.msra.mxu0 %v1428
        %2173 = vmatpush.bf16.msra.mxu0 %v1424
        %2174 = vmatpush.bf16.msra.mxu0 %v1420
        %2175 = vmatpush.bf16.msra.mxu0 %v1416
        %2176 = vmatpush.bf16.msra.mxu0 %v1412
        %2177 = vmatpush.bf16.msra.mxu0 %v1408
        %2178 = vmatpush.bf16.msra.mxu0 %v1404
        %2179 = vmatmul.bf16.gmra.mxu0 %v2100
        %v2180 = vpop.f32.mrf.mxu0
        %v2181 = vadd.f32 %v2167, %v2180
        %v2182 = vpop.f32.mrf.mxu0
        %v2183 = vadd.f32 %v2169, %v2182
        %2184 = vdwg.mxu0
        %2185 = vmatpush.bf16.msra.mxu0 %v1401
        %2186 = vmatpush.bf16.msra.mxu0 %v1397
        %2187 = vmatpush.bf16.msra.mxu0 %v1393
        %2188 = vmatpush.bf16.msra.mxu0 %v1389
        %2189 = vmatpush.bf16.msra.mxu0 %v1385
        %2190 = vmatpush.bf16.msra.mxu0 %v1381
        %2191 = vmatpush.bf16.msra.mxu0 %v1377
        %2192 = vmatpush.bf16.msra.mxu0 %v1373
        %2193 = vmatmul.bf16.gmra.mxu0 %v2099
        %v2194 = vpop.f32.mrf.mxu0
        %v2195 = vadd.f32 %v1173, %v2194
        %v2196 = vpop.f32.mrf.mxu0
        %v2197 = vadd.f32 %v1173, %v2196
        %2198 = vdwg.mxu0
        %2199 = vmatpush.bf16.msra.mxu0 %v1433
        %2200 = vmatpush.bf16.msra.mxu0 %v1429
        %2201 = vmatpush.bf16.msra.mxu0 %v1425
        %2202 = vmatpush.bf16.msra.mxu0 %v1421
        %2203 = vmatpush.bf16.msra.mxu0 %v1417
        %2204 = vmatpush.bf16.msra.mxu0 %v1413
        %2205 = vmatpush.bf16.msra.mxu0 %v1409
        %2206 = vmatpush.bf16.msra.mxu0 %v1405
        %2207 = vmatmul.bf16.gmra.mxu0 %v2100
        %v2208 = vpop.f32.mrf.mxu0
        %v2209 = vadd.f32 %v2195, %v2208
        %v2210 = vpop.f32.mrf.mxu0
        %v2211 = vadd.f32 %v2197, %v2210
        %2212 = vdwg.mxu0
        %v2213 = vxor.u32 %v2125, 2147483648
        %v2214 = vxor.u32 %v2127, 2147483648
        %v2215 = vmul.f32 %v2213, 1.442695
        %v2216 = vpow.pop %v2215
        %v2217 = vmul.f32 %v2214, 1.442695
        %v2218 = vpow.pop %v2217
        %v2219 = vadd.f32 %v2216, 1.0
        %v2220 = vadd.f32 %v2218, 1.0
        %v2221 = vrcp.pop %v2219
        %v2222 = vmul.f32 %v2219, %v2221
        %v2223 = vsub.f32 1.0, %v2222
        %v2224 = vmul.f32 %v2221, %v2223
        %v2225 = vadd.f32 %v2221, %v2224
        %vm2226 = vweird.f32 %v2219
        %vm2227 = vweird.f32 %v2221
        %vm2228 = vmor %vm2226, %vm2227
        %v2229 = vsel %vm2228, %v2221, %v2225
        %v2230 = vand.u32 2147483647, %v2219
        %vm2231 = vcmp.eq.f32.partialorder %v2230, 8.507059e+37
        %v2232 = vand.u32 %v2219, 2147483648
        %v2233 = vor.u32 1.1754944e-38, %v2232
        %v2234 = vsel %vm2231, %v2233, %v2229
        %v2235 = vmul.f32 1.0, %v2234
        %v2236 = vrcp.pop %v2220
        %v2237 = vmul.f32 %v2220, %v2236
        %v2238 = vsub.f32 1.0, %v2237
        %v2239 = vmul.f32 %v2236, %v2238
        %v2240 = vadd.f32 %v2236, %v2239
        %vm2241 = vweird.f32 %v2220
        %vm2242 = vweird.f32 %v2236
        %vm2243 = vmor %vm2241, %vm2242
        %v2244 = vsel %vm2243, %v2236, %v2240
        %v2245 = vand.u32 2147483647, %v2220
        %vm2246 = vcmp.eq.f32.partialorder %v2245, 8.507059e+37
        %v2247 = vand.u32 %v2220, 2147483648
        %v2248 = vor.u32 1.1754944e-38, %v2247
        %v2249 = vsel %vm2246, %v2248, %v2244
        %v2250 = vmul.f32 1.0, %v2249
        %v2251 = vxor.u32 %v2153, 2147483648
        %v2252 = vxor.u32 %v2155, 2147483648
        %v2253 = vmul.f32 %v2251, 1.442695
        %v2254 = vpow.pop %v2253
        %v2255 = vmul.f32 %v2252, 1.442695
        %v2256 = vpow.pop %v2255
        %v2257 = vadd.f32 %v2254, 1.0
        %v2258 = vadd.f32 %v2256, 1.0
        %v2259 = vrcp.pop %v2257
        %v2260 = vmul.f32 %v2257, %v2259
        %v2261 = vsub.f32 1.0, %v2260
        %v2262 = vmul.f32 %v2259, %v2261
        %v2263 = vadd.f32 %v2259, %v2262
        %vm2264 = vweird.f32 %v2257
        %vm2265 = vweird.f32 %v2259
        %vm2266 = vmor %vm2264, %vm2265
        %v2267 = vsel %vm2266, %v2259, %v2263
        %v2268 = vand.u32 2147483647, %v2257
        %vm2269 = vcmp.eq.f32.partialorder %v2268, 8.507059e+37
        %v2270 = vand.u32 %v2257, 2147483648
        %v2271 = vor.u32 1.1754944e-38, %v2270
        %v2272 = vsel %vm2269, %v2271, %v2267
        %v2273 = vmul.f32 1.0, %v2272
        %v2274 = vrcp.pop %v2258
        %v2275 = vmul.f32 %v2258, %v2274
        %v2276 = vsub.f32 1.0, %v2275
        %v2277 = vmul.f32 %v2274, %v2276
        %v2278 = vadd.f32 %v2274, %v2277
        %vm2279 = vweird.f32 %v2258
        %vm2280 = vweird.f32 %v2274
        %vm2281 = vmor %vm2279, %vm2280
        %v2282 = vsel %vm2281, %v2274, %v2278
        %v2283 = vand.u32 2147483647, %v2258
        %vm2284 = vcmp.eq.f32.partialorder %v2283, 8.507059e+37
        %v2285 = vand.u32 %v2258, 2147483648
        %v2286 = vor.u32 1.1754944e-38, %v2285
        %v2287 = vsel %vm2284, %v2286, %v2282
        %v2288 = vmul.f32 1.0, %v2287
        %v2289 = vtanh.pop %v2181
        %v2290 = vtanh.pop %v2183
        %v2291 = vxor.u32 %v2209, 2147483648
        %v2292 = vxor.u32 %v2211, 2147483648
        %v2293 = vmul.f32 %v2291, 1.442695
        %v2294 = vpow.pop %v2293
        %v2295 = vmul.f32 %v2292, 1.442695
        %v2296 = vpow.pop %v2295
        %v2297 = vadd.f32 %v2294, 1.0
        %v2298 = vadd.f32 %v2296, 1.0
        %v2299 = vrcp.pop %v2297
        %v2300 = vmul.f32 %v2297, %v2299
        %v2301 = vsub.f32 1.0, %v2300
        %v2302 = vmul.f32 %v2299, %v2301
        %v2303 = vadd.f32 %v2299, %v2302
        %vm2304 = vweird.f32 %v2297
        %vm2305 = vweird.f32 %v2299
        %vm2306 = vmor %vm2304, %vm2305
        %v2307 = vsel %vm2306, %v2299, %v2303
        %v2308 = vand.u32 2147483647, %v2297
        %vm2309 = vcmp.eq.f32.partialorder %v2308, 8.507059e+37
        %v2310 = vand.u32 %v2297, 2147483648
        %v2311 = vor.u32 1.1754944e-38, %v2310
        %v2312 = vsel %vm2309, %v2311, %v2307
        %v2313 = vmul.f32 1.0, %v2312
        %v2314 = vrcp.pop %v2298
        %v2315 = vmul.f32 %v2298, %v2314
        %v2316 = vsub.f32 1.0, %v2315
        %v2317 = vmul.f32 %v2314, %v2316
        %v2318 = vadd.f32 %v2314, %v2317
        %vm2319 = vweird.f32 %v2298
        %vm2320 = vweird.f32 %v2314
        %vm2321 = vmor %vm2319, %vm2320
        %v2322 = vsel %vm2321, %v2314, %v2318
        %v2323 = vand.u32 2147483647, %v2298
        %vm2324 = vcmp.eq.f32.partialorder %v2323, 8.507059e+37
        %v2325 = vand.u32 %v2298, 2147483648
        %v2326 = vor.u32 1.1754944e-38, %v2325
        %v2327 = vsel %vm2324, %v2326, %v2322
        %v2328 = vmul.f32 1.0, %v2327
        %v2329 = vmul.f32 %v2273, %v1730
        %v2330 = vmul.f32 %v2288, %v1731
        %v2331 = vmul.f32 %v2235, %v2289
        %v2332 = vmul.f32 %v2250, %v2290
        %v2333 = vadd.f32 %v2329, %v2331
        %v2334 = vadd.f32 %v2330, %v2332
        %v2335 = vtanh.pop %v2333
        %v2336 = vtanh.pop %v2334
        %v2337 = vmul.f32 %v2313, %v2335
        %v2338 = vmul.f32 %v2328, %v2336
        %v2339 = vmax.f32 %v2337, 0.0
        %v2340 = vmax.f32 %v2338, 0.0
        %v2341 = vand.u32 2147483647, %v2337
        %v2342 = vand.u32 2147483647, %v2338
        %v2343 = vsub.f32 0.0, %v2341
        %v2344 = vsub.f32 0.0, %v2342
        %v2345 = vmul.f32 %v2343, 1.442695
        %v2346 = vpow.pop %v2345
        %v2347 = vmul.f32 %v2344, 1.442695
        %v2348 = vpow.pop %v2347
        %v2349 = vadd.f32 %v2346, 1.0
        %v2350 = vadd.f32 %v2348, 1.0
        %v2351 = vlog2.pop %v2349
        %v2352 = vmul.f32 %v2351, 0.6931472
        %v2353 = vlog2.pop %v2350
        %v2354 = vmul.f32 %v2353, 0.6931472
        %v2355 = vadd.f32 %v2339, %v2352
        %v2356 = vadd.f32 %v2340, %v2354
        %v2357 = vpack.c.bf16 %v2356, %v2355
        %2358 = vmatpush.bf16.msra.mxu0 %v1794
        %2359 = vmatpush.bf16.msra.mxu0 %v1793
        %2360 = vmatpush.bf16.msra.mxu0 %v1792
        %2361 = vmatpush.bf16.msra.mxu0 %v1791
        %2362 = vmatpush.bf16.msra.mxu0 %v1790
        %2363 = vmatpush.bf16.msra.mxu0 %v1789
        %2364 = vmatpush.bf16.msra.mxu0 %v1788
        %2365 = vmatpush.bf16.msra.mxu0 %v1787
        %2366 = vmatmul.bf16.gmra.mxu0 %v2357
        %v2367 = vpop.f32.mrf.mxu0
        %v2368 = vadd.f32 %v461, %v2367
        %v2369 = vpop.f32.mrf.mxu0
        %v2370 = vadd.f32 %v461, %v2369
        %2371 = vdwg.mxu0
        %v2372 = vld [vmem:[%s242 + $0x20] sm:$0xff]
        %v2373 = vld [vmem:[%s242 + $0x50] sm:$0xff]
        %v2374 = vld [vmem:[%s242 + $0x28] sm:$0xff]
        %v2375 = vld [vmem:[%s242 + $0x58] sm:$0xff]
        %v2376 = vpack.c.bf16 %v2373, %v2372
        %2377 = vmatpush.bf16.msra.mxu0 %v705
        %2378 = vmatpush.bf16.msra.mxu0 %v701
        %2379 = vmatpush.bf16.msra.mxu0 %v697
        %2380 = vmatpush.bf16.msra.mxu0 %v693
        %2381 = vmatpush.bf16.msra.mxu0 %v689
        %2382 = vmatpush.bf16.msra.mxu0 %v685
        %2383 = vmatpush.bf16.msra.mxu0 %v681
        %2384 = vmatpush.bf16.msra.mxu0 %v677
        %2385 = vmatmul.bf16.gmra.mxu0 %v2376
        %v2386 = vpop.f32.mrf.mxu0
        %v2387 = vadd.f32 %v477, %v2386
        %v2388 = vpop.f32.mrf.mxu0
        %v2389 = vadd.f32 %v477, %v2388
        %2390 = vdwg.mxu0
        %2391 = vmatpush.bf16.msra.mxu0 %v737
        %2392 = vmatpush.bf16.msra.mxu0 %v733
        %2393 = vmatpush.bf16.msra.mxu0 %v729
        %2394 = vmatpush.bf16.msra.mxu0 %v725
        %2395 = vmatpush.bf16.msra.mxu0 %v721
        %2396 = vmatpush.bf16.msra.mxu0 %v717
        %2397 = vmatpush.bf16.msra.mxu0 %v713
        %2398 = vmatpush.bf16.msra.mxu0 %v709
        %2399 = vmatmul.bf16.gmra.mxu0 %v2060
        %v2400 = vpop.f32.mrf.mxu0
        %v2401 = vadd.f32 %v2387, %v2400
        %v2402 = vpop.f32.mrf.mxu0
        %v2403 = vadd.f32 %v2389, %v2402
        %2404 = vdwg.mxu0
        %2405 = vmatpush.bf16.msra.mxu0 %v706
        %2406 = vmatpush.bf16.msra.mxu0 %v702
        %2407 = vmatpush.bf16.msra.mxu0 %v698
        %2408 = vmatpush.bf16.msra.mxu0 %v694
        %2409 = vmatpush.bf16.msra.mxu0 %v690
        %2410 = vmatpush.bf16.msra.mxu0 %v686
        %2411 = vmatpush.bf16.msra.mxu0 %v682
        %2412 = vmatpush.bf16.msra.mxu0 %v678
        %2413 = vmatmul.bf16.gmra.mxu0 %v2376
        %v2414 = vpop.f32.mrf.mxu0
        %v2415 = vadd.f32 %v478, %v2414
        %v2416 = vpop.f32.mrf.mxu0
        %v2417 = vadd.f32 %v478, %v2416
        %2418 = vdwg.mxu0
        %2419 = vmatpush.bf16.msra.mxu0 %v738
        %2420 = vmatpush.bf16.msra.mxu0 %v734
        %2421 = vmatpush.bf16.msra.mxu0 %v730
        %2422 = vmatpush.bf16.msra.mxu0 %v726
        %2423 = vmatpush.bf16.msra.mxu0 %v722
        %2424 = vmatpush.bf16.msra.mxu0 %v718
        %2425 = vmatpush.bf16.msra.mxu0 %v714
        %2426 = vmatpush.bf16.msra.mxu0 %v710
        %2427 = vmatmul.bf16.gmra.mxu0 %v2060
        %v2428 = vpop.f32.mrf.mxu0
        %v2429 = vadd.f32 %v2415, %v2428
        %v2430 = vpop.f32.mrf.mxu0
        %v2431 = vadd.f32 %v2417, %v2430
        %2432 = vdwg.mxu0
        %2433 = vmatpush.bf16.msra.mxu0 %v707
        %2434 = vmatpush.bf16.msra.mxu0 %v703
        %2435 = vmatpush.bf16.msra.mxu0 %v699
        %2436 = vmatpush.bf16.msra.mxu0 %v695
        %2437 = vmatpush.bf16.msra.mxu0 %v691
        %2438 = vmatpush.bf16.msra.mxu0 %v687
        %2439 = vmatpush.bf16.msra.mxu0 %v683
        %2440 = vmatpush.bf16.msra.mxu0 %v679
        %2441 = vmatmul.bf16.gmra.mxu0 %v2376
        %v2442 = vpop.f32.mrf.mxu0
        %v2443 = vadd.f32 %v479, %v2442
        %v2444 = vpop.f32.mrf.mxu0
        %v2445 = vadd.f32 %v479, %v2444
        %2446 = vdwg.mxu0
        %2447 = vmatpush.bf16.msra.mxu0 %v739
        %2448 = vmatpush.bf16.msra.mxu0 %v735
        %2449 = vmatpush.bf16.msra.mxu0 %v731
        %2450 = vmatpush.bf16.msra.mxu0 %v727
        %2451 = vmatpush.bf16.msra.mxu0 %v723
        %2452 = vmatpush.bf16.msra.mxu0 %v719
        %2453 = vmatpush.bf16.msra.mxu0 %v715
        %2454 = vmatpush.bf16.msra.mxu0 %v711
        %2455 = vmatmul.bf16.gmra.mxu0 %v2060
        %v2456 = vpop.f32.mrf.mxu0
        %v2457 = vadd.f32 %v2443, %v2456
        %v2458 = vpop.f32.mrf.mxu0
        %v2459 = vadd.f32 %v2445, %v2458
        %2460 = vdwg.mxu0
        %2461 = vmatpush.bf16.msra.mxu0 %v708
        %2462 = vmatpush.bf16.msra.mxu0 %v704
        %2463 = vmatpush.bf16.msra.mxu0 %v700
        %2464 = vmatpush.bf16.msra.mxu0 %v696
        %2465 = vmatpush.bf16.msra.mxu0 %v692
        %2466 = vmatpush.bf16.msra.mxu0 %v688
        %2467 = vmatpush.bf16.msra.mxu0 %v684
        %2468 = vmatpush.bf16.msra.mxu0 %v680
        %2469 = vmatmul.bf16.gmra.mxu0 %v2376
        %v2470 = vpop.f32.mrf.mxu0
        %v2471 = vadd.f32 %v480, %v2470
        %v2472 = vpop.f32.mrf.mxu0
        %v2473 = vadd.f32 %v480, %v2472
        %2474 = vdwg.mxu0
        %2475 = vmatpush.bf16.msra.mxu0 %v740
        %2476 = vmatpush.bf16.msra.mxu0 %v736
        %2477 = vmatpush.bf16.msra.mxu0 %v732
        %2478 = vmatpush.bf16.msra.mxu0 %v728
        %2479 = vmatpush.bf16.msra.mxu0 %v724
        %2480 = vmatpush.bf16.msra.mxu0 %v720
        %2481 = vmatpush.bf16.msra.mxu0 %v716
        %2482 = vmatpush.bf16.msra.mxu0 %v712
        %2483 = vmatmul.bf16.gmra.mxu0 %v2060
        %v2484 = vpop.f32.mrf.mxu0
        %v2485 = vadd.f32 %v2471, %v2484
        %v2486 = vpop.f32.mrf.mxu0
        %v2487 = vadd.f32 %v2473, %v2486
        %2488 = vdwg.mxu0
        %v2489 = vxor.u32 %v2401, 2147483648
        %v2490 = vxor.u32 %v2403, 2147483648
        %v2491 = vmul.f32 %v2489, 1.442695
        %v2492 = vpow.pop %v2491
        %v2493 = vmul.f32 %v2490, 1.442695
        %v2494 = vpow.pop %v2493
        %v2495 = vadd.f32 %v2492, 1.0
        %v2496 = vadd.f32 %v2494, 1.0
        %v2497 = vrcp.pop %v2495
        %v2498 = vmul.f32 %v2495, %v2497
        %v2499 = vsub.f32 1.0, %v2498
        %v2500 = vmul.f32 %v2497, %v2499
        %v2501 = vadd.f32 %v2497, %v2500
        %vm2502 = vweird.f32 %v2495
        %vm2503 = vweird.f32 %v2497
        %vm2504 = vmor %vm2502, %vm2503
        %v2505 = vsel %vm2504, %v2497, %v2501
        %v2506 = vand.u32 2147483647, %v2495
        %vm2507 = vcmp.eq.f32.partialorder %v2506, 8.507059e+37
        %v2508 = vand.u32 %v2495, 2147483648
        %v2509 = vor.u32 1.1754944e-38, %v2508
        %v2510 = vsel %vm2507, %v2509, %v2505
        %v2511 = vmul.f32 1.0, %v2510
        %v2512 = vrcp.pop %v2496
        %v2513 = vmul.f32 %v2496, %v2512
        %v2514 = vsub.f32 1.0, %v2513
        %v2515 = vmul.f32 %v2512, %v2514
        %v2516 = vadd.f32 %v2512, %v2515
        %vm2517 = vweird.f32 %v2496
        %vm2518 = vweird.f32 %v2512
        %vm2519 = vmor %vm2517, %vm2518
        %v2520 = vsel %vm2519, %v2512, %v2516
        %v2521 = vand.u32 2147483647, %v2496
        %vm2522 = vcmp.eq.f32.partialorder %v2521, 8.507059e+37
        %v2523 = vand.u32 %v2496, 2147483648
        %v2524 = vor.u32 1.1754944e-38, %v2523
        %v2525 = vsel %vm2522, %v2524, %v2520
        %v2526 = vmul.f32 1.0, %v2525
        %v2527 = vxor.u32 %v2429, 2147483648
        %v2528 = vxor.u32 %v2431, 2147483648
        %v2529 = vmul.f32 %v2527, 1.442695
        %v2530 = vpow.pop %v2529
        %v2531 = vmul.f32 %v2528, 1.442695
        %v2532 = vpow.pop %v2531
        %v2533 = vadd.f32 %v2530, 1.0
        %v2534 = vadd.f32 %v2532, 1.0
        %v2535 = vrcp.pop %v2533
        %v2536 = vmul.f32 %v2533, %v2535
        %v2537 = vsub.f32 1.0, %v2536
        %v2538 = vmul.f32 %v2535, %v2537
        %v2539 = vadd.f32 %v2535, %v2538
        %vm2540 = vweird.f32 %v2533
        %vm2541 = vweird.f32 %v2535
        %vm2542 = vmor %vm2540, %vm2541
        %v2543 = vsel %vm2542, %v2535, %v2539
        %v2544 = vand.u32 2147483647, %v2533
        %vm2545 = vcmp.eq.f32.partialorder %v2544, 8.507059e+37
        %v2546 = vand.u32 %v2533, 2147483648
        %v2547 = vor.u32 1.1754944e-38, %v2546
        %v2548 = vsel %vm2545, %v2547, %v2543
        %v2549 = vmul.f32 1.0, %v2548
        %v2550 = vrcp.pop %v2534
        %v2551 = vmul.f32 %v2534, %v2550
        %v2552 = vsub.f32 1.0, %v2551
        %v2553 = vmul.f32 %v2550, %v2552
        %v2554 = vadd.f32 %v2550, %v2553
        %vm2555 = vweird.f32 %v2534
        %vm2556 = vweird.f32 %v2550
        %vm2557 = vmor %vm2555, %vm2556
        %v2558 = vsel %vm2557, %v2550, %v2554
        %v2559 = vand.u32 2147483647, %v2534
        %vm2560 = vcmp.eq.f32.partialorder %v2559, 8.507059e+37
        %v2561 = vand.u32 %v2534, 2147483648
        %v2562 = vor.u32 1.1754944e-38, %v2561
        %v2563 = vsel %vm2560, %v2562, %v2558
        %v2564 = vmul.f32 1.0, %v2563
        %v2565 = vtanh.pop %v2457
        %v2566 = vtanh.pop %v2459
        %v2567 = vxor.u32 %v2485, 2147483648
        %v2568 = vxor.u32 %v2487, 2147483648
        %v2569 = vmul.f32 %v2567, 1.442695
        %v2570 = vpow.pop %v2569
        %v2571 = vmul.f32 %v2568, 1.442695
        %v2572 = vpow.pop %v2571
        %v2573 = vadd.f32 %v2570, 1.0
        %v2574 = vadd.f32 %v2572, 1.0
        %v2575 = vrcp.pop %v2573
        %v2576 = vmul.f32 %v2573, %v2575
        %v2577 = vsub.f32 1.0, %v2576
        %v2578 = vmul.f32 %v2575, %v2577
        %v2579 = vadd.f32 %v2575, %v2578
        %vm2580 = vweird.f32 %v2573
        %vm2581 = vweird.f32 %v2575
        %vm2582 = vmor %vm2580, %vm2581
        %v2583 = vsel %vm2582, %v2575, %v2579
        %v2584 = vand.u32 2147483647, %v2573
        %vm2585 = vcmp.eq.f32.partialorder %v2584, 8.507059e+37
        %v2586 = vand.u32 %v2573, 2147483648
        %v2587 = vor.u32 1.1754944e-38, %v2586
        %v2588 = vsel %vm2585, %v2587, %v2583
        %v2589 = vmul.f32 1.0, %v2588
        %v2590 = vrcp.pop %v2574
        %v2591 = vmul.f32 %v2574, %v2590
        %v2592 = vsub.f32 1.0, %v2591
        %v2593 = vmul.f32 %v2590, %v2592
        %v2594 = vadd.f32 %v2590, %v2593
        %vm2595 = vweird.f32 %v2574
        %vm2596 = vweird.f32 %v2590
        %vm2597 = vmor %vm2595, %vm2596
        %v2598 = vsel %vm2597, %v2590, %v2594
        %v2599 = vand.u32 2147483647, %v2574
        %vm2600 = vcmp.eq.f32.partialorder %v2599, 8.507059e+37
        %v2601 = vand.u32 %v2574, 2147483648
        %v2602 = vor.u32 1.1754944e-38, %v2601
        %v2603 = vsel %vm2600, %v2602, %v2598
        %v2604 = vmul.f32 1.0, %v2603
        %v2605 = vmul.f32 %v2549, %v2054
        %v2606 = vmul.f32 %v2564, %v2055
        %v2607 = vmul.f32 %v2511, %v2565
        %v2608 = vmul.f32 %v2526, %v2566
        %v2609 = vadd.f32 %v2605, %v2607
        %v2610 = vadd.f32 %v2606, %v2608
        %v2611 = vtanh.pop %v2609
        %v2612 = vtanh.pop %v2610
        %v2613 = vmul.f32 %v2589, %v2611
        %v2614 = vmul.f32 %v2604, %v2612
        %v2615 = vpack.c.bf16 %v2614, %v2613
        %2616 = vmatpush.bf16.msra.mxu0 %v1111
        %2617 = vmatpush.bf16.msra.mxu0 %v1109
        %2618 = vmatpush.bf16.msra.mxu0 %v1107
        %2619 = vmatpush.bf16.msra.mxu0 %v1105
        %2620 = vmatpush.bf16.msra.mxu0 %v1103
        %2621 = vmatpush.bf16.msra.mxu0 %v1101
        %2622 = vmatpush.bf16.msra.mxu0 %v1099
        %2623 = vmatpush.bf16.msra.mxu0 %v1097
        %2624 = vmatmul.bf16.gmra.mxu0 %v2615
        %v2625 = vpop.f32.mrf.mxu0
        %v2626 = vadd.f32 %v1045, %v2625
        %v2627 = vpop.f32.mrf.mxu0
        %v2628 = vadd.f32 %v1045, %v2627
        %2629 = vdwg.mxu0
        %2630 = vmatpush.bf16.msra.mxu0 %v1112
        %2631 = vmatpush.bf16.msra.mxu0 %v1110
        %2632 = vmatpush.bf16.msra.mxu0 %v1108
        %2633 = vmatpush.bf16.msra.mxu0 %v1106
        %2634 = vmatpush.bf16.msra.mxu0 %v1104
        %2635 = vmatpush.bf16.msra.mxu0 %v1102
        %2636 = vmatpush.bf16.msra.mxu0 %v1100
        %2637 = vmatpush.bf16.msra.mxu0 %v1098
        %2638 = vmatmul.bf16.gmra.mxu0 %v2615
        %v2639 = vpop.f32.mrf.mxu0
        %v2640 = vadd.f32 %v1046, %v2639
        %v2641 = vpop.f32.mrf.mxu0
        %v2642 = vadd.f32 %v1046, %v2641
        %2643 = vdwg.mxu0
        %v2644 = vmul.f32 %v2640, 0.5
        %v2645 = vmul.f32 %v2642, 0.5
        %v2646 = vmul.f32 %v2644, 1.442695
        %v2647 = vpow.pop %v2646
        %v2648 = vmul.f32 %v2645, 1.442695
        %v2649 = vpow.pop %v2648
        %v2650 = vmul.f32 %v2374, %v2647
        %v2651 = vmul.f32 %v2375, %v2649
        %v2652 = vadd.f32 %v2626, %v2650
        %v2653 = vadd.f32 %v2628, %v2651
        %v2654 = vpack.c.bf16 %v2653, %v2652
        %v2655 = vpack.c.bf16 %v2338, %v2337
        %2656 = vmatpush.bf16.msra.mxu0 %v1398
        %2657 = vmatpush.bf16.msra.mxu0 %v1394
        %2658 = vmatpush.bf16.msra.mxu0 %v1390
        %2659 = vmatpush.bf16.msra.mxu0 %v1386
        %2660 = vmatpush.bf16.msra.mxu0 %v1382
        %2661 = vmatpush.bf16.msra.mxu0 %v1378
        %2662 = vmatpush.bf16.msra.mxu0 %v1374
        %2663 = vmatpush.bf16.msra.mxu0 %v1370
        %2664 = vmatmul.bf16.gmra.mxu0 %v2654
        %v2665 = vpop.f32.mrf.mxu0
        %v2666 = vadd.f32 %v1170, %v2665
        %v2667 = vpop.f32.mrf.mxu0
        %v2668 = vadd.f32 %v1170, %v2667
        %2669 = vdwg.mxu0
        %2670 = vmatpush.bf16.msra.mxu0 %v1430
        %2671 = vmatpush.bf16.msra.mxu0 %v1426
        %2672 = vmatpush.bf16.msra.mxu0 %v1422
        %2673 = vmatpush.bf16.msra.mxu0 %v1418
        %2674 = vmatpush.bf16.msra.mxu0 %v1414
        %2675 = vmatpush.bf16.msra.mxu0 %v1410
        %2676 = vmatpush.bf16.msra.mxu0 %v1406
        %2677 = vmatpush.bf16.msra.mxu0 %v1402
        %2678 = vmatmul.bf16.gmra.mxu0 %v2655
        %v2679 = vpop.f32.mrf.mxu0
        %v2680 = vadd.f32 %v2666, %v2679
        %v2681 = vpop.f32.mrf.mxu0
        %v2682 = vadd.f32 %v2668, %v2681
        %2683 = vdwg.mxu0
        %2684 = vmatpush.bf16.msra.mxu0 %v1399
        %2685 = vmatpush.bf16.msra.mxu0 %v1395
        %2686 = vmatpush.bf16.msra.mxu0 %v1391
        %2687 = vmatpush.bf16.msra.mxu0 %v1387
        %2688 = vmatpush.bf16.msra.mxu0 %v1383
        %2689 = vmatpush.bf16.msra.mxu0 %v1379
        %2690 = vmatpush.bf16.msra.mxu0 %v1375
        %2691 = vmatpush.bf16.msra.mxu0 %v1371
        %2692 = vmatmul.bf16.gmra.mxu0 %v2654
        %v2693 = vpop.f32.mrf.mxu0
        %v2694 = vadd.f32 %v1171, %v2693
        %v2695 = vpop.f32.mrf.mxu0
        %v2696 = vadd.f32 %v1171, %v2695
        %2697 = vdwg.mxu0
        %2698 = vmatpush.bf16.msra.mxu0 %v1431
        %2699 = vmatpush.bf16.msra.mxu0 %v1427
        %2700 = vmatpush.bf16.msra.mxu0 %v1423
        %2701 = vmatpush.bf16.msra.mxu0 %v1419
        %2702 = vmatpush.bf16.msra.mxu0 %v1415
        %2703 = vmatpush.bf16.msra.mxu0 %v1411
        %2704 = vmatpush.bf16.msra.mxu0 %v1407
        %2705 = vmatpush.bf16.msra.mxu0 %v1403
        %2706 = vmatmul.bf16.gmra.mxu0 %v2655
        %v2707 = vpop.f32.mrf.mxu0
        %v2708 = vadd.f32 %v2694, %v2707
        %v2709 = vpop.f32.mrf.mxu0
        %v2710 = vadd.f32 %v2696, %v2709
        %2711 = vdwg.mxu0
        %2712 = vmatpush.bf16.msra.mxu0 %v1400
        %2713 = vmatpush.bf16.msra.mxu0 %v1396
        %2714 = vmatpush.bf16.msra.mxu0 %v1392
        %2715 = vmatpush.bf16.msra.mxu0 %v1388
        %2716 = vmatpush.bf16.msra.mxu0 %v1384
        %2717 = vmatpush.bf16.msra.mxu0 %v1380
        %2718 = vmatpush.bf16.msra.mxu0 %v1376
        %2719 = vmatpush.bf16.msra.mxu0 %v1372
        %2720 = vmatmul.bf16.gmra.mxu0 %v2654
        %v2721 = vpop.f32.mrf.mxu0
        %v2722 = vadd.f32 %v1172, %v2721
        %v2723 = vpop.f32.mrf.mxu0
        %v2724 = vadd.f32 %v1172, %v2723
        %2725 = vdwg.mxu0
        %2726 = vmatpush.bf16.msra.mxu0 %v1432
        %2727 = vmatpush.bf16.msra.mxu0 %v1428
        %2728 = vmatpush.bf16.msra.mxu0 %v1424
        %2729 = vmatpush.bf16.msra.mxu0 %v1420
        %2730 = vmatpush.bf16.msra.mxu0 %v1416
        %2731 = vmatpush.bf16.msra.mxu0 %v1412
        %2732 = vmatpush.bf16.msra.mxu0 %v1408
        %2733 = vmatpush.bf16.msra.mxu0 %v1404
        %2734 = vmatmul.bf16.gmra.mxu0 %v2655
        %v2735 = vpop.f32.mrf.mxu0
        %v2736 = vadd.f32 %v2722, %v2735
        %v2737 = vpop.f32.mrf.mxu0
        %v2738 = vadd.f32 %v2724, %v2737
        %2739 = vdwg.mxu0
        %2740 = vmatpush.bf16.msra.mxu0 %v1401
        %2741 = vmatpush.bf16.msra.mxu0 %v1397
        %2742 = vmatpush.bf16.msra.mxu0 %v1393
        %2743 = vmatpush.bf16.msra.mxu0 %v1389
        %2744 = vmatpush.bf16.msra.mxu0 %v1385
        %2745 = vmatpush.bf16.msra.mxu0 %v1381
        %2746 = vmatpush.bf16.msra.mxu0 %v1377
        %2747 = vmatpush.bf16.msra.mxu0 %v1373
        %2748 = vmatmul.bf16.gmra.mxu0 %v2654
        %v2749 = vpop.f32.mrf.mxu0
        %v2750 = vadd.f32 %v1173, %v2749
        %v2751 = vpop.f32.mrf.mxu0
        %v2752 = vadd.f32 %v1173, %v2751
        %2753 = vdwg.mxu0
        %2754 = vmatpush.bf16.msra.mxu0 %v1433
        %2755 = vmatpush.bf16.msra.mxu0 %v1429
        %2756 = vmatpush.bf16.msra.mxu0 %v1425
        %2757 = vmatpush.bf16.msra.mxu0 %v1421
        %2758 = vmatpush.bf16.msra.mxu0 %v1417
        %2759 = vmatpush.bf16.msra.mxu0 %v1413
        %2760 = vmatpush.bf16.msra.mxu0 %v1409
        %2761 = vmatpush.bf16.msra.mxu0 %v1405
        %2762 = vmatmul.bf16.gmra.mxu0 %v2655
        %v2763 = vpop.f32.mrf.mxu0
        %v2764 = vadd.f32 %v2750, %v2763
        %v2765 = vpop.f32.mrf.mxu0
        %v2766 = vadd.f32 %v2752, %v2765
        %2767 = vdwg.mxu0
        %v2768 = vxor.u32 %v2680, 2147483648
        %v2769 = vxor.u32 %v2682, 2147483648
        %v2770 = vmul.f32 %v2768, 1.442695
        %v2771 = vpow.pop %v2770
        %v2772 = vmul.f32 %v2769, 1.442695
        %v2773 = vpow.pop %v2772
        %v2774 = vadd.f32 %v2771, 1.0
        %v2775 = vadd.f32 %v2773, 1.0
        %v2776 = vrcp.pop %v2774
        %v2777 = vmul.f32 %v2774, %v2776
        %v2778 = vsub.f32 1.0, %v2777
        %v2779 = vmul.f32 %v2776, %v2778
        %v2780 = vadd.f32 %v2776, %v2779
        %vm2781 = vweird.f32 %v2774
        %vm2782 = vweird.f32 %v2776
        %vm2783 = vmor %vm2781, %vm2782
        %v2784 = vsel %vm2783, %v2776, %v2780
        %v2785 = vand.u32 2147483647, %v2774
        %vm2786 = vcmp.eq.f32.partialorder %v2785, 8.507059e+37
        %v2787 = vand.u32 %v2774, 2147483648
        %v2788 = vor.u32 1.1754944e-38, %v2787
        %v2789 = vsel %vm2786, %v2788, %v2784
        %v2790 = vmul.f32 1.0, %v2789
        %v2791 = vrcp.pop %v2775
        %v2792 = vmul.f32 %v2775, %v2791
        %v2793 = vsub.f32 1.0, %v2792
        %v2794 = vmul.f32 %v2791, %v2793
        %v2795 = vadd.f32 %v2791, %v2794
        %vm2796 = vweird.f32 %v2775
        %vm2797 = vweird.f32 %v2791
        %vm2798 = vmor %vm2796, %vm2797
        %v2799 = vsel %vm2798, %v2791, %v2795
        %v2800 = vand.u32 2147483647, %v2775
        %vm2801 = vcmp.eq.f32.partialorder %v2800, 8.507059e+37
        %v2802 = vand.u32 %v2775, 2147483648
        %v2803 = vor.u32 1.1754944e-38, %v2802
        %v2804 = vsel %vm2801, %v2803, %v2799
        %v2805 = vmul.f32 1.0, %v2804
        %v2806 = vxor.u32 %v2708, 2147483648
        %v2807 = vxor.u32 %v2710, 2147483648
        %v2808 = vmul.f32 %v2806, 1.442695
        %v2809 = vpow.pop %v2808
        %v2810 = vmul.f32 %v2807, 1.442695
        %v2811 = vpow.pop %v2810
        %v2812 = vadd.f32 %v2809, 1.0
        %v2813 = vadd.f32 %v2811, 1.0
        %v2814 = vrcp.pop %v2812
        %v2815 = vmul.f32 %v2812, %v2814
        %v2816 = vsub.f32 1.0, %v2815
        %v2817 = vmul.f32 %v2814, %v2816
        %v2818 = vadd.f32 %v2814, %v2817
        %vm2819 = vweird.f32 %v2812
        %vm2820 = vweird.f32 %v2814
        %vm2821 = vmor %vm2819, %vm2820
        %v2822 = vsel %vm2821, %v2814, %v2818
        %v2823 = vand.u32 2147483647, %v2812
        %vm2824 = vcmp.eq.f32.partialorder %v2823, 8.507059e+37
        %v2825 = vand.u32 %v2812, 2147483648
        %v2826 = vor.u32 1.1754944e-38, %v2825
        %v2827 = vsel %vm2824, %v2826, %v2822
        %v2828 = vmul.f32 1.0, %v2827
        %v2829 = vrcp.pop %v2813
        %v2830 = vmul.f32 %v2813, %v2829
        %v2831 = vsub.f32 1.0, %v2830
        %v2832 = vmul.f32 %v2829, %v2831
        %v2833 = vadd.f32 %v2829, %v2832
        %vm2834 = vweird.f32 %v2813
        %vm2835 = vweird.f32 %v2829
        %vm2836 = vmor %vm2834, %vm2835
        %v2837 = vsel %vm2836, %v2829, %v2833
        %v2838 = vand.u32 2147483647, %v2813
        %vm2839 = vcmp.eq.f32.partialorder %v2838, 8.507059e+37
        %v2840 = vand.u32 %v2813, 2147483648
        %v2841 = vor.u32 1.1754944e-38, %v2840
        %v2842 = vsel %vm2839, %v2841, %v2837
        %v2843 = vmul.f32 1.0, %v2842
        %v2844 = vtanh.pop %v2736
        %v2845 = vtanh.pop %v2738
        %v2846 = vxor.u32 %v2764, 2147483648
        %v2847 = vxor.u32 %v2766, 2147483648
        %v2848 = vmul.f32 %v2846, 1.442695
        %v2849 = vpow.pop %v2848
        %v2850 = vmul.f32 %v2847, 1.442695
        %v2851 = vpow.pop %v2850
        %v2852 = vadd.f32 %v2849, 1.0
        %v2853 = vadd.f32 %v2851, 1.0
        %v2854 = vrcp.pop %v2852
        %v2855 = vmul.f32 %v2852, %v2854
        %v2856 = vsub.f32 1.0, %v2855
        %v2857 = vmul.f32 %v2854, %v2856
        %v2858 = vadd.f32 %v2854, %v2857
        %vm2859 = vweird.f32 %v2852
        %vm2860 = vweird.f32 %v2854
        %vm2861 = vmor %vm2859, %vm2860
        %v2862 = vsel %vm2861, %v2854, %v2858
        %v2863 = vand.u32 2147483647, %v2852
        %vm2864 = vcmp.eq.f32.partialorder %v2863, 8.507059e+37
        %v2865 = vand.u32 %v2852, 2147483648
        %v2866 = vor.u32 1.1754944e-38, %v2865
        %v2867 = vsel %vm2864, %v2866, %v2862
        %v2868 = vmul.f32 1.0, %v2867
        %v2869 = vrcp.pop %v2853
        %v2870 = vmul.f32 %v2853, %v2869
        %v2871 = vsub.f32 1.0, %v2870
        %v2872 = vmul.f32 %v2869, %v2871
        %v2873 = vadd.f32 %v2869, %v2872
        %vm2874 = vweird.f32 %v2853
        %vm2875 = vweird.f32 %v2869
        %vm2876 = vmor %vm2874, %vm2875
        %v2877 = vsel %vm2876, %v2869, %v2873
        %v2878 = vand.u32 2147483647, %v2853
        %vm2879 = vcmp.eq.f32.partialorder %v2878, 8.507059e+37
        %v2880 = vand.u32 %v2853, 2147483648
        %v2881 = vor.u32 1.1754944e-38, %v2880
        %v2882 = vsel %vm2879, %v2881, %v2877
        %v2883 = vmul.f32 1.0, %v2882
        %v2884 = vmul.f32 %v2828, %v2333
        %v2885 = vmul.f32 %v2843, %v2334
        %v2886 = vmul.f32 %v2790, %v2844
        %v2887 = vmul.f32 %v2805, %v2845
        %v2888 = vadd.f32 %v2884, %v2886
        %v2889 = vadd.f32 %v2885, %v2887
        %v2890 = vtanh.pop %v2888
        %v2891 = vtanh.pop %v2889
        %v2892 = vmul.f32 %v2868, %v2890
        %v2893 = vmul.f32 %v2883, %v2891
        %v2894 = vmax.f32 %v2892, 0.0
        %v2895 = vmax.f32 %v2893, 0.0
        %v2896 = vand.u32 2147483647, %v2892
        %v2897 = vand.u32 2147483647, %v2893
        %v2898 = vsub.f32 0.0, %v2896
        %v2899 = vsub.f32 0.0, %v2897
        %v2900 = vmul.f32 %v2898, 1.442695
        %v2901 = vpow.pop %v2900
        %v2902 = vmul.f32 %v2899, 1.442695
        %v2903 = vpow.pop %v2902
        %v2904 = vadd.f32 %v2901, 1.0
        %v2905 = vadd.f32 %v2903, 1.0
        %v2906 = vlog2.pop %v2904
        %v2907 = vmul.f32 %v2906, 0.6931472
        %v2908 = vlog2.pop %v2905
        %v2909 = vmul.f32 %v2908, 0.6931472
        %v2910 = vadd.f32 %v2894, %v2907
        %v2911 = vadd.f32 %v2895, %v2909
        %v2912 = vpack.c.bf16 %v2911, %v2910
        %2913 = vmatpush.bf16.msra.mxu0 %v1794
        %2914 = vmatpush.bf16.msra.mxu0 %v1793
        %2915 = vmatpush.bf16.msra.mxu0 %v1792
        %2916 = vmatpush.bf16.msra.mxu0 %v1791
        %2917 = vmatpush.bf16.msra.mxu0 %v1790
        %2918 = vmatpush.bf16.msra.mxu0 %v1789
        %2919 = vmatpush.bf16.msra.mxu0 %v1788
        %2920 = vmatpush.bf16.msra.mxu0 %v1787
        %2921 = vmatmul.bf16.gmra.mxu0 %v2912
        %v2922 = vpop.f32.mrf.mxu0
        %v2923 = vadd.f32 %v461, %v2922
        %v2924 = vpop.f32.mrf.mxu0
        %v2925 = vadd.f32 %v461, %v2924
        %2926 = vdwg.mxu0
        %2927 = vst [vmem:[%s292] sm:$0xff] %v1813
        %2928 = vst [vmem:[%s292 + $0x8] sm:$0xff] %v1139
        %2929 = vst [vmem:[%s292 + $0x10] sm:$0xff] %v1153
        %2930 = vst [vmem:[%s292 + $0x18] sm:$0xff] %v1165
        %2931 = vst [vmem:[%s292 + $0x20] sm:$0xff] %v2368
        %2932 = vst [vmem:[%s292 + $0x28] sm:$0xff] %v2071
        %2933 = vst [vmem:[%s292 + $0x30] sm:$0xff] %v2085
        %2934 = vst [vmem:[%s292 + $0x38] sm:$0xff] %v2097
        %2935 = vst [vmem:[%s292 + $0x40] sm:$0xff] %v2923
        %2936 = vst [vmem:[%s292 + $0x48] sm:$0xff] %v2626
        %2937 = vst [vmem:[%s292 + $0x50] sm:$0xff] %v2640
        %2938 = vst [vmem:[%s292 + $0x58] sm:$0xff] %v2652
        %2939 = vst [vmem:[%s292 + $0x60] sm:$0xff] %v1815
        %2940 = vst [vmem:[%s292 + $0x68] sm:$0xff] %v1141
        %2941 = vst [vmem:[%s292 + $0x70] sm:$0xff] %v1155
        %2942 = vst [vmem:[%s292 + $0x78] sm:$0xff] %v1166
        %2943 = vst [vmem:[%s292 + $0x80] sm:$0xff] %v2370
        %2944 = vst [vmem:[%s292 + $0x88] sm:$0xff] %v2073
        %2945 = vst [vmem:[%s292 + $0x90] sm:$0xff] %v2087
        %2946 = vst [vmem:[%s292 + $0x98] sm:$0xff] %v2098
        %2947 = vst [vmem:[%s292 + $0xa0] sm:$0xff] %v2925
        %2948 = vst [vmem:[%s292 + $0xa8] sm:$0xff] %v2628
        %2949 = vst [vmem:[%s292 + $0xb0] sm:$0xff] %v2642
        %2950 = vst [vmem:[%s292 + $0xb8] sm:$0xff] %v2653
        %s2951 = sand.u32 %s127, 1
        %s2952 = scalar_lea.sflag [#allocation4], %s2951
        %s2953 = sand.u32 %s127, 1
        %s2954 = smul.addr %s2953, 192
        %s2955 = scalar_lea.vmem [#allocation10], %s2954
        // Predicated region
        $region53: #{tpu_custom_call.1} parent=35 // pred_check
          %p2956 = pneg %p137
        $region54: #{tpu_custom_call.1} parent=35 // pred_check_branch
          %2958 = sbr.rel (%p2956) target = $region56
        $region55: #{tpu_custom_call.1} parent=35 // pred_region
          %s2959 = smul.u32 2, %s25
          %2961 = vsyncadd %s2952, 0
          %s2962 = smul.addr %s2959, 12
          %s2963 = smul.addr %s2962, 8
          %s2964 = scalar_lea.hbm %s4, %s2963
          %s2965 = sshll.u32 %s2955, 4
          %s2966 = int_to_ptr.vmem [resolvable:$true] %s2965
          %s2967 = sshll.u32 %s2964, 4
          %s2968 = int_to_ptr.hbm [resolvable:$true] %s2967
          %2973 = dma.vmem_to_hbm [thread:$0]  %s2966, 3072, %s2968, %s2952, 1536, 1536, 96
        $region56: #{tpu_custom_call.1} parent=35 // pred_fallthru
          _
      $region36: #{tpu_custom_call.1} parent=5 // pred_fallthru
        _
      %p2974 = scmp.le.s32.totalorder 2, %s20
      // Predicated region
      $region57: #{tpu_custom_call.1} parent=5 // pred_check
        %p2975 = pneg %p2974
      $region58: #{tpu_custom_call.1} parent=5 // pred_check_branch
        %2977 = sbr.rel (%p2975) target = $region60
      $region59: #{tpu_custom_call.1} parent=5 // pred_region
        %s2978 = ssub.s32 %s20, 2
        // Predicated region
        $region61: #{tpu_custom_call.1} parent=59 // pred_check
          %p2979 = pneg %p143
        $region62: #{tpu_custom_call.1} parent=59 // pred_check_branch
          %2981 = sbr.rel (%p2979) target = $region64
        $region63: #{tpu_custom_call.1} parent=59 // pred_region
          %s2982 = sand.u32 %s128, 1
          %s2983 = scalar_lea.sflag [#allocation4], %s2982
          %s2984 = sand.u32 %s128, 1
          %s2985 = smul.addr %s2984, 192
          %s2986 = scalar_lea.vmem [#allocation10], %s2985
          %2988 = dma.done %s2983, 3072
        $region64: #{tpu_custom_call.1} parent=59 // pred_fallthru
          _
      $region60: #{tpu_custom_call.1} parent=5 // pred_fallthru
        _
    $region6: #{tpu_custom_call.1} parent=1 // loop_footer
      %s24 = sadd.s32 1, %s20
    $region7: #{tpu_custom_call.1} parent=1 // loop_footer_branch
      %19 = sbr.rel target = $region3
    $region8: #{tpu_custom_call.1} parent=1 // loop_exit
      _
    %2989 = vsyncpa [#allocation3], 1
    %s2990 = scalar_lea.sflag [#allocation3], 1
    %2991 = vsyncpa %s2990, 1
    %2992 = vsyncpa [#allocation6], 1
    %s2993 = scalar_lea.sflag [#allocation6], 1
    %2994 = vsyncpa %s2993, 1
    %2995 = vsyncpa [#allocation9], 1
    %2996 = vsyncpa [#allocation4], 1
    %s2997 = scalar_lea.sflag [#allocation4], 1
    %2998 = vsyncpa %s2997, 1

</llo_original>
